<compile_context>
chip_gen: v7x
topology: tpu7x:2x2x1
jax: 0.10.0
libtpu: 0.0.40
codegen_flags: <defaults>
</compile_context>

<pallas_src>
import functools

import jax
import jax.numpy as jnp
from jax.experimental import pallas as pl
from jax.experimental.pallas import tpu as pltpu


# ---------------------------------------------------------------------------
# Helpers
# ---------------------------------------------------------------------------
def _layer_norm(x, gamma, beta, eps=1e-5):
    mean = jnp.mean(x, axis=-1, keepdims=True)
    var = jnp.mean(jnp.square(x - mean), axis=-1, keepdims=True)
    return (x - mean) * jax.lax.rsqrt(var + eps) * gamma + beta


def _vmem_capacity_bytes():
    try:
        return int(pltpu.get_tpu_info().vmem_capacity_bytes)
    except Exception:
        return 64 * 1024 * 1024  # conservative default (v7x per-TC VMEM)


def _largest_divisor(n, cap, multiple_of=1):
    for c in range(min(n, cap), 0, -1):
        if n % c == 0 and c % multiple_of == 0:
            return c
    return None


def _vmem_estimate(bb, tq, sk, e, dff, gd, n_tensors, weight_bytes,
                   need_weights, attw_bytes):
    """Rough per-grid-step VMEM footprint (bytes), used to size bb and the limit."""
    f32 = 4
    m = bb * tq
    mk = bb * sk
    est = 0
    est += bb * tq * e * f32 * 2                        # q tile (double-buffered)
    est += max(0, n_tensors - 1) * mk * e * f32 * 2     # full-length K/V tensors
    est += tq * sk * f32 * 2                            # additive mask
    est += bb * tq * e * f32 * 2                        # output block
    if need_weights:
        est += bb * tq * sk * attw_bytes * 2            # attention-weights output
    est += weight_bytes * 2                             # conservative: 2 buffers
    # in-kernel live intermediates (rough upper bound)
    est += m * e * 2 + 2 * mk * e * 2                   # bf16 activation copies
    est += (m + 2 * mk) * gd * f32                      # one group of Q/K/V proj
    est += 2 * bb * tq * sk * f32                       # scores + probabilities
    est += m * e * f32                                  # attention accumulator
    if need_weights:
        est += bb * tq * sk * f32                       # attw accumulator
    est += m * dff * (f32 + 2)                          # FFN hidden (f32 + bf16)
    est += 2 * m * e * f32                              # residual / LN temps
    return est


# ---------------------------------------------------------------------------
# Fused kernel: one (bb, tq) query block against the full key/value sequence.
# ---------------------------------------------------------------------------
def _block_kernel(num_heads, group_size, mode, need_weights, *refs):
    refs = list(refs)
    if mode == "self":              # q = k = v and the q block is the full sequence
        q_ref = refs.pop(0)
        k_ref = v_ref = q_ref
    elif mode == "kv":              # key is value (cross-attention / tiled self-attn)
        q_ref = refs.pop(0)
        k_ref = v_ref = refs.pop(0)
    else:                           # fully general q, k, v
        q_ref = refs.pop(0)
        k_ref = refs.pop(0)
        v_ref = refs.pop(0)

    (mask_ref,
     wq_ref, bq_ref, wk_ref, bk_ref, wv_ref, bv_ref,
     wo_ref, bo_ref, w1_ref, b1_ref, w2_ref, b2_ref,
     g_ref, b_ref) = refs[:15]
    out_ref = refs[15]
    attw_ref = refs[16] if need_weights else None

    bb, tq, E = q_ref.shape
    Sk = k_ref.shape[1]
    H = num_heads
    d = E // H
    gs = group_size
    ng = H // gs
    M = bb * tq
    Mk = bb * Sk

    # bf16 MXU operands (weights are pre-cast in the wrapper); f32 accumulation.
    q2 = q_ref[...].reshape(M, E).astype(jnp.bfloat16)
    if k_ref is q_ref:
        k2 = q2
    else:
        k2 = k_ref[...].reshape(Mk, E).astype(jnp.bfloat16)
    if v_ref is k_ref:
        v2 = k2
    else:
        v2 = v_ref[...].reshape(Mk, E).astype(jnp.bfloat16)

    mask = mask_ref[...].astype(jnp.float32)            # (tq, Sk), additive

    attn_acc = jnp.zeros((M, E), jnp.float32)
    if need_weights:
        attw_acc = jnp.zeros((bb, tq, Sk), jnp.float32)

    # Head-GROUPED projections: one dot per group with N = gs*d (fills MXU
    # lanes), then per-head attention inside the group.  The 1/sqrt(d) scale is
    # already folded into wq/bq by the wrapper.
    for g in range(ng):
        Qg = jnp.dot(q2, wq_ref[g], preferred_element_type=jnp.float32) + bq_ref[g]
        Kg = jnp.dot(k2, wk_ref[g], preferred_element_type=jnp.float32) + bk_ref[g]
        Vg = jnp.dot(v2, wv_ref[g], preferred_element_type=jnp.float32) + bv_ref[g]
        for hh in range(gs):
            h = g * gs + hh
            Qh = Qg[:, hh * d:(hh + 1) * d].reshape(bb, tq, d).astype(jnp.bfloat16)
            Kh = Kg[:, hh * d:(hh + 1) * d].reshape(bb, Sk, d).astype(jnp.bfloat16)
            Vh = Vg[:, hh * d:(hh + 1) * d].reshape(bb, Sk, d).astype(jnp.bfloat16)

            s = jnp.einsum('bqd,bkd->bqk', Qh, Kh,
                           preferred_element_type=jnp.float32)      # (bb, tq, Sk)
            s = s + mask[None]
            s = s - jnp.max(s, axis=-1, keepdims=True)
            p = jnp.exp(s)
            # approx reciprocal uses the EUP slot (~free); rows sum to 1 within
            # ~1e-3 — use approx=False if exact attention weights are required.
            p = p * pl.reciprocal(jnp.sum(p, axis=-1, keepdims=True), approx=True)
            if need_weights:
                attw_acc = attw_acc + p

            ctx = jnp.einsum('bqk,bkd->bqd', p.astype(jnp.bfloat16), Vh,
                             preferred_element_type=jnp.float32)    # (bb, tq, d)
            # Per-head W_o accumulation (no lane-axis concat of ctx needed).
            attn_acc = attn_acc + jnp.dot(
                ctx.reshape(M, d).astype(jnp.bfloat16), wo_ref[h],
                preferred_element_type=jnp.float32)

    attn = (attn_acc + bo_ref[...]).reshape(bb, tq, E)

    gamma = g_ref[...]
    beta = b_ref[...]
    # dropout_1: identity (eval).  Residual with the query (re-read from VMEM
    # instead of holding an f32 copy live across the head loop).
    a_norm = _layer_norm(attn + q_ref[...].astype(jnp.float32), gamma, beta)

    h1 = jnp.dot(a_norm.reshape(M, E).astype(jnp.bfloat16), w1_ref[...],
                 preferred_element_type=jnp.float32) + b1_ref[...]
    h1 = jnp.maximum(h1, 0.0)
    ff = (jnp.dot(h1.astype(jnp.bfloat16), w2_ref[...],
                  preferred_element_type=jnp.float32) + b2_ref[...]).reshape(bb, tq, E)

    # dropout_2: identity.  Residual with the *query* (as in the reference),
    # same LayerNorm module (same gamma/beta) as above.
    out = _layer_norm(ff + q_ref[...].astype(jnp.float32), gamma, beta)

    out_ref[...] = out.astype(out_ref.dtype)
    if need_weights:
        attw_ref[...] = (attw_acc * (1.0 / H)).astype(attw_ref.dtype)


# ---------------------------------------------------------------------------
# Wrapper
# ---------------------------------------------------------------------------
def transformer_encoding_block(query, key, value, attn_mask, params, num_heads,
                               *, batch_block=None, q_block=None,
                               need_weights=True,
                               attn_weights_dtype=jnp.float32,
                               lane_target=256,
                               single_buffer_weights=True):
    """query/key/value: (B, S, E) f32; attn_mask: (Sq, Sk) additive float or bool.

    Returns (ff_output (B,Sq,E), attn_output_weights (B,Sq,Sk) or None), like
    the PyTorch module (weights head-averaged).
    """
    B, Sq, E = query.shape
    Sk = key.shape[1]
    H = num_heads
    assert E % H == 0
    d = E // H
    dff = params["w1"].shape[1]

    # Boolean mask (PyTorch semantics: True = masked) -> additive float mask.
    if attn_mask.dtype == jnp.bool_:
        attn_mask = jnp.where(attn_mask, jnp.float32(-1e9), jnp.float32(0.0))
    attn_mask = attn_mask.astype(jnp.float32)

    # ---- query-sequence tile ----
    if q_block is not None:
        tq = q_block
    elif Sq <= 512:
        tq = Sq
    else:
        tq = _largest_divisor(Sq, cap=256, multiple_of=8) or Sq
    assert Sq % tq == 0

    # ---- input dedup mode ----
    if (key is query) and (value is query) and (tq == Sq):
        mode, tensors = "self", (query,)
    elif key is value:
        mode, tensors = "kv", (query, key)
    else:
        mode, tensors = "qkv", (query, key, value)
    n_tensors = len(tensors)

    # ---- head grouping (fill MXU lanes: target N ~ lane_target) ----
    gs = max(1, min(H, max(1, lane_target // d)))
    while H % gs != 0:
        gs -= 1
    ng = H // gs
    gd = gs * d

    # ---- weights: head-grouped, bf16 MXU operands, scale folded into wq/bq ----
    scale = 1.0 / float(d) ** 0.5

    def group_w(w):  # (E, E) (in, out) -> (ng, E, gd)
        return jnp.transpose(w.reshape(E, ng, gd), (1, 0, 2)).astype(jnp.bfloat16)

    def group_b(b):  # (1, E) -> (ng, 1, gd), f32
        return b.reshape(ng, 1, gd).astype(jnp.float32)

    weights = [
        group_w(params["wq"] * scale), group_b(params["bq"] * scale),
        group_w(params["wk"]), group_b(params["bk"]),
        group_w(params["wv"]), group_b(params["bv"]),
        params["wo"].astype(jnp.bfloat16).reshape(H, d, E),
        params["bo"].astype(jnp.float32),
        params["w1"].astype(jnp.bfloat16), params["b1"].astype(jnp.float32),
        params["w2"].astype(jnp.bfloat16), params["b2"].astype(jnp.float32),
        params["ln_g"].astype(jnp.float32), params["ln_b"].astype(jnp.float32),
    ]
    weight_bytes = sum(int(w.size) * w.dtype.itemsize for w in weights)
    attw_bytes = jnp.dtype(attn_weights_dtype).itemsize

    # ---- batch block: largest divisor that fits the VMEM budget AND still
    # gives enough grid steps for software pipelining ----
    cap = _vmem_capacity_bytes()
    budget = cap // 2
    if batch_block is not None:
        bb = batch_block
    else:
        bb = 1
        min_steps = min(B * (Sq // tq), 4)
        for c in range(B, 0, -1):
            if B % c:
                continue
            if (B // c) * (Sq // tq) < min_steps:
                continue
            if _vmem_estimate(c, tq, Sk, E, dff, gd, n_tensors, weight_bytes,
                              need_weights, attw_bytes) <= budget:
                bb = c
                break
    assert B % bb == 0
    grid = (B // bb, Sq // tq)

    est = _vmem_estimate(bb, tq, Sk, E, dff, gd, n_tensors, weight_bytes,
                         need_weights, attw_bytes)
    vmem_limit = int(min(int(0.92 * cap), max(32 << 20, 2 * est)))

    # ---- specs ----
    q_spec = pl.BlockSpec((bb, tq, E), lambda i, qi: (i, qi, 0))
    kv_spec = pl.BlockSpec((bb, Sk, E), lambda i, qi: (i, 0, 0))
    mask_spec = pl.BlockSpec((tq, Sk), lambda i, qi: (qi, 0))
    if mode == "self":
        t_specs = [q_spec]
    elif mode == "kv":
        t_specs = [q_spec, kv_spec]
    else:
        t_specs = [q_spec, kv_spec, kv_spec]

    out_shapes = [jax.ShapeDtypeStruct((B, Sq, E), jnp.float32)]
    out_specs = [pl.BlockSpec((bb, tq, E), lambda i, qi: (i, qi, 0))]
    if need_weights:
        out_shapes.append(jax.ShapeDtypeStruct((B, Sq, Sk), attn_weights_dtype))
        out_specs.append(pl.BlockSpec((bb, tq, Sk), lambda i, qi: (i, qi, 0)))

    kernel = functools.partial(_block_kernel, H, gs, mode, need_weights)

    def _run(use_single_buffer):
        def wspec(a):
            zmap = (lambda i, qi, nd=a.ndim: (0,) * nd)
            if use_single_buffer:
                # Constant-index weights stay resident; one buffer is enough.
                return pl.BlockSpec(a.shape, zmap, pipeline_mode=pl.Buffered(1))
            return pl.BlockSpec(a.shape, zmap)

        call = pl.pallas_call(
            kernel,
            out_shape=tuple(out_shapes),
            grid=grid,
            in_specs=t_specs + [mask_spec] + [wspec(w) for w in weights],
            out_specs=tuple(out_specs),
            compiler_params=pltpu.CompilerParams(
                dimension_semantics=("parallel", "parallel"),
                vmem_limit_bytes=vmem_limit),
        )
        return call(*tensors, attn_mask, *weights)

    try:
        results = _run(single_buffer_weights)
    except Exception:
        if not single_buffer_weights:
            raise
        # Fallback for Pallas builds that reject single-buffered blocks.
        results = _run(False)

    if need_weights:
        return results[0], results[1]
    return results[0], None


# ---------------------------------------------------------------------------
# Parameters (synthetic, deterministic). Linear weights pre-transposed (in, out).
# ---------------------------------------------------------------------------
def init_block_params(key, dim_attn, dim_ff):
    ks = jax.random.split(key, 10)
    s = 0.05
    n = lambda k, shape: jax.random.normal(k, shape, jnp.float32) * s
    return {
        "wq": n(ks[0], (dim_attn, dim_attn)), "bq": n(ks[1], (1, dim_attn)),
        "wk": n(ks[2], (dim_attn, dim_attn)), "bk": n(ks[3], (1, dim_attn)),
        "wv": n(ks[4], (dim_attn, dim_attn)), "bv": n(ks[5], (1, dim_attn)),
        "wo": n(ks[6], (dim_attn, dim_attn)), "bo": n(ks[7], (1, dim_attn)),
        "w1": n(ks[8], (dim_attn, dim_ff)),   "b1": jnp.zeros((1, dim_ff), jnp.float32),
        "w2": n(ks[9], (dim_ff, dim_attn)),   "b2": jnp.zeros((1, dim_attn), jnp.float32),
        "ln_g": jnp.ones((1, dim_attn), jnp.float32),
        "ln_b": jnp.zeros((1, dim_attn), jnp.float32),
    }


# Pure-JAX f32 reference (same math as the PyTorch module in eval mode).
def reference_block(query, key, value, attn_mask, params, num_heads):
    E = query.shape[-1]
    d = E // num_heads
    scale = 1.0 / float(d) ** 0.5

    def heads(x):                      # (B, S, E) -> (B, H, S, d)
        B, S, _ = x.shape
        return jnp.transpose(x.reshape(B, S, num_heads, d), (0, 2, 1, 3))

    Q = heads(query @ params["wq"] + params["bq"])
    K = heads(key @ params["wk"] + params["bk"])
    V = heads(value @ params["wv"] + params["bv"])
    s = jnp.einsum('bhqd,bhkd->bhqk', Q, K) * scale + attn_mask[None, None]
    p = jax.nn.softmax(s, axis=-1)
    ctx = jnp.einsum('bhqk,bhkd->bhqd', p, V)
    B, H, S, _ = ctx.shape
    ctx = jnp.transpose(ctx, (0, 2, 1, 3)).reshape(B, S, E)
    attn = ctx @ params["wo"] + params["bo"]

    def ln(x):
        m = jnp.mean(x, -1, keepdims=True)
        v = jnp.mean((x - m) ** 2, -1, keepdims=True)
        return (x - m) / jnp.sqrt(v + 1e-5) * params["ln_g"] + params["ln_b"]

    a = ln(attn + query)
    ff = jnp.maximum(a @ params["w1"] + params["b1"], 0.0) @ params["w2"] + params["b2"]
    out = ln(ff + query)
    return out, jnp.mean(p, axis=1)


if __name__ == "__main__":
    B, S = 2, 8
    dim_attn, num_heads, dim_ff = 32, 2, 64

    key = jax.random.PRNGKey(0)
    kp, kq, kk = jax.random.split(key, 3)
    params = init_block_params(kp, dim_attn, dim_ff)

    query = jax.random.normal(kq, (B, S, dim_attn), jnp.float32)
    other = jax.random.normal(kk, (B, S, dim_attn), jnp.float32)
    causal = jnp.where(jnp.triu(jnp.ones((S, S), jnp.bool_), k=1),
                       -1e9, 0.0).astype(jnp.float32)

    # Self-attention path (q = k = v): input DMA'd once.
    out, attw = transformer_encoding_block(query, query, query, causal,
                                           params, num_heads)
    # Cross-attention path (key is value != query): key/value DMA'd once.
    out2, attw2 = transformer_encoding_block(query, other, other, causal,
                                             params, num_heads)
    jax.block_until_ready((out, attw, out2, attw2))

    ref_out, ref_attw = reference_block(query, query, query, causal, params, num_heads)
    ref_out2, ref_attw2 = reference_block(query, other, other, causal, params, num_heads)

    assert out.shape == (B, S, dim_attn) and attw.shape == (B, S, S)
    assert bool(jnp.all(jnp.isfinite(out))) and bool(jnp.all(jnp.isfinite(out2)))
    # bf16 MXU operands + approx reciprocal -> loose tolerance vs f32 reference.
    assert bool(jnp.allclose(out, ref_out, atol=5e-2, rtol=5e-2))
    assert bool(jnp.allclose(attw, ref_attw, atol=2e-2, rtol=2e-2))
    assert bool(jnp.allclose(out2, ref_out2, atol=5e-2, rtol=5e-2))
    assert bool(jnp.allclose(attw2, ref_attw2, atol=2e-2, rtol=2e-2))
    print("KERNEL_OK")
</pallas_src>

<mosaic_0001>
module attributes {stable_mosaic.version = 11 : i64} {
  func.func @_block_kernel(%arg0: i32, %arg1: i32, %arg2: memref<1x8x32xf32, #tpu.memory_space<vmem>>, %arg3: memref<8x8xf32, #tpu.memory_space<vmem>>, %arg4: memref<1x32x32xbf16, #tpu.memory_space<vmem>>, %arg5: memref<1x1x32xf32, #tpu.memory_space<vmem>>, %arg6: memref<1x32x32xbf16, #tpu.memory_space<vmem>>, %arg7: memref<1x1x32xf32, #tpu.memory_space<vmem>>, %arg8: memref<1x32x32xbf16, #tpu.memory_space<vmem>>, %arg9: memref<1x1x32xf32, #tpu.memory_space<vmem>>, %arg10: memref<2x16x32xbf16, #tpu.memory_space<vmem>>, %arg11: memref<1x32xf32, #tpu.memory_space<vmem>>, %arg12: memref<32x64xbf16, #tpu.memory_space<vmem>>, %arg13: memref<1x64xf32, #tpu.memory_space<vmem>>, %arg14: memref<64x32xbf16, #tpu.memory_space<vmem>>, %arg15: memref<1x32xf32, #tpu.memory_space<vmem>>, %arg16: memref<1x32xf32, #tpu.memory_space<vmem>>, %arg17: memref<1x32xf32, #tpu.memory_space<vmem>>, %arg18: memref<1x8x32xf32, #tpu.memory_space<vmem>>, %arg19: memref<1x8x8xf32, #tpu.memory_space<vmem>>) attributes {dimension_semantics = [#tpu.dimension_semantics<parallel>, #tpu.dimension_semantics<parallel>], iteration_bounds = array<i64: 2, 1>, scalar_prefetch = 0 : i64, scratch_operands = 0 : i64, tpu.core_type = #tpu.core_type<tc>, window_params = [{transform_indices = @transform_0, window_bounds = array<i64: 1, 8, 32>}, {transform_indices = @transform_1, window_bounds = array<i64: 8, 8>}, {pipeline_mode = #tpu.pipeline_mode<synchronous>, transform_indices = @transform_2, window_bounds = array<i64: 1, 32, 32>}, {pipeline_mode = #tpu.pipeline_mode<synchronous>, transform_indices = @transform_3, window_bounds = array<i64: 1, 1, 32>}, {pipeline_mode = #tpu.pipeline_mode<synchronous>, transform_indices = @transform_4, window_bounds = array<i64: 1, 32, 32>}, {pipeline_mode = #tpu.pipeline_mode<synchronous>, transform_indices = @transform_5, window_bounds = array<i64: 1, 1, 32>}, {pipeline_mode = #tpu.pipeline_mode<synchronous>, transform_indices = @transform_6, window_bounds = array<i64: 1, 32, 32>}, {pipeline_mode = #tpu.pipeline_mode<synchronous>, transform_indices = @transform_7, window_bounds = array<i64: 1, 1, 32>}, {pipeline_mode = #tpu.pipeline_mode<synchronous>, transform_indices = @transform_8, window_bounds = array<i64: 2, 16, 32>}, {pipeline_mode = #tpu.pipeline_mode<synchronous>, transform_indices = @transform_9, window_bounds = array<i64: 1, 32>}, {pipeline_mode = #tpu.pipeline_mode<synchronous>, transform_indices = @transform_10, window_bounds = array<i64: 32, 64>}, {pipeline_mode = #tpu.pipeline_mode<synchronous>, transform_indices = @transform_11, window_bounds = array<i64: 1, 64>}, {pipeline_mode = #tpu.pipeline_mode<synchronous>, transform_indices = @transform_12, window_bounds = array<i64: 64, 32>}, {pipeline_mode = #tpu.pipeline_mode<synchronous>, transform_indices = @transform_13, window_bounds = array<i64: 1, 32>}, {pipeline_mode = #tpu.pipeline_mode<synchronous>, transform_indices = @transform_14, window_bounds = array<i64: 1, 32>}, {pipeline_mode = #tpu.pipeline_mode<synchronous>, transform_indices = @transform_15, window_bounds = array<i64: 1, 32>}, {transform_indices = @transform_16, window_bounds = array<i64: 1, 8, 32>}, {transform_indices = @transform_17, window_bounds = array<i64: 1, 8, 8>}]} {
    %c0 = arith.constant 0 : index
    %c0_0 = arith.constant 0 : index
    %c0_1 = arith.constant 0 : index
    %0 = vector.load %arg2[%c0, %c0_0, %c0_1] : memref<1x8x32xf32, #tpu.memory_space<vmem>>, vector<1x8x32xf32>
    %1 = vector.shape_cast %0 : vector<1x8x32xf32> to vector<8x32xf32>
    %2 = arith.truncf %1 : vector<8x32xf32> to vector<8x32xbf16>
    %c0_2 = arith.constant 0 : index
    %c0_3 = arith.constant 0 : index
    %3 = vector.load %arg3[%c0_2, %c0_3] : memref<8x8xf32, #tpu.memory_space<vmem>>, vector<8x8xf32>
    %cst = arith.constant 0.000000e+00 : f32
    %4 = vector.broadcast %cst : f32 to vector<8x32xf32>
    %cst_4 = arith.constant 0.000000e+00 : f32
    %5 = vector.broadcast %cst_4 : f32 to vector<1x8x8xf32>
    %c0_5 = arith.constant 0 : index
    %c0_6 = arith.constant 0 : index
    %c0_7 = arith.constant 0 : index
    %6 = vector.load %arg4[%c0_5, %c0_6, %c0_7] : memref<1x32x32xbf16, #tpu.memory_space<vmem>>, vector<1x32x32xbf16>
    %7 = vector.shape_cast %6 : vector<1x32x32xbf16> to vector<32x32xbf16>
    %cst_8 = arith.constant dense<0.000000e+00> : vector<8x32xf32>
    %8 = tpu.matmul %2, %7, %cst_8 {dimension_numbers = #tpu.dot_dimension_numbers<[1], [0], [0], [1], [0, 0, 1, 1], [], []>} : vector<8x32xbf16>, vector<32x32xbf16>, vector<8x32xf32> -> vector<8x32xf32>
    %c0_9 = arith.constant 0 : index
    %c0_10 = arith.constant 0 : index
    %c0_11 = arith.constant 0 : index
    %9 = vector.load %arg5[%c0_9, %c0_10, %c0_11] : memref<1x1x32xf32, #tpu.memory_space<vmem>>, vector<1x1x32xf32>
    %10 = vector.shape_cast %9 : vector<1x1x32xf32> to vector<1x32xf32>
    %11 = vector.broadcast %10 : vector<1x32xf32> to vector<8x32xf32>
    %12 = arith.addf %8, %11 : vector<8x32xf32>
    %c0_12 = arith.constant 0 : index
    %c0_13 = arith.constant 0 : index
    %c0_14 = arith.constant 0 : index
    %13 = vector.load %arg6[%c0_12, %c0_13, %c0_14] : memref<1x32x32xbf16, #tpu.memory_space<vmem>>, vector<1x32x32xbf16>
    %14 = vector.shape_cast %13 : vector<1x32x32xbf16> to vector<32x32xbf16>
    %cst_15 = arith.constant dense<0.000000e+00> : vector<8x32xf32>
    %15 = tpu.matmul %2, %14, %cst_15 {dimension_numbers = #tpu.dot_dimension_numbers<[1], [0], [0], [1], [0, 0, 1, 1], [], []>} : vector<8x32xbf16>, vector<32x32xbf16>, vector<8x32xf32> -> vector<8x32xf32>
    %c0_16 = arith.constant 0 : index
    %c0_17 = arith.constant 0 : index
    %c0_18 = arith.constant 0 : index
    %16 = vector.load %arg7[%c0_16, %c0_17, %c0_18] : memref<1x1x32xf32, #tpu.memory_space<vmem>>, vector<1x1x32xf32>
    %17 = vector.shape_cast %16 : vector<1x1x32xf32> to vector<1x32xf32>
    %18 = vector.broadcast %17 : vector<1x32xf32> to vector<8x32xf32>
    %19 = arith.addf %15, %18 : vector<8x32xf32>
    %c0_19 = arith.constant 0 : index
    %c0_20 = arith.constant 0 : index
    %c0_21 = arith.constant 0 : index
    %20 = vector.load %arg8[%c0_19, %c0_20, %c0_21] : memref<1x32x32xbf16, #tpu.memory_space<vmem>>, vector<1x32x32xbf16>
    %21 = vector.shape_cast %20 : vector<1x32x32xbf16> to vector<32x32xbf16>
    %cst_22 = arith.constant dense<0.000000e+00> : vector<8x32xf32>
    %22 = tpu.matmul %2, %21, %cst_22 {dimension_numbers = #tpu.dot_dimension_numbers<[1], [0], [0], [1], [0, 0, 1, 1], [], []>} : vector<8x32xbf16>, vector<32x32xbf16>, vector<8x32xf32> -> vector<8x32xf32>
    %c0_23 = arith.constant 0 : index
    %c0_24 = arith.constant 0 : index
    %c0_25 = arith.constant 0 : index
    %23 = vector.load %arg9[%c0_23, %c0_24, %c0_25] : memref<1x1x32xf32, #tpu.memory_space<vmem>>, vector<1x1x32xf32>
    %24 = vector.shape_cast %23 : vector<1x1x32xf32> to vector<1x32xf32>
    %25 = vector.broadcast %24 : vector<1x32xf32> to vector<8x32xf32>
    %26 = arith.addf %22, %25 : vector<8x32xf32>
    %27 = vector.extract_strided_slice %12 {offsets = [0, 0], sizes = [8, 16], strides = [1, 1]} : vector<8x32xf32> to vector<8x16xf32>
    %28 = vector.shape_cast %27 : vector<8x16xf32> to vector<1x8x16xf32>
    %29 = arith.truncf %28 : vector<1x8x16xf32> to vector<1x8x16xbf16>
    %30 = vector.extract_strided_slice %19 {offsets = [0, 0], sizes = [8, 16], strides = [1, 1]} : vector<8x32xf32> to vector<8x16xf32>
    %31 = vector.shape_cast %30 : vector<8x16xf32> to vector<1x8x16xf32>
    %32 = arith.truncf %31 : vector<1x8x16xf32> to vector<1x8x16xbf16>
    %33 = vector.extract_strided_slice %26 {offsets = [0, 0], sizes = [8, 16], strides = [1, 1]} : vector<8x32xf32> to vector<8x16xf32>
    %34 = vector.shape_cast %33 : vector<8x16xf32> to vector<1x8x16xf32>
    %35 = arith.truncf %34 : vector<1x8x16xf32> to vector<1x8x16xbf16>
    "tpu.trace_start"() <{level = 10 : i32, message = "bqd,bkd->bqk"}> : () -> ()
    %cst_26 = arith.constant dense<0.000000e+00> : vector<1x8x8xf32>
    %36 = tpu.matmul %29, %32, %cst_26 {dimension_numbers = #tpu.dot_dimension_numbers<[2], [2], [1], [1], [0, 0, 0, 1, 1, 1], [0], [0]>} : vector<1x8x16xbf16>, vector<1x8x16xbf16>, vector<1x8x8xf32> -> vector<1x8x8xf32>
    "tpu.trace_stop"() : () -> ()
    %37 = vector.shape_cast %3 : vector<8x8xf32> to vector<1x8x8xf32>
    %38 = arith.addf %36, %37 : vector<1x8x8xf32>
    %cst_27 = arith.constant dense<0xFF800000> : vector<1x8xf32>
    %39 = vector.multi_reduction <maximumf>, %38, %cst_27 [2] : vector<1x8x8xf32> to vector<1x8xf32>
    %40 = vector.shape_cast %39 : vector<1x8xf32> to vector<1x8x1xf32>
    %41 = vector.broadcast %40 : vector<1x8x1xf32> to vector<1x8x8xf32>
    %42 = arith.subf %38, %41 : vector<1x8x8xf32>
    %43 = math.exp %42 : vector<1x8x8xf32>
    %cst_28 = arith.constant dense<0.000000e+00> : vector<1x8xf32>
    %44 = vector.multi_reduction <add>, %43, %cst_28 [2] : vector<1x8x8xf32> to vector<1x8xf32>
    %45 = vector.shape_cast %44 : vector<1x8xf32> to vector<1x8x1xf32>
    %46 = tpu.reciprocal %45 {approx = true} : vector<1x8x1xf32> -> vector<1x8x1xf32>
    %47 = vector.broadcast %46 : vector<1x8x1xf32> to vector<1x8x8xf32>
    %48 = arith.mulf %43, %47 : vector<1x8x8xf32>
    %49 = arith.addf %5, %48 : vector<1x8x8xf32>
    %50 = arith.truncf %48 : vector<1x8x8xf32> to vector<1x8x8xbf16>
    "tpu.trace_start"() <{level = 10 : i32, message = "bqk,bkd->bqd"}> : () -> ()
    %cst_29 = arith.constant dense<0.000000e+00> : vector<1x8x16xf32>
    %51 = tpu.matmul %50, %35, %cst_29 {dimension_numbers = #tpu.dot_dimension_numbers<[2], [1], [1], [2], [0, 0, 0, 1, 1, 2], [0], [0]>} : vector<1x8x8xbf16>, vector<1x8x16xbf16>, vector<1x8x16xf32> -> vector<1x8x16xf32>
    "tpu.trace_stop"() : () -> ()
    %52 = vector.shape_cast %51 : vector<1x8x16xf32> to vector<8x16xf32>
    %53 = arith.truncf %52 : vector<8x16xf32> to vector<8x16xbf16>
    %c0_30 = arith.constant 0 : index
    %c0_31 = arith.constant 0 : index
    %c0_32 = arith.constant 0 : index
    %54 = vector.load %arg10[%c0_30, %c0_31, %c0_32] : memref<2x16x32xbf16, #tpu.memory_space<vmem>>, vector<1x16x32xbf16>
    %55 = vector.shape_cast %54 : vector<1x16x32xbf16> to vector<16x32xbf16>
    %cst_33 = arith.constant dense<0.000000e+00> : vector<8x32xf32>
    %56 = tpu.matmul %53, %55, %cst_33 {dimension_numbers = #tpu.dot_dimension_numbers<[1], [0], [0], [1], [0, 0, 1, 1], [], []>} : vector<8x16xbf16>, vector<16x32xbf16>, vector<8x32xf32> -> vector<8x32xf32>
    %57 = arith.addf %4, %56 : vector<8x32xf32>
    %58 = vector.extract_strided_slice %12 {offsets = [0, 16], sizes = [8, 16], strides = [1, 1]} : vector<8x32xf32> to vector<8x16xf32>
    %59 = vector.shape_cast %58 : vector<8x16xf32> to vector<1x8x16xf32>
    %60 = arith.truncf %59 : vector<1x8x16xf32> to vector<1x8x16xbf16>
    %61 = vector.extract_strided_slice %19 {offsets = [0, 16], sizes = [8, 16], strides = [1, 1]} : vector<8x32xf32> to vector<8x16xf32>
    %62 = vector.shape_cast %61 : vector<8x16xf32> to vector<1x8x16xf32>
    %63 = arith.truncf %62 : vector<1x8x16xf32> to vector<1x8x16xbf16>
    %64 = vector.extract_strided_slice %26 {offsets = [0, 16], sizes = [8, 16], strides = [1, 1]} : vector<8x32xf32> to vector<8x16xf32>
    %65 = vector.shape_cast %64 : vector<8x16xf32> to vector<1x8x16xf32>
    %66 = arith.truncf %65 : vector<1x8x16xf32> to vector<1x8x16xbf16>
    "tpu.trace_start"() <{level = 10 : i32, message = "bqd,bkd->bqk"}> : () -> ()
    %cst_34 = arith.constant dense<0.000000e+00> : vector<1x8x8xf32>
    %67 = tpu.matmul %60, %63, %cst_34 {dimension_numbers = #tpu.dot_dimension_numbers<[2], [2], [1], [1], [0, 0, 0, 1, 1, 1], [0], [0]>} : vector<1x8x16xbf16>, vector<1x8x16xbf16>, vector<1x8x8xf32> -> vector<1x8x8xf32>
    "tpu.trace_stop"() : () -> ()
    %68 = vector.shape_cast %3 : vector<8x8xf32> to vector<1x8x8xf32>
    %69 = arith.addf %67, %68 : vector<1x8x8xf32>
    %cst_35 = arith.constant dense<0xFF800000> : vector<1x8xf32>
    %70 = vector.multi_reduction <maximumf>, %69, %cst_35 [2] : vector<1x8x8xf32> to vector<1x8xf32>
    %71 = vector.shape_cast %70 : vector<1x8xf32> to vector<1x8x1xf32>
    %72 = vector.broadcast %71 : vector<1x8x1xf32> to vector<1x8x8xf32>
    %73 = arith.subf %69, %72 : vector<1x8x8xf32>
    %74 = math.exp %73 : vector<1x8x8xf32>
    %cst_36 = arith.constant dense<0.000000e+00> : vector<1x8xf32>
    %75 = vector.multi_reduction <add>, %74, %cst_36 [2] : vector<1x8x8xf32> to vector<1x8xf32>
    %76 = vector.shape_cast %75 : vector<1x8xf32> to vector<1x8x1xf32>
    %77 = tpu.reciprocal %76 {approx = true} : vector<1x8x1xf32> -> vector<1x8x1xf32>
    %78 = vector.broadcast %77 : vector<1x8x1xf32> to vector<1x8x8xf32>
    %79 = arith.mulf %74, %78 : vector<1x8x8xf32>
    %80 = arith.addf %49, %79 : vector<1x8x8xf32>
    %81 = arith.truncf %79 : vector<1x8x8xf32> to vector<1x8x8xbf16>
    "tpu.trace_start"() <{level = 10 : i32, message = "bqk,bkd->bqd"}> : () -> ()
    %cst_37 = arith.constant dense<0.000000e+00> : vector<1x8x16xf32>
    %82 = tpu.matmul %81, %66, %cst_37 {dimension_numbers = #tpu.dot_dimension_numbers<[2], [1], [1], [2], [0, 0, 0, 1, 1, 2], [0], [0]>} : vector<1x8x8xbf16>, vector<1x8x16xbf16>, vector<1x8x16xf32> -> vector<1x8x16xf32>
    "tpu.trace_stop"() : () -> ()
    %83 = vector.shape_cast %82 : vector<1x8x16xf32> to vector<8x16xf32>
    %84 = arith.truncf %83 : vector<8x16xf32> to vector<8x16xbf16>
    %c1 = arith.constant 1 : index
    %c0_38 = arith.constant 0 : index
    %c0_39 = arith.constant 0 : index
    %85 = vector.load %arg10[%c1, %c0_38, %c0_39] : memref<2x16x32xbf16, #tpu.memory_space<vmem>>, vector<1x16x32xbf16>
    %86 = vector.shape_cast %85 : vector<1x16x32xbf16> to vector<16x32xbf16>
    %cst_40 = arith.constant dense<0.000000e+00> : vector<8x32xf32>
    %87 = tpu.matmul %84, %86, %cst_40 {dimension_numbers = #tpu.dot_dimension_numbers<[1], [0], [0], [1], [0, 0, 1, 1], [], []>} : vector<8x16xbf16>, vector<16x32xbf16>, vector<8x32xf32> -> vector<8x32xf32>
    %88 = arith.addf %57, %87 : vector<8x32xf32>
    %c0_41 = arith.constant 0 : index
    %c0_42 = arith.constant 0 : index
    %89 = vector.load %arg11[%c0_41, %c0_42] : memref<1x32xf32, #tpu.memory_space<vmem>>, vector<1x32xf32>
    %90 = vector.broadcast %89 : vector<1x32xf32> to vector<8x32xf32>
    %91 = arith.addf %88, %90 : vector<8x32xf32>
    %92 = vector.shape_cast %91 : vector<8x32xf32> to vector<1x8x32xf32>
    %c0_43 = arith.constant 0 : index
    %c0_44 = arith.constant 0 : index
    %93 = vector.load %arg16[%c0_43, %c0_44] : memref<1x32xf32, #tpu.memory_space<vmem>>, vector<1x32xf32>
    %c0_45 = arith.constant 0 : index
    %c0_46 = arith.constant 0 : index
    %94 = vector.load %arg17[%c0_45, %c0_46] : memref<1x32xf32, #tpu.memory_space<vmem>>, vector<1x32xf32>
    %c0_47 = arith.constant 0 : index
    %c0_48 = arith.constant 0 : index
    %c0_49 = arith.constant 0 : index
    %95 = vector.load %arg2[%c0_47, %c0_48, %c0_49] : memref<1x8x32xf32, #tpu.memory_space<vmem>>, vector<1x8x32xf32>
    %96 = arith.addf %92, %95 : vector<1x8x32xf32>
    %cst_50 = arith.constant dense<0.000000e+00> : vector<1x8xf32>
    %97 = vector.multi_reduction <add>, %96, %cst_50 [2] : vector<1x8x32xf32> to vector<1x8xf32>
    %98 = vector.shape_cast %97 : vector<1x8xf32> to vector<1x8x1xf32>
    %cst_51 = arith.constant 3.200000e+01 : f32
    %99 = vector.broadcast %cst_51 : f32 to vector<1x8x1xf32>
    %100 = arith.divf %98, %99 : vector<1x8x1xf32>
    %101 = vector.broadcast %100 : vector<1x8x1xf32> to vector<1x8x32xf32>
    %102 = arith.subf %96, %101 : vector<1x8x32xf32>
    %103 = arith.mulf %102, %102 : vector<1x8x32xf32>
    %cst_52 = arith.constant dense<0.000000e+00> : vector<1x8xf32>
    %104 = vector.multi_reduction <add>, %103, %cst_52 [2] : vector<1x8x32xf32> to vector<1x8xf32>
    %105 = vector.shape_cast %104 : vector<1x8xf32> to vector<1x8x1xf32>
    %cst_53 = arith.constant 3.200000e+01 : f32
    %106 = vector.broadcast %cst_53 : f32 to vector<1x8x1xf32>
    %107 = arith.divf %105, %106 : vector<1x8x1xf32>
    %108 = vector.broadcast %100 : vector<1x8x1xf32> to vector<1x8x32xf32>
    %109 = arith.subf %96, %108 : vector<1x8x32xf32>
    %cst_54 = arith.constant 9.99999974E-6 : f32
    %110 = vector.broadcast %cst_54 : f32 to vector<1x8x1xf32>
    %111 = arith.addf %107, %110 : vector<1x8x1xf32>
    %112 = math.rsqrt %111 : vector<1x8x1xf32>
    %113 = vector.broadcast %112 : vector<1x8x1xf32> to vector<1x8x32xf32>
    %114 = arith.mulf %109, %113 : vector<1x8x32xf32>
    %115 = vector.shape_cast %93 : vector<1x32xf32> to vector<1x1x32xf32>
    %116 = vector.broadcast %115 : vector<1x1x32xf32> to vector<1x8x32xf32>
    %117 = arith.mulf %114, %116 : vector<1x8x32xf32>
    %118 = vector.shape_cast %94 : vector<1x32xf32> to vector<1x1x32xf32>
    %119 = vector.broadcast %118 : vector<1x1x32xf32> to vector<1x8x32xf32>
    %120 = arith.addf %117, %119 : vector<1x8x32xf32>
    %121 = vector.shape_cast %120 : vector<1x8x32xf32> to vector<8x32xf32>
    %122 = arith.truncf %121 : vector<8x32xf32> to vector<8x32xbf16>
    %c0_55 = arith.constant 0 : index
    %c0_56 = arith.constant 0 : index
    %123 = vector.load %arg12[%c0_55, %c0_56] : memref<32x64xbf16, #tpu.memory_space<vmem>>, vector<32x64xbf16>
    %cst_57 = arith.constant dense<0.000000e+00> : vector<8x64xf32>
    %124 = tpu.matmul %122, %123, %cst_57 {dimension_numbers = #tpu.dot_dimension_numbers<[1], [0], [0], [1], [0, 0, 1, 1], [], []>} : vector<8x32xbf16>, vector<32x64xbf16>, vector<8x64xf32> -> vector<8x64xf32>
    %c0_58 = arith.constant 0 : index
    %c0_59 = arith.constant 0 : index
    %125 = vector.load %arg13[%c0_58, %c0_59] : memref<1x64xf32, #tpu.memory_space<vmem>>, vector<1x64xf32>
    %126 = vector.broadcast %125 : vector<1x64xf32> to vector<8x64xf32>
    %127 = arith.addf %124, %126 : vector<8x64xf32>
    %cst_60 = arith.constant 0.000000e+00 : f32
    %128 = vector.broadcast %cst_60 : f32 to vector<8x64xf32>
    %129 = arith.maximumf %127, %128 : vector<8x64xf32>
    %130 = arith.truncf %129 : vector<8x64xf32> to vector<8x64xbf16>
    %c0_61 = arith.constant 0 : index
    %c0_62 = arith.constant 0 : index
    %131 = vector.load %arg14[%c0_61, %c0_62] : memref<64x32xbf16, #tpu.memory_space<vmem>>, vector<64x32xbf16>
    %cst_63 = arith.constant dense<0.000000e+00> : vector<8x32xf32>
    %132 = tpu.matmul %130, %131, %cst_63 {dimension_numbers = #tpu.dot_dimension_numbers<[1], [0], [0], [1], [0, 0, 1, 1], [], []>} : vector<8x64xbf16>, vector<64x32xbf16>, vector<8x32xf32> -> vector<8x32xf32>
    %c0_64 = arith.constant 0 : index
    %c0_65 = arith.constant 0 : index
    %133 = vector.load %arg15[%c0_64, %c0_65] : memref<1x32xf32, #tpu.memory_space<vmem>>, vector<1x32xf32>
    %134 = vector.broadcast %133 : vector<1x32xf32> to vector<8x32xf32>
    %135 = arith.addf %132, %134 : vector<8x32xf32>
    %136 = vector.shape_cast %135 : vector<8x32xf32> to vector<1x8x32xf32>
    %c0_66 = arith.constant 0 : index
    %c0_67 = arith.constant 0 : index
    %c0_68 = arith.constant 0 : index
    %137 = vector.load %arg2[%c0_66, %c0_67, %c0_68] : memref<1x8x32xf32, #tpu.memory_space<vmem>>, vector<1x8x32xf32>
    %138 = arith.addf %136, %137 : vector<1x8x32xf32>
    %cst_69 = arith.constant dense<0.000000e+00> : vector<1x8xf32>
    %139 = vector.multi_reduction <add>, %138, %cst_69 [2] : vector<1x8x32xf32> to vector<1x8xf32>
    %140 = vector.shape_cast %139 : vector<1x8xf32> to vector<1x8x1xf32>
    %cst_70 = arith.constant 3.200000e+01 : f32
    %141 = vector.broadcast %cst_70 : f32 to vector<1x8x1xf32>
    %142 = arith.divf %140, %141 : vector<1x8x1xf32>
    %143 = vector.broadcast %142 : vector<1x8x1xf32> to vector<1x8x32xf32>
    %144 = arith.subf %138, %143 : vector<1x8x32xf32>
    %145 = arith.mulf %144, %144 : vector<1x8x32xf32>
    %cst_71 = arith.constant dense<0.000000e+00> : vector<1x8xf32>
    %146 = vector.multi_reduction <add>, %145, %cst_71 [2] : vector<1x8x32xf32> to vector<1x8xf32>
    %147 = vector.shape_cast %146 : vector<1x8xf32> to vector<1x8x1xf32>
    %cst_72 = arith.constant 3.200000e+01 : f32
    %148 = vector.broadcast %cst_72 : f32 to vector<1x8x1xf32>
    %149 = arith.divf %147, %148 : vector<1x8x1xf32>
    %150 = vector.broadcast %142 : vector<1x8x1xf32> to vector<1x8x32xf32>
    %151 = arith.subf %138, %150 : vector<1x8x32xf32>
    %cst_73 = arith.constant 9.99999974E-6 : f32
    %152 = vector.broadcast %cst_73 : f32 to vector<1x8x1xf32>
    %153 = arith.addf %149, %152 : vector<1x8x1xf32>
    %154 = math.rsqrt %153 : vector<1x8x1xf32>
    %155 = vector.broadcast %154 : vector<1x8x1xf32> to vector<1x8x32xf32>
    %156 = arith.mulf %151, %155 : vector<1x8x32xf32>
    %157 = vector.shape_cast %93 : vector<1x32xf32> to vector<1x1x32xf32>
    %158 = vector.broadcast %157 : vector<1x1x32xf32> to vector<1x8x32xf32>
    %159 = arith.mulf %156, %158 : vector<1x8x32xf32>
    %160 = vector.shape_cast %94 : vector<1x32xf32> to vector<1x1x32xf32>
    %161 = vector.broadcast %160 : vector<1x1x32xf32> to vector<1x8x32xf32>
    %162 = arith.addf %159, %161 : vector<1x8x32xf32>
    %c0_74 = arith.constant 0 : index
    %c0_75 = arith.constant 0 : index
    %c0_76 = arith.constant 0 : index
    %163 = vector.load %arg18[%c0_74, %c0_75, %c0_76] : memref<1x8x32xf32, #tpu.memory_space<vmem>>, vector<1x8x32xf32>
    tpu.vector_store %arg18[%c0_74, %c0_75, %c0_76], %162 {strides = array<i32>} : memref<1x8x32xf32, #tpu.memory_space<vmem>>, vector<1x8x32xf32>,
    %cst_77 = arith.constant 5.000000e-01 : f32
    %164 = vector.broadcast %cst_77 : f32 to vector<1x8x8xf32>
    %165 = arith.mulf %80, %164 : vector<1x8x8xf32>
    %c0_78 = arith.constant 0 : index
    %c0_79 = arith.constant 0 : index
    %c0_80 = arith.constant 0 : index
    %166 = vector.load %arg19[%c0_78, %c0_79, %c0_80] : memref<1x8x8xf32, #tpu.memory_space<vmem>>, vector<1x8x8xf32>
    tpu.vector_store %arg19[%c0_78, %c0_79, %c0_80], %165 {strides = array<i32>} : memref<1x8x8xf32, #tpu.memory_space<vmem>>, vector<1x8x8xf32>,
    return
  }
  func.func @transform_0(%arg0: i32, %arg1: i32) -> (i32, i32, i32) {
    %c0_i32 = arith.constant 0 : i32
    %c0_i32_0 = arith.constant 0 : i32
    return %arg0, %arg1, %c0_i32 : i32, i32, i32
  }
  func.func @transform_1(%arg0: i32, %arg1: i32) -> (i32, i32) {
    %c0_i32 = arith.constant 0 : i32
    %c0_i32_0 = arith.constant 0 : i32
    return %arg1, %c0_i32 : i32, i32
  }
  func.func @transform_2(%arg0: i32, %arg1: i32) -> (i32, i32, i32) {
    %c0_i32 = arith.constant 0 : i32
    %c0_i32_0 = arith.constant 0 : i32
    %c0_i32_1 = arith.constant 0 : i32
    %c0_i32_2 = arith.constant 0 : i32
    return %c0_i32, %c0_i32_0, %c0_i32_1 : i32, i32, i32
  }
  func.func @transform_3(%arg0: i32, %arg1: i32) -> (i32, i32, i32) {
    %c0_i32 = arith.constant 0 : i32
    %c0_i32_0 = arith.constant 0 : i32
    %c0_i32_1 = arith.constant 0 : i32
    %c0_i32_2 = arith.constant 0 : i32
    return %c0_i32, %c0_i32_0, %c0_i32_1 : i32, i32, i32
  }
  func.func @transform_4(%arg0: i32, %arg1: i32) -> (i32, i32, i32) {
    %c0_i32 = arith.constant 0 : i32
    %c0_i32_0 = arith.constant 0 : i32
    %c0_i32_1 = arith.constant 0 : i32
    %c0_i32_2 = arith.constant 0 : i32
    return %c0_i32, %c0_i32_0, %c0_i32_1 : i32, i32, i32
  }
  func.func @transform_5(%arg0: i32, %arg1: i32) -> (i32, i32, i32) {
    %c0_i32 = arith.constant 0 : i32
    %c0_i32_0 = arith.constant 0 : i32
    %c0_i32_1 = arith.constant 0 : i32
    %c0_i32_2 = arith.constant 0 : i32
    return %c0_i32, %c0_i32_0, %c0_i32_1 : i32, i32, i32
  }
  func.func @transform_6(%arg0: i32, %arg1: i32) -> (i32, i32, i32) {
    %c0_i32 = arith.constant 0 : i32
    %c0_i32_0 = arith.constant 0 : i32
    %c0_i32_1 = arith.constant 0 : i32
    %c0_i32_2 = arith.constant 0 : i32
    return %c0_i32, %c0_i32_0, %c0_i32_1 : i32, i32, i32
  }
  func.func @transform_7(%arg0: i32, %arg1: i32) -> (i32, i32, i32) {
    %c0_i32 = arith.constant 0 : i32
    %c0_i32_0 = arith.constant 0 : i32
    %c0_i32_1 = arith.constant 0 : i32
    %c0_i32_2 = arith.constant 0 : i32
    return %c0_i32, %c0_i32_0, %c0_i32_1 : i32, i32, i32
  }
  func.func @transform_8(%arg0: i32, %arg1: i32) -> (i32, i32, i32) {
    %c0_i32 = arith.constant 0 : i32
    %c0_i32_0 = arith.constant 0 : i32
    %c0_i32_1 = arith.constant 0 : i32
    %c0_i32_2 = arith.constant 0 : i32
    return %c0_i32, %c0_i32_0, %c0_i32_1 : i32, i32, i32
  }
  func.func @transform_9(%arg0: i32, %arg1: i32) -> (i32, i32) {
    %c0_i32 = arith.constant 0 : i32
    %c0_i32_0 = arith.constant 0 : i32
    %c0_i32_1 = arith.constant 0 : i32
    return %c0_i32, %c0_i32_0 : i32, i32
  }
  func.func @transform_10(%arg0: i32, %arg1: i32) -> (i32, i32) {
    %c0_i32 = arith.constant 0 : i32
    %c0_i32_0 = arith.constant 0 : i32
    %c0_i32_1 = arith.constant 0 : i32
    return %c0_i32, %c0_i32_0 : i32, i32
  }
  func.func @transform_11(%arg0: i32, %arg1: i32) -> (i32, i32) {
    %c0_i32 = arith.constant 0 : i32
    %c0_i32_0 = arith.constant 0 : i32
    %c0_i32_1 = arith.constant 0 : i32
    return %c0_i32, %c0_i32_0 : i32, i32
  }
  func.func @transform_12(%arg0: i32, %arg1: i32) -> (i32, i32) {
    %c0_i32 = arith.constant 0 : i32
    %c0_i32_0 = arith.constant 0 : i32
    %c0_i32_1 = arith.constant 0 : i32
    return %c0_i32, %c0_i32_0 : i32, i32
  }
  func.func @transform_13(%arg0: i32, %arg1: i32) -> (i32, i32) {
    %c0_i32 = arith.constant 0 : i32
    %c0_i32_0 = arith.constant 0 : i32
    %c0_i32_1 = arith.constant 0 : i32
    return %c0_i32, %c0_i32_0 : i32, i32
  }
  func.func @transform_14(%arg0: i32, %arg1: i32) -> (i32, i32) {
    %c0_i32 = arith.constant 0 : i32
    %c0_i32_0 = arith.constant 0 : i32
    %c0_i32_1 = arith.constant 0 : i32
    return %c0_i32, %c0_i32_0 : i32, i32
  }
  func.func @transform_15(%arg0: i32, %arg1: i32) -> (i32, i32) {
    %c0_i32 = arith.constant 0 : i32
    %c0_i32_0 = arith.constant 0 : i32
    %c0_i32_1 = arith.constant 0 : i32
    return %c0_i32, %c0_i32_0 : i32, i32
  }
  func.func @transform_16(%arg0: i32, %arg1: i32) -> (i32, i32, i32) {
    %c0_i32 = arith.constant 0 : i32
    %c0_i32_0 = arith.constant 0 : i32
    return %arg0, %arg1, %c0_i32 : i32, i32, i32
  }
  func.func @transform_17(%arg0: i32, %arg1: i32) -> (i32, i32, i32) {
    %c0_i32 = arith.constant 0 : i32
    %c0_i32_0 = arith.constant 0 : i32
    return %arg0, %arg1, %c0_i32 : i32, i32, i32
  }
}

module attributes {stable_mosaic.version = 11 : i64} {
  func.func @_block_kernel(%arg0: i32, %arg1: i32, %arg2: memref<1x8x32xf32, #tpu.memory_space<vmem>>, %arg3: memref<8x8xf32, #tpu.memory_space<vmem>>, %arg4: memref<1x32x32xbf16, #tpu.memory_space<vmem>>, %arg5: memref<1x1x32xf32, #tpu.memory_space<vmem>>, %arg6: memref<1x32x32xbf16, #tpu.memory_space<vmem>>, %arg7: memref<1x1x32xf32, #tpu.memory_space<vmem>>, %arg8: memref<1x32x32xbf16, #tpu.memory_space<vmem>>, %arg9: memref<1x1x32xf32, #tpu.memory_space<vmem>>, %arg10: memref<2x16x32xbf16, #tpu.memory_space<vmem>>, %arg11: memref<1x32xf32, #tpu.memory_space<vmem>>, %arg12: memref<32x64xbf16, #tpu.memory_space<vmem>>, %arg13: memref<1x64xf32, #tpu.memory_space<vmem>>, %arg14: memref<64x32xbf16, #tpu.memory_space<vmem>>, %arg15: memref<1x32xf32, #tpu.memory_space<vmem>>, %arg16: memref<1x32xf32, #tpu.memory_space<vmem>>, %arg17: memref<1x32xf32, #tpu.memory_space<vmem>>, %arg18: memref<1x8x32xf32, #tpu.memory_space<vmem>>, %arg19: memref<1x8x8xf32, #tpu.memory_space<vmem>>) attributes {dimension_semantics = [#tpu.dimension_semantics<parallel>, #tpu.dimension_semantics<parallel>], iteration_bounds = array<i64: 2, 1>, scalar_prefetch = 0 : i64, scratch_operands = 0 : i64, tpu.core_type = #tpu.core_type<tc>, window_params = [{transform_indices = @transform_0, window_bounds = array<i64: 1, 8, 32>}, {transform_indices = @transform_1, window_bounds = array<i64: 8, 8>}, {pipeline_mode = #tpu.pipeline_mode<synchronous>, transform_indices = @transform_2, window_bounds = array<i64: 1, 32, 32>}, {pipeline_mode = #tpu.pipeline_mode<synchronous>, transform_indices = @transform_3, window_bounds = array<i64: 1, 1, 32>}, {pipeline_mode = #tpu.pipeline_mode<synchronous>, transform_indices = @transform_4, window_bounds = array<i64: 1, 32, 32>}, {pipeline_mode = #tpu.pipeline_mode<synchronous>, transform_indices = @transform_5, window_bounds = array<i64: 1, 1, 32>}, {pipeline_mode = #tpu.pipeline_mode<synchronous>, transform_indices = @transform_6, window_bounds = array<i64: 1, 32, 32>}, {pipeline_mode = #tpu.pipeline_mode<synchronous>, transform_indices = @transform_7, window_bounds = array<i64: 1, 1, 32>}, {pipeline_mode = #tpu.pipeline_mode<synchronous>, transform_indices = @transform_8, window_bounds = array<i64: 2, 16, 32>}, {pipeline_mode = #tpu.pipeline_mode<synchronous>, transform_indices = @transform_9, window_bounds = array<i64: 1, 32>}, {pipeline_mode = #tpu.pipeline_mode<synchronous>, transform_indices = @transform_10, window_bounds = array<i64: 32, 64>}, {pipeline_mode = #tpu.pipeline_mode<synchronous>, transform_indices = @transform_11, window_bounds = array<i64: 1, 64>}, {pipeline_mode = #tpu.pipeline_mode<synchronous>, transform_indices = @transform_12, window_bounds = array<i64: 64, 32>}, {pipeline_mode = #tpu.pipeline_mode<synchronous>, transform_indices = @transform_13, window_bounds = array<i64: 1, 32>}, {pipeline_mode = #tpu.pipeline_mode<synchronous>, transform_indices = @transform_14, window_bounds = array<i64: 1, 32>}, {pipeline_mode = #tpu.pipeline_mode<synchronous>, transform_indices = @transform_15, window_bounds = array<i64: 1, 32>}, {transform_indices = @transform_16, window_bounds = array<i64: 1, 8, 32>}, {transform_indices = @transform_17, window_bounds = array<i64: 1, 8, 8>}]} {
    %c0 = arith.constant 0 : index
    %c0_0 = arith.constant 0 : index
    %c0_1 = arith.constant 0 : index
    %0 = vector.load %arg2[%c0, %c0_0, %c0_1] : memref<1x8x32xf32, #tpu.memory_space<vmem>>, vector<1x8x32xf32>
    %1 = vector.shape_cast %0 : vector<1x8x32xf32> to vector<8x32xf32>
    %2 = arith.truncf %1 : vector<8x32xf32> to vector<8x32xbf16>
    %c0_2 = arith.constant 0 : index
    %c0_3 = arith.constant 0 : index
    %3 = vector.load %arg3[%c0_2, %c0_3] : memref<8x8xf32, #tpu.memory_space<vmem>>, vector<8x8xf32>
    %cst = arith.constant 0.000000e+00 : f32
    %4 = vector.broadcast %cst : f32 to vector<8x32xf32>
    %cst_4 = arith.constant 0.000000e+00 : f32
    %5 = vector.broadcast %cst_4 : f32 to vector<1x8x8xf32>
    %c0_5 = arith.constant 0 : index
    %c0_6 = arith.constant 0 : index
    %c0_7 = arith.constant 0 : index
    %6 = vector.load %arg4[%c0_5, %c0_6, %c0_7] : memref<1x32x32xbf16, #tpu.memory_space<vmem>>, vector<1x32x32xbf16>
    %7 = vector.shape_cast %6 : vector<1x32x32xbf16> to vector<32x32xbf16>
    %cst_8 = arith.constant dense<0.000000e+00> : vector<8x32xf32>
    %8 = tpu.matmul %2, %7, %cst_8 {dimension_numbers = #tpu.dot_dimension_numbers<[1], [0], [0], [1], [0, 0, 1, 1], [], []>} : vector<8x32xbf16>, vector<32x32xbf16>, vector<8x32xf32> -> vector<8x32xf32>
    %c0_9 = arith.constant 0 : index
    %c0_10 = arith.constant 0 : index
    %c0_11 = arith.constant 0 : index
    %9 = vector.load %arg5[%c0_9, %c0_10, %c0_11] : memref<1x1x32xf32, #tpu.memory_space<vmem>>, vector<1x1x32xf32>
    %10 = vector.shape_cast %9 : vector<1x1x32xf32> to vector<1x32xf32>
    %11 = vector.broadcast %10 : vector<1x32xf32> to vector<8x32xf32>
    %12 = arith.addf %8, %11 : vector<8x32xf32>
    %c0_12 = arith.constant 0 : index
    %c0_13 = arith.constant 0 : index
    %c0_14 = arith.constant 0 : index
    %13 = vector.load %arg6[%c0_12, %c0_13, %c0_14] : memref<1x32x32xbf16, #tpu.memory_space<vmem>>, vector<1x32x32xbf16>
    %14 = vector.shape_cast %13 : vector<1x32x32xbf16> to vector<32x32xbf16>
    %cst_15 = arith.constant dense<0.000000e+00> : vector<8x32xf32>
    %15 = tpu.matmul %2, %14, %cst_15 {dimension_numbers = #tpu.dot_dimension_numbers<[1], [0], [0], [1], [0, 0, 1, 1], [], []>} : vector<8x32xbf16>, vector<32x32xbf16>, vector<8x32xf32> -> vector<8x32xf32>
    %c0_16 = arith.constant 0 : index
    %c0_17 = arith.constant 0 : index
    %c0_18 = arith.constant 0 : index
    %16 = vector.load %arg7[%c0_16, %c0_17, %c0_18] : memref<1x1x32xf32, #tpu.memory_space<vmem>>, vector<1x1x32xf32>
    %17 = vector.shape_cast %16 : vector<1x1x32xf32> to vector<1x32xf32>
    %18 = vector.broadcast %17 : vector<1x32xf32> to vector<8x32xf32>
    %19 = arith.addf %15, %18 : vector<8x32xf32>
    %c0_19 = arith.constant 0 : index
    %c0_20 = arith.constant 0 : index
    %c0_21 = arith.constant 0 : index
    %20 = vector.load %arg8[%c0_19, %c0_20, %c0_21] : memref<1x32x32xbf16, #tpu.memory_space<vmem>>, vector<1x32x32xbf16>
    %21 = vector.shape_cast %20 : vector<1x32x32xbf16> to vector<32x32xbf16>
    %cst_22 = arith.constant dense<0.000000e+00> : vector<8x32xf32>
    %22 = tpu.matmul %2, %21, %cst_22 {dimension_numbers = #tpu.dot_dimension_numbers<[1], [0], [0], [1], [0, 0, 1, 1], [], []>} : vector<8x32xbf16>, vector<32x32xbf16>, vector<8x32xf32> -> vector<8x32xf32>
    %c0_23 = arith.constant 0 : index
    %c0_24 = arith.constant 0 : index
    %c0_25 = arith.constant 0 : index
    %23 = vector.load %arg9[%c0_23, %c0_24, %c0_25] : memref<1x1x32xf32, #tpu.memory_space<vmem>>, vector<1x1x32xf32>
    %24 = vector.shape_cast %23 : vector<1x1x32xf32> to vector<1x32xf32>
    %25 = vector.broadcast %24 : vector<1x32xf32> to vector<8x32xf32>
    %26 = arith.addf %22, %25 : vector<8x32xf32>
    %27 = vector.extract_strided_slice %12 {offsets = [0, 0], sizes = [8, 16], strides = [1, 1]} : vector<8x32xf32> to vector<8x16xf32>
    %28 = vector.shape_cast %27 : vector<8x16xf32> to vector<1x8x16xf32>
    %29 = arith.truncf %28 : vector<1x8x16xf32> to vector<1x8x16xbf16>
    %30 = vector.extract_strided_slice %19 {offsets = [0, 0], sizes = [8, 16], strides = [1, 1]} : vector<8x32xf32> to vector<8x16xf32>
    %31 = vector.shape_cast %30 : vector<8x16xf32> to vector<1x8x16xf32>
    %32 = arith.truncf %31 : vector<1x8x16xf32> to vector<1x8x16xbf16>
    %33 = vector.extract_strided_slice %26 {offsets = [0, 0], sizes = [8, 16], strides = [1, 1]} : vector<8x32xf32> to vector<8x16xf32>
    %34 = vector.shape_cast %33 : vector<8x16xf32> to vector<1x8x16xf32>
    %35 = arith.truncf %34 : vector<1x8x16xf32> to vector<1x8x16xbf16>
    "tpu.trace_start"() <{level = 10 : i32, message = "bqd,bkd->bqk"}> : () -> ()
    %cst_26 = arith.constant dense<0.000000e+00> : vector<1x8x8xf32>
    %36 = tpu.matmul %29, %32, %cst_26 {dimension_numbers = #tpu.dot_dimension_numbers<[2], [2], [1], [1], [0, 0, 0, 1, 1, 1], [0], [0]>} : vector<1x8x16xbf16>, vector<1x8x16xbf16>, vector<1x8x8xf32> -> vector<1x8x8xf32>
    "tpu.trace_stop"() : () -> ()
    %37 = vector.shape_cast %3 : vector<8x8xf32> to vector<1x8x8xf32>
    %38 = arith.addf %36, %37 : vector<1x8x8xf32>
    %cst_27 = arith.constant dense<0xFF800000> : vector<1x8xf32>
    %39 = vector.multi_reduction <maximumf>, %38, %cst_27 [2] : vector<1x8x8xf32> to vector<1x8xf32>
    %40 = vector.shape_cast %39 : vector<1x8xf32> to vector<1x8x1xf32>
    %41 = vector.broadcast %40 : vector<1x8x1xf32> to vector<1x8x8xf32>
    %42 = arith.subf %38, %41 : vector<1x8x8xf32>
    %43 = math.exp %42 : vector<1x8x8xf32>
    %cst_28 = arith.constant dense<0.000000e+00> : vector<1x8xf32>
    %44 = vector.multi_reduction <add>, %43, %cst_28 [2] : vector<1x8x8xf32> to vector<1x8xf32>
    %45 = vector.shape_cast %44 : vector<1x8xf32> to vector<1x8x1xf32>
    %46 = tpu.reciprocal %45 {approx = true} : vector<1x8x1xf32> -> vector<1x8x1xf32>
    %47 = vector.broadcast %46 : vector<1x8x1xf32> to vector<1x8x8xf32>
    %48 = arith.mulf %43, %47 : vector<1x8x8xf32>
    %49 = arith.addf %5, %48 : vector<1x8x8xf32>
    %50 = arith.truncf %48 : vector<1x8x8xf32> to vector<1x8x8xbf16>
    "tpu.trace_start"() <{level = 10 : i32, message = "bqk,bkd->bqd"}> : () -> ()
    %cst_29 = arith.constant dense<0.000000e+00> : vector<1x8x16xf32>
    %51 = tpu.matmul %50, %35, %cst_29 {dimension_numbers = #tpu.dot_dimension_numbers<[2], [1], [1], [2], [0, 0, 0, 1, 1, 2], [0], [0]>} : vector<1x8x8xbf16>, vector<1x8x16xbf16>, vector<1x8x16xf32> -> vector<1x8x16xf32>
    "tpu.trace_stop"() : () -> ()
    %52 = vector.shape_cast %51 : vector<1x8x16xf32> to vector<8x16xf32>
    %53 = arith.truncf %52 : vector<8x16xf32> to vector<8x16xbf16>
    %c0_30 = arith.constant 0 : index
    %c0_31 = arith.constant 0 : index
    %c0_32 = arith.constant 0 : index
    %54 = vector.load %arg10[%c0_30, %c0_31, %c0_32] : memref<2x16x32xbf16, #tpu.memory_space<vmem>>, vector<1x16x32xbf16>
    %55 = vector.shape_cast %54 : vector<1x16x32xbf16> to vector<16x32xbf16>
    %cst_33 = arith.constant dense<0.000000e+00> : vector<8x32xf32>
    %56 = tpu.matmul %53, %55, %cst_33 {dimension_numbers = #tpu.dot_dimension_numbers<[1], [0], [0], [1], [0, 0, 1, 1], [], []>} : vector<8x16xbf16>, vector<16x32xbf16>, vector<8x32xf32> -> vector<8x32xf32>
    %57 = arith.addf %4, %56 : vector<8x32xf32>
    %58 = vector.extract_strided_slice %12 {offsets = [0, 16], sizes = [8, 16], strides = [1, 1]} : vector<8x32xf32> to vector<8x16xf32>
    %59 = vector.shape_cast %58 : vector<8x16xf32> to vector<1x8x16xf32>
    %60 = arith.truncf %59 : vector<1x8x16xf32> to vector<1x8x16xbf16>
    %61 = vector.extract_strided_slice %19 {offsets = [0, 16], sizes = [8, 16], strides = [1, 1]} : vector<8x32xf32> to vector<8x16xf32>
    %62 = vector.shape_cast %61 : vector<8x16xf32> to vector<1x8x16xf32>
    %63 = arith.truncf %62 : vector<1x8x16xf32> to vector<1x8x16xbf16>
    %64 = vector.extract_strided_slice %26 {offsets = [0, 16], sizes = [8, 16], strides = [1, 1]} : vector<8x32xf32> to vector<8x16xf32>
    %65 = vector.shape_cast %64 : vector<8x16xf32> to vector<1x8x16xf32>
    %66 = arith.truncf %65 : vector<1x8x16xf32> to vector<1x8x16xbf16>
    "tpu.trace_start"() <{level = 10 : i32, message = "bqd,bkd->bqk"}> : () -> ()
    %cst_34 = arith.constant dense<0.000000e+00> : vector<1x8x8xf32>
    %67 = tpu.matmul %60, %63, %cst_34 {dimension_numbers = #tpu.dot_dimension_numbers<[2], [2], [1], [1], [0, 0, 0, 1, 1, 1], [0], [0]>} : vector<1x8x16xbf16>, vector<1x8x16xbf16>, vector<1x8x8xf32> -> vector<1x8x8xf32>
    "tpu.trace_stop"() : () -> ()
    %68 = vector.shape_cast %3 : vector<8x8xf32> to vector<1x8x8xf32>
    %69 = arith.addf %67, %68 : vector<1x8x8xf32>
    %cst_35 = arith.constant dense<0xFF800000> : vector<1x8xf32>
    %70 = vector.multi_reduction <maximumf>, %69, %cst_35 [2] : vector<1x8x8xf32> to vector<1x8xf32>
    %71 = vector.shape_cast %70 : vector<1x8xf32> to vector<1x8x1xf32>
    %72 = vector.broadcast %71 : vector<1x8x1xf32> to vector<1x8x8xf32>
    %73 = arith.subf %69, %72 : vector<1x8x8xf32>
    %74 = math.exp %73 : vector<1x8x8xf32>
    %cst_36 = arith.constant dense<0.000000e+00> : vector<1x8xf32>
    %75 = vector.multi_reduction <add>, %74, %cst_36 [2] : vector<1x8x8xf32> to vector<1x8xf32>
    %76 = vector.shape_cast %75 : vector<1x8xf32> to vector<1x8x1xf32>
    %77 = tpu.reciprocal %76 {approx = true} : vector<1x8x1xf32> -> vector<1x8x1xf32>
    %78 = vector.broadcast %77 : vector<1x8x1xf32> to vector<1x8x8xf32>
    %79 = arith.mulf %74, %78 : vector<1x8x8xf32>
    %80 = arith.addf %49, %79 : vector<1x8x8xf32>
    %81 = arith.truncf %79 : vector<1x8x8xf32> to vector<1x8x8xbf16>
    "tpu.trace_start"() <{level = 10 : i32, message = "bqk,bkd->bqd"}> : () -> ()
    %cst_37 = arith.constant dense<0.000000e+00> : vector<1x8x16xf32>
    %82 = tpu.matmul %81, %66, %cst_37 {dimension_numbers = #tpu.dot_dimension_numbers<[2], [1], [1], [2], [0, 0, 0, 1, 1, 2], [0], [0]>} : vector<1x8x8xbf16>, vector<1x8x16xbf16>, vector<1x8x16xf32> -> vector<1x8x16xf32>
    "tpu.trace_stop"() : () -> ()
    %83 = vector.shape_cast %82 : vector<1x8x16xf32> to vector<8x16xf32>
    %84 = arith.truncf %83 : vector<8x16xf32> to vector<8x16xbf16>
    %c1 = arith.constant 1 : index
    %c0_38 = arith.constant 0 : index
    %c0_39 = arith.constant 0 : index
    %85 = vector.load %arg10[%c1, %c0_38, %c0_39] : memref<2x16x32xbf16, #tpu.memory_space<vmem>>, vector<1x16x32xbf16>
    %86 = vector.shape_cast %85 : vector<1x16x32xbf16> to vector<16x32xbf16>
    %cst_40 = arith.constant dense<0.000000e+00> : vector<8x32xf32>
    %87 = tpu.matmul %84, %86, %cst_40 {dimension_numbers = #tpu.dot_dimension_numbers<[1], [0], [0], [1], [0, 0, 1, 1], [], []>} : vector<8x16xbf16>, vector<16x32xbf16>, vector<8x32xf32> -> vector<8x32xf32>
    %88 = arith.addf %57, %87 : vector<8x32xf32>
    %c0_41 = arith.constant 0 : index
    %c0_42 = arith.constant 0 : index
    %89 = vector.load %arg11[%c0_41, %c0_42] : memref<1x32xf32, #tpu.memory_space<vmem>>, vector<1x32xf32>
    %90 = vector.broadcast %89 : vector<1x32xf32> to vector<8x32xf32>
    %91 = arith.addf %88, %90 : vector<8x32xf32>
    %92 = vector.shape_cast %91 : vector<8x32xf32> to vector<1x8x32xf32>
    %c0_43 = arith.constant 0 : index
    %c0_44 = arith.constant 0 : index
    %93 = vector.load %arg16[%c0_43, %c0_44] : memref<1x32xf32, #tpu.memory_space<vmem>>, vector<1x32xf32>
    %c0_45 = arith.constant 0 : index
    %c0_46 = arith.constant 0 : index
    %94 = vector.load %arg17[%c0_45, %c0_46] : memref<1x32xf32, #tpu.memory_space<vmem>>, vector<1x32xf32>
    %c0_47 = arith.constant 0 : index
    %c0_48 = arith.constant 0 : index
    %c0_49 = arith.constant 0 : index
    %95 = vector.load %arg2[%c0_47, %c0_48, %c0_49] : memref<1x8x32xf32, #tpu.memory_space<vmem>>, vector<1x8x32xf32>
    %96 = arith.addf %92, %95 : vector<1x8x32xf32>
    %cst_50 = arith.constant dense<0.000000e+00> : vector<1x8xf32>
    %97 = vector.multi_reduction <add>, %96, %cst_50 [2] : vector<1x8x32xf32> to vector<1x8xf32>
    %98 = vector.shape_cast %97 : vector<1x8xf32> to vector<1x8x1xf32>
    %cst_51 = arith.constant 3.200000e+01 : f32
    %99 = vector.broadcast %cst_51 : f32 to vector<1x8x1xf32>
    %100 = arith.divf %98, %99 : vector<1x8x1xf32>
    %101 = vector.broadcast %100 : vector<1x8x1xf32> to vector<1x8x32xf32>
    %102 = arith.subf %96, %101 : vector<1x8x32xf32>
    %103 = arith.mulf %102, %102 : vector<1x8x32xf32>
    %cst_52 = arith.constant dense<0.000000e+00> : vector<1x8xf32>
    %104 = vector.multi_reduction <add>, %103, %cst_52 [2] : vector<1x8x32xf32> to vector<1x8xf32>
    %105 = vector.shape_cast %104 : vector<1x8xf32> to vector<1x8x1xf32>
    %cst_53 = arith.constant 3.200000e+01 : f32
    %106 = vector.broadcast %cst_53 : f32 to vector<1x8x1xf32>
    %107 = arith.divf %105, %106 : vector<1x8x1xf32>
    %108 = vector.broadcast %100 : vector<1x8x1xf32> to vector<1x8x32xf32>
    %109 = arith.subf %96, %108 : vector<1x8x32xf32>
    %cst_54 = arith.constant 9.99999974E-6 : f32
    %110 = vector.broadcast %cst_54 : f32 to vector<1x8x1xf32>
    %111 = arith.addf %107, %110 : vector<1x8x1xf32>
    %112 = math.rsqrt %111 : vector<1x8x1xf32>
    %113 = vector.broadcast %112 : vector<1x8x1xf32> to vector<1x8x32xf32>
    %114 = arith.mulf %109, %113 : vector<1x8x32xf32>
    %115 = vector.shape_cast %93 : vector<1x32xf32> to vector<1x1x32xf32>
    %116 = vector.broadcast %115 : vector<1x1x32xf32> to vector<1x8x32xf32>
    %117 = arith.mulf %114, %116 : vector<1x8x32xf32>
    %118 = vector.shape_cast %94 : vector<1x32xf32> to vector<1x1x32xf32>
    %119 = vector.broadcast %118 : vector<1x1x32xf32> to vector<1x8x32xf32>
    %120 = arith.addf %117, %119 : vector<1x8x32xf32>
    %121 = vector.shape_cast %120 : vector<1x8x32xf32> to vector<8x32xf32>
    %122 = arith.truncf %121 : vector<8x32xf32> to vector<8x32xbf16>
    %c0_55 = arith.constant 0 : index
    %c0_56 = arith.constant 0 : index
    %123 = vector.load %arg12[%c0_55, %c0_56] : memref<32x64xbf16, #tpu.memory_space<vmem>>, vector<32x64xbf16>
    %cst_57 = arith.constant dense<0.000000e+00> : vector<8x64xf32>
    %124 = tpu.matmul %122, %123, %cst_57 {dimension_numbers = #tpu.dot_dimension_numbers<[1], [0], [0], [1], [0, 0, 1, 1], [], []>} : vector<8x32xbf16>, vector<32x64xbf16>, vector<8x64xf32> -> vector<8x64xf32>
    %c0_58 = arith.constant 0 : index
    %c0_59 = arith.constant 0 : index
    %125 = vector.load %arg13[%c0_58, %c0_59] : memref<1x64xf32, #tpu.memory_space<vmem>>, vector<1x64xf32>
    %126 = vector.broadcast %125 : vector<1x64xf32> to vector<8x64xf32>
    %127 = arith.addf %124, %126 : vector<8x64xf32>
    %cst_60 = arith.constant 0.000000e+00 : f32
    %128 = vector.broadcast %cst_60 : f32 to vector<8x64xf32>
    %129 = arith.maximumf %127, %128 : vector<8x64xf32>
    %130 = arith.truncf %129 : vector<8x64xf32> to vector<8x64xbf16>
    %c0_61 = arith.constant 0 : index
    %c0_62 = arith.constant 0 : index
    %131 = vector.load %arg14[%c0_61, %c0_62] : memref<64x32xbf16, #tpu.memory_space<vmem>>, vector<64x32xbf16>
    %cst_63 = arith.constant dense<0.000000e+00> : vector<8x32xf32>
    %132 = tpu.matmul %130, %131, %cst_63 {dimension_numbers = #tpu.dot_dimension_numbers<[1], [0], [0], [1], [0, 0, 1, 1], [], []>} : vector<8x64xbf16>, vector<64x32xbf16>, vector<8x32xf32> -> vector<8x32xf32>
    %c0_64 = arith.constant 0 : index
    %c0_65 = arith.constant 0 : index
    %133 = vector.load %arg15[%c0_64, %c0_65] : memref<1x32xf32, #tpu.memory_space<vmem>>, vector<1x32xf32>
    %134 = vector.broadcast %133 : vector<1x32xf32> to vector<8x32xf32>
    %135 = arith.addf %132, %134 : vector<8x32xf32>
    %136 = vector.shape_cast %135 : vector<8x32xf32> to vector<1x8x32xf32>
    %c0_66 = arith.constant 0 : index
    %c0_67 = arith.constant 0 : index
    %c0_68 = arith.constant 0 : index
    %137 = vector.load %arg2[%c0_66, %c0_67, %c0_68] : memref<1x8x32xf32, #tpu.memory_space<vmem>>, vector<1x8x32xf32>
    %138 = arith.addf %136, %137 : vector<1x8x32xf32>
    %cst_69 = arith.constant dense<0.000000e+00> : vector<1x8xf32>
    %139 = vector.multi_reduction <add>, %138, %cst_69 [2] : vector<1x8x32xf32> to vector<1x8xf32>
    %140 = vector.shape_cast %139 : vector<1x8xf32> to vector<1x8x1xf32>
    %cst_70 = arith.constant 3.200000e+01 : f32
    %141 = vector.broadcast %cst_70 : f32 to vector<1x8x1xf32>
    %142 = arith.divf %140, %141 : vector<1x8x1xf32>
    %143 = vector.broadcast %142 : vector<1x8x1xf32> to vector<1x8x32xf32>
    %144 = arith.subf %138, %143 : vector<1x8x32xf32>
    %145 = arith.mulf %144, %144 : vector<1x8x32xf32>
    %cst_71 = arith.constant dense<0.000000e+00> : vector<1x8xf32>
    %146 = vector.multi_reduction <add>, %145, %cst_71 [2] : vector<1x8x32xf32> to vector<1x8xf32>
    %147 = vector.shape_cast %146 : vector<1x8xf32> to vector<1x8x1xf32>
    %cst_72 = arith.constant 3.200000e+01 : f32
    %148 = vector.broadcast %cst_72 : f32 to vector<1x8x1xf32>
    %149 = arith.divf %147, %148 : vector<1x8x1xf32>
    %150 = vector.broadcast %142 : vector<1x8x1xf32> to vector<1x8x32xf32>
    %151 = arith.subf %138, %150 : vector<1x8x32xf32>
    %cst_73 = arith.constant 9.99999974E-6 : f32
    %152 = vector.broadcast %cst_73 : f32 to vector<1x8x1xf32>
    %153 = arith.addf %149, %152 : vector<1x8x1xf32>
    %154 = math.rsqrt %153 : vector<1x8x1xf32>
    %155 = vector.broadcast %154 : vector<1x8x1xf32> to vector<1x8x32xf32>
    %156 = arith.mulf %151, %155 : vector<1x8x32xf32>
    %157 = vector.shape_cast %93 : vector<1x32xf32> to vector<1x1x32xf32>
    %158 = vector.broadcast %157 : vector<1x1x32xf32> to vector<1x8x32xf32>
    %159 = arith.mulf %156, %158 : vector<1x8x32xf32>
    %160 = vector.shape_cast %94 : vector<1x32xf32> to vector<1x1x32xf32>
    %161 = vector.broadcast %160 : vector<1x1x32xf32> to vector<1x8x32xf32>
    %162 = arith.addf %159, %161 : vector<1x8x32xf32>
    %c0_74 = arith.constant 0 : index
    %c0_75 = arith.constant 0 : index
    %c0_76 = arith.constant 0 : index
    %163 = vector.load %arg18[%c0_74, %c0_75, %c0_76] : memref<1x8x32xf32, #tpu.memory_space<vmem>>, vector<1x8x32xf32>
    tpu.vector_store %arg18[%c0_74, %c0_75, %c0_76], %162 {strides = array<i32>} : memref<1x8x32xf32, #tpu.memory_space<vmem>>, vector<1x8x32xf32>,
    %cst_77 = arith.constant 5.000000e-01 : f32
    %164 = vector.broadcast %cst_77 : f32 to vector<1x8x8xf32>
    %165 = arith.mulf %80, %164 : vector<1x8x8xf32>
    %c0_78 = arith.constant 0 : index
    %c0_79 = arith.constant 0 : index
    %c0_80 = arith.constant 0 : index
    %166 = vector.load %arg19[%c0_78, %c0_79, %c0_80] : memref<1x8x8xf32, #tpu.memory_space<vmem>>, vector<1x8x8xf32>
    tpu.vector_store %arg19[%c0_78, %c0_79, %c0_80], %165 {strides = array<i32>} : memref<1x8x8xf32, #tpu.memory_space<vmem>>, vector<1x8x8xf32>,
    return
  }
  func.func @transform_0(%arg0: i32, %arg1: i32) -> (i32, i32, i32) {
    %c0_i32 = arith.constant 0 : i32
    %c0_i32_0 = arith.constant 0 : i32
    return %arg0, %arg1, %c0_i32 : i32, i32, i32
  }
  func.func @transform_1(%arg0: i32, %arg1: i32) -> (i32, i32) {
    %c0_i32 = arith.constant 0 : i32
    %c0_i32_0 = arith.constant 0 : i32
    return %arg1, %c0_i32 : i32, i32
  }
  func.func @transform_2(%arg0: i32, %arg1: i32) -> (i32, i32, i32) {
    %c0_i32 = arith.constant 0 : i32
    %c0_i32_0 = arith.constant 0 : i32
    %c0_i32_1 = arith.constant 0 : i32
    %c0_i32_2 = arith.constant 0 : i32
    return %c0_i32, %c0_i32_0, %c0_i32_1 : i32, i32, i32
  }
  func.func @transform_3(%arg0: i32, %arg1: i32) -> (i32, i32, i32) {
    %c0_i32 = arith.constant 0 : i32
    %c0_i32_0 = arith.constant 0 : i32
    %c0_i32_1 = arith.constant 0 : i32
    %c0_i32_2 = arith.constant 0 : i32
    return %c0_i32, %c0_i32_0, %c0_i32_1 : i32, i32, i32
  }
  func.func @transform_4(%arg0: i32, %arg1: i32) -> (i32, i32, i32) {
    %c0_i32 = arith.constant 0 : i32
    %c0_i32_0 = arith.constant 0 : i32
    %c0_i32_1 = arith.constant 0 : i32
    %c0_i32_2 = arith.constant 0 : i32
    return %c0_i32, %c0_i32_0, %c0_i32_1 : i32, i32, i32
  }
  func.func @transform_5(%arg0: i32, %arg1: i32) -> (i32, i32, i32) {
    %c0_i32 = arith.constant 0 : i32
    %c0_i32_0 = arith.constant 0 : i32
    %c0_i32_1 = arith.constant 0 : i32
    %c0_i32_2 = arith.constant 0 : i32
    return %c0_i32, %c0_i32_0, %c0_i32_1 : i32, i32, i32
  }
  func.func @transform_6(%arg0: i32, %arg1: i32) -> (i32, i32, i32) {
    %c0_i32 = arith.constant 0 : i32
    %c0_i32_0 = arith.constant 0 : i32
    %c0_i32_1 = arith.constant 0 : i32
    %c0_i32_2 = arith.constant 0 : i32
    return %c0_i32, %c0_i32_0, %c0_i32_1 : i32, i32, i32
  }
  func.func @transform_7(%arg0: i32, %arg1: i32) -> (i32, i32, i32) {
    %c0_i32 = arith.constant 0 : i32
    %c0_i32_0 = arith.constant 0 : i32
    %c0_i32_1 = arith.constant 0 : i32
    %c0_i32_2 = arith.constant 0 : i32
    return %c0_i32, %c0_i32_0, %c0_i32_1 : i32, i32, i32
  }
  func.func @transform_8(%arg0: i32, %arg1: i32) -> (i32, i32, i32) {
    %c0_i32 = arith.constant 0 : i32
    %c0_i32_0 = arith.constant 0 : i32
    %c0_i32_1 = arith.constant 0 : i32
    %c0_i32_2 = arith.constant 0 : i32
    return %c0_i32, %c0_i32_0, %c0_i32_1 : i32, i32, i32
  }
  func.func @transform_9(%arg0: i32, %arg1: i32) -> (i32, i32) {
    %c0_i32 = arith.constant 0 : i32
    %c0_i32_0 = arith.constant 0 : i32
    %c0_i32_1 = arith.constant 0 : i32
    return %c0_i32, %c0_i32_0 : i32, i32
  }
  func.func @transform_10(%arg0: i32, %arg1: i32) -> (i32, i32) {
    %c0_i32 = arith.constant 0 : i32
    %c0_i32_0 = arith.constant 0 : i32
    %c0_i32_1 = arith.constant 0 : i32
    return %c0_i32, %c0_i32_0 : i32, i32
  }
  func.func @transform_11(%arg0: i32, %arg1: i32) -> (i32, i32) {
    %c0_i32 = arith.constant 0 : i32
    %c0_i32_0 = arith.constant 0 : i32
    %c0_i32_1 = arith.constant 0 : i32
    return %c0_i32, %c0_i32_0 : i32, i32
  }
  func.func @transform_12(%arg0: i32, %arg1: i32) -> (i32, i32) {
    %c0_i32 = arith.constant 0 : i32
    %c0_i32_0 = arith.constant 0 : i32
    %c0_i32_1 = arith.constant 0 : i32
    return %c0_i32, %c0_i32_0 : i32, i32
  }
  func.func @transform_13(%arg0: i32, %arg1: i32) -> (i32, i32) {
    %c0_i32 = arith.constant 0 : i32
    %c0_i32_0 = arith.constant 0 : i32
    %c0_i32_1 = arith.constant 0 : i32
    return %c0_i32, %c0_i32_0 : i32, i32
  }
  func.func @transform_14(%arg0: i32, %arg1: i32) -> (i32, i32) {
    %c0_i32 = arith.constant 0 : i32
    %c0_i32_0 = arith.constant 0 : i32
    %c0_i32_1 = arith.constant 0 : i32
    return %c0_i32, %c0_i32_0 : i32, i32
  }
  func.func @transform_15(%arg0: i32, %arg1: i32) -> (i32, i32) {
    %c0_i32 = arith.constant 0 : i32
    %c0_i32_0 = arith.constant 0 : i32
    %c0_i32_1 = arith.constant 0 : i32
    return %c0_i32, %c0_i32_0 : i32, i32
  }
  func.func @transform_16(%arg0: i32, %arg1: i32) -> (i32, i32, i32) {
    %c0_i32 = arith.constant 0 : i32
    %c0_i32_0 = arith.constant 0 : i32
    return %arg0, %arg1, %c0_i32 : i32, i32, i32
  }
  func.func @transform_17(%arg0: i32, %arg1: i32) -> (i32, i32, i32) {
    %c0_i32 = arith.constant 0 : i32
    %c0_i32_0 = arith.constant 0 : i32
    return %arg0, %arg1, %c0_i32 : i32, i32, i32
  }
}

</mosaic_0001>

<llo_original>
// kernel: tpu_custom_call.1
$region0: #{tpu_custom_call.1}
  #allocation0 [shape = 'u32[]', space=smem, size = 0x4, offset = 0x4, fixed_abs, tag = 'smem constant byte address 0x4 - core index']
  #allocation1 [shape = 'u32[144,128]{1,0:T(1,128)}', space=vmem, size = 0x12000, scoped, tag = 'internal scratch']
  %s0 = inlined_call_operand.vmem [shape: f32[2,8,32], index: 0, kind: input, shape index: {}]
  %s1 = inlined_call_operand.hbm [shape: f32[8,8], index: 1, kind: input, shape index: {}]
  %s2 = inlined_call_operand.vmem [shape: bf16[1,32,32], index: 2, kind: input, shape index: {}]
  %s3 = inlined_call_operand.vmem [shape: f32[1,1,32], index: 3, kind: input, shape index: {}]
  %s4 = inlined_call_operand.vmem [shape: bf16[1,32,32], index: 4, kind: input, shape index: {}]
  %s5 = inlined_call_operand.vmem [shape: f32[1,1,32], index: 5, kind: input, shape index: {}]
  %s6 = inlined_call_operand.hbm [shape: bf16[1,32,32], index: 6, kind: input, shape index: {}]
  %s7 = inlined_call_operand.hbm [shape: f32[1,1,32], index: 7, kind: input, shape index: {}]
  %s8 = inlined_call_operand.hbm [shape: bf16[2,16,32], index: 8, kind: input, shape index: {}]
  %s9 = inlined_call_operand.hbm [shape: f32[1,32], index: 9, kind: input, shape index: {}]
  %s10 = inlined_call_operand.vmem [shape: bf16[32,64], index: 10, kind: input, shape index: {}]
  %s11 = inlined_call_operand.vmem [shape: f32[1,64], index: 11, kind: input, shape index: {}]
  %s12 = inlined_call_operand.vmem [shape: bf16[64,32], index: 12, kind: input, shape index: {}]
  %s13 = inlined_call_operand.vmem [shape: f32[1,32], index: 13, kind: input, shape index: {}]
  %s14 = inlined_call_operand.vmem [shape: f32[1,32], index: 14, kind: input, shape index: {}]
  %s15 = inlined_call_operand.vmem [shape: f32[1,32], index: 15, kind: input, shape index: {}]
  %s16 = inlined_call_operand.hbm [shape: f32[2,8,32], index: 16, kind: output, shape index: {0}]
  %s17 = inlined_call_operand.hbm [shape: f32[2,8,8], index: 17, kind: output, shape index: {1}]
  %18 = xla_tuple %s16, %s17
  %s19 = sld [smem:[#allocation0]]
  $region125: #{tpu_custom_call.1} parent=0
    _
  %s21 = ssub.s32 1, %s19
  %s22 = scalar_select 0, %s21, %s19
  $region1: #{tpu_custom_call.1} parent=0
    #allocation2 [shape = 'u8[4096]{0}', space=vmem, size = 0x1000, scoped, tag = 'input window, operand 1, single buffered']
    #allocation3 [shape = 's32[2]{0}', space=sflag, size = 0x8, scoped, tag = 'scoped memory for tpu_custom_call.1']
    #allocation4 [shape = 's32[2]{0}', space=sflag, size = 0x8, scoped, tag = 'scoped memory for tpu_custom_call.1']
    #allocation5 [shape = 'u8[8192]{0}', space=vmem, size = 0x2000, scoped, tag = 'input window, operand 6, single buffered']
    #allocation6 [shape = 's32[1]{0}', space=sflag, size = 0x4, scoped, tag = 'scoped memory for tpu_custom_call.1']
    #allocation7 [shape = 'u8[512]{0}', space=vmem, size = 0x400, scoped, tag = 'input window, operand 7, single buffered']
    #allocation8 [shape = 'u8[8192]{0}', space=vmem, size = 0x2000, scoped, tag = 'input window, operand 8, single buffered']
    #allocation9 [shape = 's32[1]{0}', space=sflag, size = 0x4, scoped, tag = 'scoped memory for tpu_custom_call.1']
    #allocation10 [shape = 'u8[512]{0}', space=vmem, size = 0x400, scoped, tag = 'input window, operand 9, single buffered']
    #allocation11 [shape = 'u8[8192]{0}', space=vmem, size = 0x2000, scoped, tag = 'output window, operand 0']
    #allocation12 [shape = 'u8[8192]{0}', space=vmem, size = 0x2000, scoped, tag = 'output window, operand 1']
    #allocation13 [shape = 's32[2]{0}', space=sflag, size = 0x8, scoped, tag = 'scoped memory for tpu_custom_call.1']
    %23 = vsyncpa [#allocation3], 0
    %24 = vsyncpa [#allocation6], 0
    %25 = vsyncpa [#allocation9], 0
    %26 = vsyncpa [#allocation4], 0
    %s27 = scalar_lea.sflag [#allocation4], 1
    %28 = vsyncpa %s27, 0
    %29 = vsyncpa [#allocation13], 0
    %s30 = scalar_lea.sflag [#allocation13], 1
    %31 = vsyncpa %s30, 0
    loop: start=0, step=1, limit=4
    $region2: #{tpu_custom_call.1} parent=1 // loop_pre_header
      _
    $region3: #{tpu_custom_call.1} parent=1 // loop_header
      %s33 = sphi 0, %s37
      %p34 = scmp.ge.s32.totalorder %s33, 4
      %s40 = sphi 0, %s52
      %s41 = sphi 0, %s48
      %s42 = sphi 0, %s40
      %s43 = sphi 0, %s41
      %s44 = sphi 0, %s42
      %s45 = sphi 0, %s43
      %s57 = sphi 0, %s59
      %s60 = sphi 0, %s57
      %s61 = sphi 0, %s60
      %s77 = sphi 0, %s61
      %s83 = sphi 0, %s85
      %s86 = sphi 0, %s83
      %s87 = sphi 0, %s86
      %s103 = sphi 0, %s87
      %s107 = sphi 0, %s107
      %s109 = sphi 0, %s107
      %s110 = sphi 0, %s109
      %s124 = sphi 0, %s110
      %s128 = sphi 0, %s128
      %s130 = sphi 0, %s128
      %s131 = sphi 0, %s130
      %s145 = sphi 0, %s131
      %s149 = sphi 0, %s149
      %s151 = sphi 0, %s149
      %s152 = sphi 0, %s151
      %s166 = sphi 0, %s152
      %s170 = sphi 0, %s170
      %s172 = sphi 0, %s170
      %s173 = sphi 0, %s172
      %s187 = sphi 0, %s173
      %s191 = sphi 0, %s191
      %s193 = sphi 0, %s191
      %s194 = sphi 0, %s193
      %s208 = sphi 0, %s194
      %s212 = sphi 0, %s212
      %s214 = sphi 0, %s212
      %s215 = sphi 0, %s214
      %s229 = sphi 0, %s215
      %s233 = sphi 0, %s233
      %s235 = sphi 0, %s233
      %s236 = sphi 0, %s235
      %s250 = sphi 0, %s236
      %s254 = sphi 0, %s254
      %s256 = sphi 0, %s254
      %s257 = sphi 0, %s256
      %s271 = sphi 0, %s257
      %s275 = sphi 0, %s275
      %s277 = sphi 0, %s275
      %s278 = sphi 0, %s277
      %s292 = sphi 0, %s278
      %s296 = sphi 0, %s296
      %s298 = sphi 0, %s296
      %s299 = sphi 0, %s298
      %s313 = sphi 0, %s299
      %s317 = sphi 0, %s317
      %s319 = sphi 0, %s317
      %s320 = sphi 0, %s319
      %s334 = sphi 0, %s320
      %s338 = sphi 0, %s338
      %s340 = sphi 0, %s338
      %s341 = sphi 0, %s340
      %s355 = sphi 0, %s341
      %s359 = sphi 0, %s359
      %s361 = sphi 0, %s359
      %s362 = sphi 0, %s361
      %s376 = sphi 0, %s362
      %s380 = sphi 0, %s380
      %s382 = sphi 0, %s380
      %s383 = sphi 0, %s382
      %s397 = sphi 0, %s383
      %s405 = sphi 0, %s407
      %s408 = sphi 0, %s405
      %s409 = sphi 0, %s408
      %s425 = sphi 0, %s409
      %s433 = sphi 0, %s435
      %s436 = sphi 0, %s433
      %s437 = sphi 0, %s436
      %s453 = sphi 0, %s437
    $region4: #{tpu_custom_call.1} parent=1 // loop_header_branch
      %36 = sbr.rel (%p34) target = $region8
    $region5: #{tpu_custom_call.1} parent=1 // loop_body
      %s38 = ssub.s32 %s33, 1
      %s39 = ssub.s32 %s33, 2
      %s46 = sadd.s32 1, %s41
      %p47 = scmp.ge.s32.totalorder %s46, 1
      %s48 = scalar_select %p47, 0, %s46
      %s49 = sadd.s32 1, %s40
      %s50 = scalar_select %p47, %s49, %s40
      %p51 = scmp.ge.s32.totalorder %s50, 2
      %s52 = scalar_select %p51, 0, %s50
      %s53 = ssub.s32 %s40, %s52
      %s54 = ssub.s32 %s41, %s48
      %s55 = sor.u32 %s53, %s54
      %p56 = scmp.eq.s32.totalorder %s55, 0
      %s58 = sadd.s32 %s57, 1
      %s59 = scalar_select %p56, %s57, %s58
      %p62 = pneg %p56
      %p63 = scmp.eq.s32.totalorder %s33, 1
      %p64 = por %p62, %p63
      %p65 = scmp.ne.s32.totalorder %s57, %s60
      %p66 = scmp.eq.s32.totalorder %s33, 0
      %p67 = por %p65, %p66
      %p68 = scmp.ne.s32.totalorder %s57, %s60
      %p69 = scmp.eq.s32.totalorder %s38, 1
      %p70 = por %p68, %p69
      %p71 = scmp.ne.s32.totalorder %s60, %s61
      %p72 = scmp.eq.s32.totalorder %s38, 0
      %p73 = por %p71, %p72
      %p74 = scmp.ne.s32.totalorder %s60, %s61
      %p75 = scmp.eq.s32.totalorder %s39, 1
      %p76 = por %p74, %p75
      %p78 = scmp.ne.s32.totalorder %s61, %s77
      %p79 = scmp.eq.s32.totalorder %s39, 0
      %p80 = por %p78, %p79
      %s81 = ssub.s32 %s41, %s48
      %p82 = scmp.eq.s32.totalorder %s81, 0
      %s84 = sadd.s32 %s83, 1
      %s85 = scalar_select %p82, %s83, %s84
      %p88 = pneg %p82
      %p89 = scmp.eq.s32.totalorder %s33, 1
      %p90 = por %p88, %p89
      %p91 = scmp.ne.s32.totalorder %s83, %s86
      %p92 = scmp.eq.s32.totalorder %s33, 0
      %p93 = por %p91, %p92
      %p94 = scmp.ne.s32.totalorder %s83, %s86
      %p95 = scmp.eq.s32.totalorder %s38, 1
      %p96 = por %p94, %p95
      %p97 = scmp.ne.s32.totalorder %s86, %s87
      %p98 = scmp.eq.s32.totalorder %s38, 0
      %p99 = por %p97, %p98
      %p100 = scmp.ne.s32.totalorder %s86, %s87
      %p101 = scmp.eq.s32.totalorder %s39, 1
      %p102 = por %p100, %p101
      %p104 = scmp.ne.s32.totalorder %s87, %s103
      %p105 = scmp.eq.s32.totalorder %s39, 0
      %p106 = por %p104, %p105
      %s108 = sadd.s32 %s107, 1
      %p111 = scmp.eq.s32.totalorder %s33, 1
      %p112 = scmp.ne.s32.totalorder %s107, %s109
      %p113 = scmp.eq.s32.totalorder %s33, 0
      %p114 = por %p112, %p113
      %p115 = scmp.ne.s32.totalorder %s107, %s109
      %p116 = scmp.eq.s32.totalorder %s38, 1
      %p117 = por %p115, %p116
      %p118 = scmp.ne.s32.totalorder %s109, %s110
      %p119 = scmp.eq.s32.totalorder %s38, 0
      %p120 = por %p118, %p119
      %p121 = scmp.ne.s32.totalorder %s109, %s110
      %p122 = scmp.eq.s32.totalorder %s39, 1
      %p123 = por %p121, %p122
      %p125 = scmp.ne.s32.totalorder %s110, %s124
      %p126 = scmp.eq.s32.totalorder %s39, 0
      %p127 = por %p125, %p126
      %s129 = sadd.s32 %s128, 1
      %p132 = scmp.eq.s32.totalorder %s33, 1
      %p133 = scmp.ne.s32.totalorder %s128, %s130
      %p134 = scmp.eq.s32.totalorder %s33, 0
      %p135 = por %p133, %p134
      %p136 = scmp.ne.s32.totalorder %s128, %s130
      %p137 = scmp.eq.s32.totalorder %s38, 1
      %p138 = por %p136, %p137
      %p139 = scmp.ne.s32.totalorder %s130, %s131
      %p140 = scmp.eq.s32.totalorder %s38, 0
      %p141 = por %p139, %p140
      %p142 = scmp.ne.s32.totalorder %s130, %s131
      %p143 = scmp.eq.s32.totalorder %s39, 1
      %p144 = por %p142, %p143
      %p146 = scmp.ne.s32.totalorder %s131, %s145
      %p147 = scmp.eq.s32.totalorder %s39, 0
      %p148 = por %p146, %p147
      %s150 = sadd.s32 %s149, 1
      %p153 = scmp.eq.s32.totalorder %s33, 1
      %p154 = scmp.ne.s32.totalorder %s149, %s151
      %p155 = scmp.eq.s32.totalorder %s33, 0
      %p156 = por %p154, %p155
      %p157 = scmp.ne.s32.totalorder %s149, %s151
      %p158 = scmp.eq.s32.totalorder %s38, 1
      %p159 = por %p157, %p158
      %p160 = scmp.ne.s32.totalorder %s151, %s152
      %p161 = scmp.eq.s32.totalorder %s38, 0
      %p162 = por %p160, %p161
      %p163 = scmp.ne.s32.totalorder %s151, %s152
      %p164 = scmp.eq.s32.totalorder %s39, 1
      %p165 = por %p163, %p164
      %p167 = scmp.ne.s32.totalorder %s152, %s166
      %p168 = scmp.eq.s32.totalorder %s39, 0
      %p169 = por %p167, %p168
      %s171 = sadd.s32 %s170, 1
      %p174 = scmp.eq.s32.totalorder %s33, 1
      %p175 = scmp.ne.s32.totalorder %s170, %s172
      %p176 = scmp.eq.s32.totalorder %s33, 0
      %p177 = por %p175, %p176
      %p178 = scmp.ne.s32.totalorder %s170, %s172
      %p179 = scmp.eq.s32.totalorder %s38, 1
      %p180 = por %p178, %p179
      %p181 = scmp.ne.s32.totalorder %s172, %s173
      %p182 = scmp.eq.s32.totalorder %s38, 0
      %p183 = por %p181, %p182
      %p184 = scmp.ne.s32.totalorder %s172, %s173
      %p185 = scmp.eq.s32.totalorder %s39, 1
      %p186 = por %p184, %p185
      %p188 = scmp.ne.s32.totalorder %s173, %s187
      %p189 = scmp.eq.s32.totalorder %s39, 0
      %p190 = por %p188, %p189
      %s192 = sadd.s32 %s191, 1
      %p195 = scmp.eq.s32.totalorder %s33, 1
      %p196 = scmp.ne.s32.totalorder %s191, %s193
      %p197 = scmp.eq.s32.totalorder %s33, 0
      %p198 = por %p196, %p197
      %p199 = scmp.ne.s32.totalorder %s191, %s193
      %p200 = scmp.eq.s32.totalorder %s38, 1
      %p201 = por %p199, %p200
      %p202 = scmp.ne.s32.totalorder %s193, %s194
      %p203 = scmp.eq.s32.totalorder %s38, 0
      %p204 = por %p202, %p203
      %p205 = scmp.ne.s32.totalorder %s193, %s194
      %p206 = scmp.eq.s32.totalorder %s39, 1
      %p207 = por %p205, %p206
      %p209 = scmp.ne.s32.totalorder %s194, %s208
      %p210 = scmp.eq.s32.totalorder %s39, 0
      %p211 = por %p209, %p210
      %s213 = sadd.s32 %s212, 1
      %p216 = scmp.eq.s32.totalorder %s33, 1
      %p217 = scmp.ne.s32.totalorder %s212, %s214
      %p218 = scmp.eq.s32.totalorder %s33, 0
      %p219 = por %p217, %p218
      %p220 = scmp.ne.s32.totalorder %s212, %s214
      %p221 = scmp.eq.s32.totalorder %s38, 1
      %p222 = por %p220, %p221
      %p223 = scmp.ne.s32.totalorder %s214, %s215
      %p224 = scmp.eq.s32.totalorder %s38, 0
      %p225 = por %p223, %p224
      %p226 = scmp.ne.s32.totalorder %s214, %s215
      %p227 = scmp.eq.s32.totalorder %s39, 1
      %p228 = por %p226, %p227
      %p230 = scmp.ne.s32.totalorder %s215, %s229
      %p231 = scmp.eq.s32.totalorder %s39, 0
      %p232 = por %p230, %p231
      %s234 = sadd.s32 %s233, 1
      %p237 = scmp.eq.s32.totalorder %s33, 1
      %p238 = scmp.ne.s32.totalorder %s233, %s235
      %p239 = scmp.eq.s32.totalorder %s33, 0
      %p240 = por %p238, %p239
      %p241 = scmp.ne.s32.totalorder %s233, %s235
      %p242 = scmp.eq.s32.totalorder %s38, 1
      %p243 = por %p241, %p242
      %p244 = scmp.ne.s32.totalorder %s235, %s236
      %p245 = scmp.eq.s32.totalorder %s38, 0
      %p246 = por %p244, %p245
      %p247 = scmp.ne.s32.totalorder %s235, %s236
      %p248 = scmp.eq.s32.totalorder %s39, 1
      %p249 = por %p247, %p248
      %p251 = scmp.ne.s32.totalorder %s236, %s250
      %p252 = scmp.eq.s32.totalorder %s39, 0
      %p253 = por %p251, %p252
      %s255 = sadd.s32 %s254, 1
      %p258 = scmp.eq.s32.totalorder %s33, 1
      %p259 = scmp.ne.s32.totalorder %s254, %s256
      %p260 = scmp.eq.s32.totalorder %s33, 0
      %p261 = por %p259, %p260
      %p262 = scmp.ne.s32.totalorder %s254, %s256
      %p263 = scmp.eq.s32.totalorder %s38, 1
      %p264 = por %p262, %p263
      %p265 = scmp.ne.s32.totalorder %s256, %s257
      %p266 = scmp.eq.s32.totalorder %s38, 0
      %p267 = por %p265, %p266
      %p268 = scmp.ne.s32.totalorder %s256, %s257
      %p269 = scmp.eq.s32.totalorder %s39, 1
      %p270 = por %p268, %p269
      %p272 = scmp.ne.s32.totalorder %s257, %s271
      %p273 = scmp.eq.s32.totalorder %s39, 0
      %p274 = por %p272, %p273
      %s276 = sadd.s32 %s275, 1
      %p279 = scmp.eq.s32.totalorder %s33, 1
      %p280 = scmp.ne.s32.totalorder %s275, %s277
      %p281 = scmp.eq.s32.totalorder %s33, 0
      %p282 = por %p280, %p281
      %p283 = scmp.ne.s32.totalorder %s275, %s277
      %p284 = scmp.eq.s32.totalorder %s38, 1
      %p285 = por %p283, %p284
      %p286 = scmp.ne.s32.totalorder %s277, %s278
      %p287 = scmp.eq.s32.totalorder %s38, 0
      %p288 = por %p286, %p287
      %p289 = scmp.ne.s32.totalorder %s277, %s278
      %p290 = scmp.eq.s32.totalorder %s39, 1
      %p291 = por %p289, %p290
      %p293 = scmp.ne.s32.totalorder %s278, %s292
      %p294 = scmp.eq.s32.totalorder %s39, 0
      %p295 = por %p293, %p294
      %s297 = sadd.s32 %s296, 1
      %p300 = scmp.eq.s32.totalorder %s33, 1
      %p301 = scmp.ne.s32.totalorder %s296, %s298
      %p302 = scmp.eq.s32.totalorder %s33, 0
      %p303 = por %p301, %p302
      %p304 = scmp.ne.s32.totalorder %s296, %s298
      %p305 = scmp.eq.s32.totalorder %s38, 1
      %p306 = por %p304, %p305
      %p307 = scmp.ne.s32.totalorder %s298, %s299
      %p308 = scmp.eq.s32.totalorder %s38, 0
      %p309 = por %p307, %p308
      %p310 = scmp.ne.s32.totalorder %s298, %s299
      %p311 = scmp.eq.s32.totalorder %s39, 1
      %p312 = por %p310, %p311
      %p314 = scmp.ne.s32.totalorder %s299, %s313
      %p315 = scmp.eq.s32.totalorder %s39, 0
      %p316 = por %p314, %p315
      %s318 = sadd.s32 %s317, 1
      %p321 = scmp.eq.s32.totalorder %s33, 1
      %p322 = scmp.ne.s32.totalorder %s317, %s319
      %p323 = scmp.eq.s32.totalorder %s33, 0
      %p324 = por %p322, %p323
      %p325 = scmp.ne.s32.totalorder %s317, %s319
      %p326 = scmp.eq.s32.totalorder %s38, 1
      %p327 = por %p325, %p326
      %p328 = scmp.ne.s32.totalorder %s319, %s320
      %p329 = scmp.eq.s32.totalorder %s38, 0
      %p330 = por %p328, %p329
      %p331 = scmp.ne.s32.totalorder %s319, %s320
      %p332 = scmp.eq.s32.totalorder %s39, 1
      %p333 = por %p331, %p332
      %p335 = scmp.ne.s32.totalorder %s320, %s334
      %p336 = scmp.eq.s32.totalorder %s39, 0
      %p337 = por %p335, %p336
      %s339 = sadd.s32 %s338, 1
      %p342 = scmp.eq.s32.totalorder %s33, 1
      %p343 = scmp.ne.s32.totalorder %s338, %s340
      %p344 = scmp.eq.s32.totalorder %s33, 0
      %p345 = por %p343, %p344
      %p346 = scmp.ne.s32.totalorder %s338, %s340
      %p347 = scmp.eq.s32.totalorder %s38, 1
      %p348 = por %p346, %p347
      %p349 = scmp.ne.s32.totalorder %s340, %s341
      %p350 = scmp.eq.s32.totalorder %s38, 0
      %p351 = por %p349, %p350
      %p352 = scmp.ne.s32.totalorder %s340, %s341
      %p353 = scmp.eq.s32.totalorder %s39, 1
      %p354 = por %p352, %p353
      %p356 = scmp.ne.s32.totalorder %s341, %s355
      %p357 = scmp.eq.s32.totalorder %s39, 0
      %p358 = por %p356, %p357
      %s360 = sadd.s32 %s359, 1
      %p363 = scmp.eq.s32.totalorder %s33, 1
      %p364 = scmp.ne.s32.totalorder %s359, %s361
      %p365 = scmp.eq.s32.totalorder %s33, 0
      %p366 = por %p364, %p365
      %p367 = scmp.ne.s32.totalorder %s359, %s361
      %p368 = scmp.eq.s32.totalorder %s38, 1
      %p369 = por %p367, %p368
      %p370 = scmp.ne.s32.totalorder %s361, %s362
      %p371 = scmp.eq.s32.totalorder %s38, 0
      %p372 = por %p370, %p371
      %p373 = scmp.ne.s32.totalorder %s361, %s362
      %p374 = scmp.eq.s32.totalorder %s39, 1
      %p375 = por %p373, %p374
      %p377 = scmp.ne.s32.totalorder %s362, %s376
      %p378 = scmp.eq.s32.totalorder %s39, 0
      %p379 = por %p377, %p378
      %s381 = sadd.s32 %s380, 1
      %p384 = scmp.eq.s32.totalorder %s33, 1
      %p385 = scmp.ne.s32.totalorder %s380, %s382
      %p386 = scmp.eq.s32.totalorder %s33, 0
      %p387 = por %p385, %p386
      %p388 = scmp.ne.s32.totalorder %s380, %s382
      %p389 = scmp.eq.s32.totalorder %s38, 1
      %p390 = por %p388, %p389
      %p391 = scmp.ne.s32.totalorder %s382, %s383
      %p392 = scmp.eq.s32.totalorder %s38, 0
      %p393 = por %p391, %p392
      %p394 = scmp.ne.s32.totalorder %s382, %s383
      %p395 = scmp.eq.s32.totalorder %s39, 1
      %p396 = por %p394, %p395
      %p398 = scmp.ne.s32.totalorder %s383, %s397
      %p399 = scmp.eq.s32.totalorder %s39, 0
      %p400 = por %p398, %p399
      %s401 = ssub.s32 %s40, %s52
      %s402 = ssub.s32 %s41, %s48
      %s403 = sor.u32 %s401, %s402
      %p404 = scmp.eq.s32.totalorder %s403, 0
      %s406 = sadd.s32 %s405, 1
      %s407 = scalar_select %p404, %s405, %s406
      %p410 = pneg %p404
      %p411 = scmp.eq.s32.totalorder %s33, 1
      %p412 = por %p410, %p411
      %p413 = scmp.ne.s32.totalorder %s405, %s408
      %p414 = scmp.eq.s32.totalorder %s33, 0
      %p415 = por %p413, %p414
      %p416 = scmp.ne.s32.totalorder %s405, %s408
      %p417 = scmp.eq.s32.totalorder %s38, 1
      %p418 = por %p416, %p417
      %p419 = scmp.ne.s32.totalorder %s408, %s409
      %p420 = scmp.eq.s32.totalorder %s38, 0
      %p421 = por %p419, %p420
      %p422 = scmp.ne.s32.totalorder %s408, %s409
      %p423 = scmp.eq.s32.totalorder %s39, 1
      %p424 = por %p422, %p423
      %p426 = scmp.ne.s32.totalorder %s409, %s425
      %p427 = scmp.eq.s32.totalorder %s39, 0
      %p428 = por %p426, %p427
      %s429 = ssub.s32 %s40, %s52
      %s430 = ssub.s32 %s41, %s48
      %s431 = sor.u32 %s429, %s430
      %p432 = scmp.eq.s32.totalorder %s431, 0
      %s434 = sadd.s32 %s433, 1
      %s435 = scalar_select %p432, %s433, %s434
      %p438 = pneg %p432
      %p439 = scmp.eq.s32.totalorder %s33, 1
      %p440 = por %p438, %p439
      %p441 = scmp.ne.s32.totalorder %s433, %s436
      %p442 = scmp.eq.s32.totalorder %s33, 0
      %p443 = por %p441, %p442
      %p444 = scmp.ne.s32.totalorder %s433, %s436
      %p445 = scmp.eq.s32.totalorder %s38, 1
      %p446 = por %p444, %p445
      %p447 = scmp.ne.s32.totalorder %s436, %s437
      %p448 = scmp.eq.s32.totalorder %s38, 0
      %p449 = por %p447, %p448
      %p450 = scmp.ne.s32.totalorder %s436, %s437
      %p451 = scmp.eq.s32.totalorder %s39, 1
      %p452 = por %p450, %p451
      %p454 = scmp.ne.s32.totalorder %s437, %s453
      %p455 = scmp.eq.s32.totalorder %s39, 0
      %p456 = por %p454, %p455
      %p457 = scmp.le.s32.totalorder 1, %s33
      %p458 = scmp.lt.s32.totalorder %s33, 3
      %p459 = pnand %p457, %p458
      %p460 = pneg %p459
      // Predicated region
      $region9: #{tpu_custom_call.1} parent=5 // pred_check
        _
      $region10: #{tpu_custom_call.1} parent=5 // pred_check_branch
        %462 = sbr.rel (%p459) target = $region12
      $region11: #{tpu_custom_call.1} parent=5 // pred_region
        %s463 = ssub.s32 %s33, 1
        // Predicated region
        $region13: #{tpu_custom_call.1} parent=11 // pred_check
          %p464 = pneg %p99
        $region14: #{tpu_custom_call.1} parent=11 // pred_check_branch
          %466 = sbr.rel (%p464) target = $region16
        $region15: #{tpu_custom_call.1} parent=11 // pred_region
          %s468 = ssub.s32 128, 128
          %469 = vsyncadd [#allocation3], %s468
          %s470 = smul.addr %s43, 128
          %s471 = scalar_lea.hbm %s1, %s470
          %s473 = sshll.u32 [#allocation2], 4
          %s474 = int_to_ptr.vmem [resolvable:$true] %s473
          %476 = dma.hbm_to_vmem [thread:$0]  %s471, 128, %s474, [#allocation3]
        $region16: #{tpu_custom_call.1} parent=11 // pred_fallthru
          _
        // Predicated region
        $region17: #{tpu_custom_call.1} parent=11 // pred_check
          %p477 = pneg %p120
        $region18: #{tpu_custom_call.1} parent=11 // pred_check_branch
          %479 = sbr.rel (%p477) target = $region20
        $region19: #{tpu_custom_call.1} parent=11 // pred_region
          _
        $region20: #{tpu_custom_call.1} parent=11 // pred_fallthru
          _
        // Predicated region
        $region21: #{tpu_custom_call.1} parent=11 // pred_check
          %p480 = pneg %p141
        $region22: #{tpu_custom_call.1} parent=11 // pred_check_branch
          %482 = sbr.rel (%p480) target = $region24
        $region23: #{tpu_custom_call.1} parent=11 // pred_region
          _
        $region24: #{tpu_custom_call.1} parent=11 // pred_fallthru
          _
        // Predicated region
        $region25: #{tpu_custom_call.1} parent=11 // pred_check
          %p483 = pneg %p162
        $region26: #{tpu_custom_call.1} parent=11 // pred_check_branch
          %485 = sbr.rel (%p483) target = $region28
        $region27: #{tpu_custom_call.1} parent=11 // pred_region
          _
        $region28: #{tpu_custom_call.1} parent=11 // pred_fallthru
          _
        // Predicated region
        $region29: #{tpu_custom_call.1} parent=11 // pred_check
          %p486 = pneg %p183
        $region30: #{tpu_custom_call.1} parent=11 // pred_check_branch
          %488 = sbr.rel (%p486) target = $region32
        $region31: #{tpu_custom_call.1} parent=11 // pred_region
          _
        $region32: #{tpu_custom_call.1} parent=11 // pred_fallthru
          _
        // Predicated region
        $region33: #{tpu_custom_call.1} parent=11 // pred_check
          %p489 = pneg %p204
        $region34: #{tpu_custom_call.1} parent=11 // pred_check_branch
          %491 = sbr.rel (%p489) target = $region36
        $region35: #{tpu_custom_call.1} parent=11 // pred_region
          %s493 = ssub.s32 256, 256
          %494 = vsyncadd [#allocation6], %s493
          %s495 = sshll.u32 [#allocation5], 4
          %s496 = int_to_ptr.vmem [resolvable:$true] %s495
          %501 = dma.hbm_to_vmem [thread:$0]  %s6, 256, %s496, [#allocation6], 64, 64, 4
        $region36: #{tpu_custom_call.1} parent=11 // pred_fallthru
          _
        // Predicated region
        $region37: #{tpu_custom_call.1} parent=11 // pred_check
          %p502 = pneg %p225
        $region38: #{tpu_custom_call.1} parent=11 // pred_check_branch
          %504 = sbr.rel (%p502) target = $region40
        $region39: #{tpu_custom_call.1} parent=11 // pred_region
          %s506 = ssub.s32 16, 16
          %507 = vsyncadd [#allocation6], %s506
          %s509 = sshll.u32 [#allocation7], 4
          %s510 = int_to_ptr.vmem [resolvable:$true] %s509
          %512 = dma.hbm_to_vmem [thread:$0]  %s7, 16, %s510, [#allocation6]
        $region40: #{tpu_custom_call.1} parent=11 // pred_fallthru
          _
        // Predicated region
        $region41: #{tpu_custom_call.1} parent=11 // pred_check
          %p513 = pneg %p246
        $region42: #{tpu_custom_call.1} parent=11 // pred_check_branch
          %515 = sbr.rel (%p513) target = $region44
        $region43: #{tpu_custom_call.1} parent=11 // pred_region
          %s517 = ssub.s32 256, 256
          %518 = vsyncadd [#allocation9], %s517
          %s519 = sshll.u32 [#allocation8], 4
          %s520 = int_to_ptr.vmem [resolvable:$true] %s519
          %525 = dma.hbm_to_vmem [thread:$0]  %s8, 256, %s520, [#allocation9], 64, 64, 4
        $region44: #{tpu_custom_call.1} parent=11 // pred_fallthru
          _
        // Predicated region
        $region45: #{tpu_custom_call.1} parent=11 // pred_check
          %p526 = pneg %p267
        $region46: #{tpu_custom_call.1} parent=11 // pred_check_branch
          %528 = sbr.rel (%p526) target = $region48
        $region47: #{tpu_custom_call.1} parent=11 // pred_region
          %s530 = ssub.s32 16, 16
          %531 = vsyncadd [#allocation9], %s530
          %s533 = sshll.u32 [#allocation10], 4
          %s534 = int_to_ptr.vmem [resolvable:$true] %s533
          %536 = dma.hbm_to_vmem [thread:$0]  %s9, 16, %s534, [#allocation9]
        $region48: #{tpu_custom_call.1} parent=11 // pred_fallthru
          _
        // Predicated region
        $region49: #{tpu_custom_call.1} parent=11 // pred_check
          %p537 = pneg %p288
        $region50: #{tpu_custom_call.1} parent=11 // pred_check_branch
          %539 = sbr.rel (%p537) target = $region52
        $region51: #{tpu_custom_call.1} parent=11 // pred_region
          _
        $region52: #{tpu_custom_call.1} parent=11 // pred_fallthru
          _
        // Predicated region
        $region53: #{tpu_custom_call.1} parent=11 // pred_check
          %p540 = pneg %p309
        $region54: #{tpu_custom_call.1} parent=11 // pred_check_branch
          %542 = sbr.rel (%p540) target = $region56
        $region55: #{tpu_custom_call.1} parent=11 // pred_region
          _
        $region56: #{tpu_custom_call.1} parent=11 // pred_fallthru
          _
        // Predicated region
        $region57: #{tpu_custom_call.1} parent=11 // pred_check
          %p543 = pneg %p330
        $region58: #{tpu_custom_call.1} parent=11 // pred_check_branch
          %545 = sbr.rel (%p543) target = $region60
        $region59: #{tpu_custom_call.1} parent=11 // pred_region
          _
        $region60: #{tpu_custom_call.1} parent=11 // pred_fallthru
          _
        // Predicated region
        $region61: #{tpu_custom_call.1} parent=11 // pred_check
          %p546 = pneg %p351
        $region62: #{tpu_custom_call.1} parent=11 // pred_check_branch
          %548 = sbr.rel (%p546) target = $region64
        $region63: #{tpu_custom_call.1} parent=11 // pred_region
          _
        $region64: #{tpu_custom_call.1} parent=11 // pred_fallthru
          _
        // Predicated region
        $region65: #{tpu_custom_call.1} parent=11 // pred_check
          %p549 = pneg %p372
        $region66: #{tpu_custom_call.1} parent=11 // pred_check_branch
          %551 = sbr.rel (%p549) target = $region68
        $region67: #{tpu_custom_call.1} parent=11 // pred_region
          _
        $region68: #{tpu_custom_call.1} parent=11 // pred_fallthru
          _
        // Predicated region
        $region69: #{tpu_custom_call.1} parent=11 // pred_check
          %p552 = pneg %p393
        $region70: #{tpu_custom_call.1} parent=11 // pred_check_branch
          %554 = sbr.rel (%p552) target = $region72
        $region71: #{tpu_custom_call.1} parent=11 // pred_region
          _
        $region72: #{tpu_custom_call.1} parent=11 // pred_fallthru
          _
      $region12: #{tpu_custom_call.1} parent=5 // pred_fallthru
        _
      %p555 = scmp.lt.s32.totalorder %s33, 2
      // Predicated region
      $region73: #{tpu_custom_call.1} parent=5 // pred_check
        %p556 = pneg %p555
      $region74: #{tpu_custom_call.1} parent=5 // pred_check_branch
        %558 = sbr.rel (%p556) target = $region76
      $region75: #{tpu_custom_call.1} parent=5 // pred_region
        // Predicated region
        $region77: #{tpu_custom_call.1} parent=75 // pred_check
          %p559 = pneg %p67
        $region78: #{tpu_custom_call.1} parent=75 // pred_check_branch
          %561 = sbr.rel (%p559) target = $region80
        $region79: #{tpu_custom_call.1} parent=75 // pred_region
          %p562 = scmp.lt.s32.totalorder %s40, 1
          %s563 = scalar_select %p562, %s40, 1
          %p564 = scmp.lt.s32.totalorder %s41, 0
          %s565 = scalar_select %p564, %s41, 0
          %s566 = sadd.s32 %s565, %s563
          %s567 = smul.addr %s566, 8
          %s568 = scalar_lea.vmem %s0, %s567
        $region80: #{tpu_custom_call.1} parent=75 // pred_fallthru
          _
      $region76: #{tpu_custom_call.1} parent=5 // pred_fallthru
        _
      %p569 = scmp.le.s32.totalorder 1, %s33
      %p570 = scmp.lt.s32.totalorder %s33, 3
      %p571 = pnand %p569, %p570
      %p572 = pneg %p571
      // Predicated region
      $region81: #{tpu_custom_call.1} parent=5 // pred_check
        _
      $region82: #{tpu_custom_call.1} parent=5 // pred_check_branch
        %574 = sbr.rel (%p571) target = $region84
      $region83: #{tpu_custom_call.1} parent=5 // pred_region
        %s575 = ssub.s32 %s33, 1
        // Predicated region
        $region85: #{tpu_custom_call.1} parent=83 // pred_check
          %p576 = pneg %p99
        $region86: #{tpu_custom_call.1} parent=83 // pred_check_branch
          %578 = sbr.rel (%p576) target = $region88
        $region87: #{tpu_custom_call.1} parent=83 // pred_region
          %579 = dma.done [#allocation3], 128
        $region88: #{tpu_custom_call.1} parent=83 // pred_fallthru
          _
        // Predicated region
        $region89: #{tpu_custom_call.1} parent=83 // pred_check
          %p580 = pneg %p204
        $region90: #{tpu_custom_call.1} parent=83 // pred_check_branch
          %582 = sbr.rel (%p580) target = $region92
        $region91: #{tpu_custom_call.1} parent=83 // pred_region
          %583 = dma.done [#allocation6], 256
        $region92: #{tpu_custom_call.1} parent=83 // pred_fallthru
          _
        // Predicated region
        $region93: #{tpu_custom_call.1} parent=83 // pred_check
          %p584 = pneg %p225
        $region94: #{tpu_custom_call.1} parent=83 // pred_check_branch
          %586 = sbr.rel (%p584) target = $region96
        $region95: #{tpu_custom_call.1} parent=83 // pred_region
          %587 = dma.done [#allocation6], 16
        $region96: #{tpu_custom_call.1} parent=83 // pred_fallthru
          _
        // Predicated region
        $region97: #{tpu_custom_call.1} parent=83 // pred_check
          %p588 = pneg %p246
        $region98: #{tpu_custom_call.1} parent=83 // pred_check_branch
          %590 = sbr.rel (%p588) target = $region100
        $region99: #{tpu_custom_call.1} parent=83 // pred_region
          %591 = dma.done [#allocation9], 256
        $region100: #{tpu_custom_call.1} parent=83 // pred_fallthru
          _
        // Predicated region
        $region101: #{tpu_custom_call.1} parent=83 // pred_check
          %p592 = pneg %p267
        $region102: #{tpu_custom_call.1} parent=83 // pred_check_branch
          %594 = sbr.rel (%p592) target = $region104
        $region103: #{tpu_custom_call.1} parent=83 // pred_region
          %595 = dma.done [#allocation9], 16
        $region104: #{tpu_custom_call.1} parent=83 // pred_fallthru
          _
        %p596 = scmp.lt.s32.totalorder %s42, 1
        %s597 = scalar_select %p596, %s42, 1
        %p598 = scmp.lt.s32.totalorder %s43, 0
        %s599 = scalar_select %p598, %s43, 0
        %s600 = sadd.s32 %s599, %s597
        %s601 = smul.addr %s600, 8
        %s602 = scalar_lea.vmem %s0, %s601
        %p603 = pneg %p73
        %p604 = pneg %p70
        %p605 = pneg %p99
        %p606 = pneg %p96
        %p607 = pneg %p120
        %p608 = pneg %p117
        %p609 = pneg %p141
        %p610 = pneg %p138
        %p611 = pneg %p162
        %p612 = pneg %p159
        %p613 = pneg %p183
        %p614 = pneg %p180
        %p615 = pneg %p204
        %p616 = pneg %p201
        %p617 = pneg %p225
        %p618 = pneg %p222
        %p619 = pneg %p246
        %p620 = pneg %p243
        %p621 = pneg %p267
        %p622 = pneg %p264
        %p623 = pneg %p288
        %p624 = pneg %p285
        %p625 = pneg %p309
        %p626 = pneg %p306
        %p627 = pneg %p330
        %p628 = pneg %p327
        %p629 = pneg %p351
        %p630 = pneg %p348
        %p631 = pneg %p372
        %p632 = pneg %p369
        %p633 = pneg %p393
        %p634 = pneg %p390
        %p635 = pneg %p421
        %p636 = pneg %p418
        %s637 = sand.u32 %s408, 1
        %s638 = scalar_lea.sflag [#allocation4], %s637
        %s639 = sand.u32 %s408, 1
        %s640 = smul.addr %s639, 8
        %s641 = scalar_lea.vmem [#allocation11], %s640
        %p642 = pneg %p449
        %p643 = pneg %p446
        %s644 = sand.u32 %s436, 1
        %s645 = scalar_lea.sflag [#allocation13], %s644
        %s646 = sand.u32 %s436, 1
        %s647 = smul.addr %s646, 8
        %s648 = scalar_lea.vmem [#allocation12], %s647
        %p649 = scmp.lt.s32.totalorder %s42, 1
        %s650 = scalar_select %p649, %s42, 1
        %p651 = scmp.lt.s32.totalorder %s43, 0
        %s652 = scalar_select %p651, %s43, 0
        %s653 = sadd.s32 %s652, %s650
        %s654 = smul.addr %s653, 8
        %s655 = scalar_lea.vmem %s0, %s654
        %v657 = vld [vmem:[%s655] sm:$0xff]
        %v658 = vpack.c.bf16 %v657, %v657
        %v659 = vld [vmem:[#allocation2] sm:$0xff]
        %v660 = vld [vmem:[%s2] sm:$0xf]
        %v661 = vld [vmem:[%s2 + $0x4] sm:$0xf]
        %v662 = vld [vmem:[%s2 + $0x8] sm:$0xf]
        %v663 = vld [vmem:[%s2 + $0xc] sm:$0xf]
        %v664 = vld [vmem:[%s3] sm:$0x1]
        %v666 = vlaneseq
        %v667 = vshrl.u32 %v666, 7
        %v668 = vsub.s32 0, %v667
        %v669 = vrot.slane %v664, %v668
        %v675 = vunpack.c.l.b16 %v660
        %v676 = vunpack.c.l.b16 %v661
        %v677 = vunpack.c.l.b16 %v662
        %v678 = vunpack.c.l.b16 %v663
        %v679 = vpack.c.b16 %v676, %v675
        %v680 = vpack.c.b16 %v678, %v677
        %vm683 = vcmask 261120
        %v685 = vsel %vm683, %v658, 0
        %687 = vmatprep.subr.bf16.mxu0 0
        %688 = vmatpush1.bf16.msra.mxu0 %v679
        %689 = vmatprep.subr.bf16.mxu0 0
        %690 = vmatpush1.bf16.msra.mxu0 %v680
        %691 = vmatprep.subr.bf16.mxu0 0
        %692 = vmatpush1.bf16.msra.mxu0 0
        %693 = vmatprep.subr.bf16.mxu0 0
        %694 = vmatpush1.bf16.msra.mxu0 0
        %695 = vmatprep.subr.bf16.mxu0 0
        %696 = vmatpush1.bf16.msra.mxu0 0
        %697 = vmatprep.subr.bf16.mxu0 0
        %698 = vmatpush1.bf16.msra.mxu0 0
        %699 = vmatprep.subr.bf16.mxu0 0
        %700 = vmatpush1.bf16.msra.mxu0 0
        %701 = vmatprep.subr.bf16.mxu0 0
        %702 = vmatpush1.bf16.msra.mxu0 0
        %703 = vmatprep.subr.bf16.mxu0 0
        %704 = vmatpush1.bf16.msra.mxu0 0
        %705 = vmatprep.subr.bf16.mxu0 0
        %706 = vmatpush1.bf16.msra.mxu0 0
        %707 = vmatprep.subr.bf16.mxu0 0
        %708 = vmatpush1.bf16.msra.mxu0 0
        %709 = vmatprep.subr.bf16.mxu0 0
        %710 = vmatpush1.bf16.msra.mxu0 0
        %711 = vmatprep.subr.bf16.mxu0 0
        %712 = vmatpush1.bf16.msra.mxu0 0
        %713 = vmatprep.subr.bf16.mxu0 0
        %714 = vmatpush1.bf16.msra.mxu0 0
        %715 = vmatprep.subr.bf16.mxu0 0
        %716 = vmatpush1.bf16.msra.mxu0 0
        %717 = vmatprep.subr.bf16.mxu0 0
        %718 = vmatpush1.bf16.msra.mxu0 0
        %719 = vmatprep.mubr.bf16.mxu0 0
        %720 = vmatmul.mubr.bf16.gmra.mrb[0].mxu0 %v685
        %v721 = vpop.f32.mrb[0].mxu0
        %v722 = vadd.f32 %v669, %v721
        %v723 = vpop.f32.mrb[0].mxu0
        %v724 = vpop.f32.mrb[0].mxu0
        %v725 = vpop.f32.mrb[0].mxu0
        %726 = vdwg.mxu0
        %v727 = vld [vmem:[%s4] sm:$0xf]
        %v728 = vld [vmem:[%s4 + $0x4] sm:$0xf]
        %v729 = vld [vmem:[%s4 + $0x8] sm:$0xf]
        %v730 = vld [vmem:[%s4 + $0xc] sm:$0xf]
        %v731 = vld [vmem:[%s5] sm:$0x1]
        %v733 = vlaneseq
        %v734 = vshrl.u32 %v733, 7
        %v735 = vsub.s32 0, %v734
        %v736 = vrot.slane %v731, %v735
        %v742 = vunpack.c.l.b16 %v727
        %v743 = vunpack.c.l.b16 %v728
        %v744 = vunpack.c.l.b16 %v729
        %v745 = vunpack.c.l.b16 %v730
        %v746 = vpack.c.b16 %v743, %v742
        %v747 = vpack.c.b16 %v745, %v744
        %750 = vmatprep.subr.bf16.mxu0 0
        %751 = vmatpush1.bf16.msra.mxu0 %v746
        %752 = vmatprep.subr.bf16.mxu0 0
        %753 = vmatpush1.bf16.msra.mxu0 %v747
        %754 = vmatprep.subr.bf16.mxu0 0
        %755 = vmatpush1.bf16.msra.mxu0 0
        %756 = vmatprep.subr.bf16.mxu0 0
        %757 = vmatpush1.bf16.msra.mxu0 0
        %758 = vmatprep.subr.bf16.mxu0 0
        %759 = vmatpush1.bf16.msra.mxu0 0
        %760 = vmatprep.subr.bf16.mxu0 0
        %761 = vmatpush1.bf16.msra.mxu0 0
        %762 = vmatprep.subr.bf16.mxu0 0
        %763 = vmatpush1.bf16.msra.mxu0 0
        %764 = vmatprep.subr.bf16.mxu0 0
        %765 = vmatpush1.bf16.msra.mxu0 0
        %766 = vmatprep.subr.bf16.mxu0 0
        %767 = vmatpush1.bf16.msra.mxu0 0
        %768 = vmatprep.subr.bf16.mxu0 0
        %769 = vmatpush1.bf16.msra.mxu0 0
        %770 = vmatprep.subr.bf16.mxu0 0
        %771 = vmatpush1.bf16.msra.mxu0 0
        %772 = vmatprep.subr.bf16.mxu0 0
        %773 = vmatpush1.bf16.msra.mxu0 0
        %774 = vmatprep.subr.bf16.mxu0 0
        %775 = vmatpush1.bf16.msra.mxu0 0
        %776 = vmatprep.subr.bf16.mxu0 0
        %777 = vmatpush1.bf16.msra.mxu0 0
        %778 = vmatprep.subr.bf16.mxu0 0
        %779 = vmatpush1.bf16.msra.mxu0 0
        %780 = vmatprep.subr.bf16.mxu0 0
        %781 = vmatpush1.bf16.msra.mxu0 0
        %782 = vmatprep.mubr.bf16.mxu0 0
        %783 = vmatmul.mubr.bf16.gmra.mrb[0].mxu0 %v685
        %v784 = vpop.f32.mrb[0].mxu0
        %v785 = vadd.f32 %v736, %v784
        %v786 = vpop.f32.mrb[0].mxu0
        %v787 = vpop.f32.mrb[0].mxu0
        %v788 = vpop.f32.mrb[0].mxu0
        %789 = vdwg.mxu0
        %v790 = vld [vmem:[#allocation5] sm:$0xf]
        %v791 = vld [vmem:[#allocation5 + $0x4] sm:$0xf]
        %v792 = vld [vmem:[#allocation5 + $0x8] sm:$0xf]
        %v793 = vld [vmem:[#allocation5 + $0xc] sm:$0xf]
        %v794 = vld [vmem:[#allocation7] sm:$0x1]
        %v796 = vlaneseq
        %v797 = vshrl.u32 %v796, 7
        %v798 = vsub.s32 0, %v797
        %v799 = vrot.slane %v794, %v798
        %v805 = vunpack.c.l.b16 %v790
        %v806 = vunpack.c.l.b16 %v791
        %v807 = vunpack.c.l.b16 %v792
        %v808 = vunpack.c.l.b16 %v793
        %v809 = vpack.c.b16 %v806, %v805
        %v810 = vpack.c.b16 %v808, %v807
        %813 = vmatprep.subr.bf16.mxu0 0
        %814 = vmatpush1.bf16.msra.mxu0 %v809
        %815 = vmatprep.subr.bf16.mxu0 0
        %816 = vmatpush1.bf16.msra.mxu0 %v810
        %817 = vmatprep.subr.bf16.mxu0 0
        %818 = vmatpush1.bf16.msra.mxu0 0
        %819 = vmatprep.subr.bf16.mxu0 0
        %820 = vmatpush1.bf16.msra.mxu0 0
        %821 = vmatprep.subr.bf16.mxu0 0
        %822 = vmatpush1.bf16.msra.mxu0 0
        %823 = vmatprep.subr.bf16.mxu0 0
        %824 = vmatpush1.bf16.msra.mxu0 0
        %825 = vmatprep.subr.bf16.mxu0 0
        %826 = vmatpush1.bf16.msra.mxu0 0
        %827 = vmatprep.subr.bf16.mxu0 0
        %828 = vmatpush1.bf16.msra.mxu0 0
        %829 = vmatprep.subr.bf16.mxu0 0
        %830 = vmatpush1.bf16.msra.mxu0 0
        %831 = vmatprep.subr.bf16.mxu0 0
        %832 = vmatpush1.bf16.msra.mxu0 0
        %833 = vmatprep.subr.bf16.mxu0 0
        %834 = vmatpush1.bf16.msra.mxu0 0
        %835 = vmatprep.subr.bf16.mxu0 0
        %836 = vmatpush1.bf16.msra.mxu0 0
        %837 = vmatprep.subr.bf16.mxu0 0
        %838 = vmatpush1.bf16.msra.mxu0 0
        %839 = vmatprep.subr.bf16.mxu0 0
        %840 = vmatpush1.bf16.msra.mxu0 0
        %841 = vmatprep.subr.bf16.mxu0 0
        %842 = vmatpush1.bf16.msra.mxu0 0
        %843 = vmatprep.subr.bf16.mxu0 0
        %844 = vmatpush1.bf16.msra.mxu0 0
        %845 = vmatprep.mubr.bf16.mxu0 0
        %846 = vmatmul.mubr.bf16.gmra.mrb[0].mxu0 %v685
        %v847 = vpop.f32.mrb[0].mxu0
        %v848 = vadd.f32 %v799, %v847
        %v849 = vpop.f32.mrb[0].mxu0
        %v850 = vpop.f32.mrb[0].mxu0
        %v851 = vpop.f32.mrb[0].mxu0
        %852 = vdwg.mxu0
        %v853 = vpack.c.bf16 %v722, %v722
        %v854 = vpack.c.bf16 %v785, %v785
        %v855 = vpack.c.bf16 %v848, %v848
        %vm856 = vcmask 130048
        %v858 = vsel %vm856, %v853, 0
        %v861 = vsel %vm856, %v854, 0
        %863 = vmatprep.subr.bf16.mxu0 0
        %864 = vmatpush1.bf16.xpose.msra.mxu0 %v861
        %865 = vmatprep.subr.bf16.mxu0 0
        %866 = vmatpush1.bf16.xpose.msra.mxu0 0
        %867 = vmatprep.subr.bf16.mxu0 0
        %868 = vmatpush1.bf16.xpose.msra.mxu0 0
        %869 = vmatprep.subr.bf16.mxu0 0
        %870 = vmatpush1.bf16.xpose.msra.mxu0 0
        %871 = vmatprep.subr.bf16.mxu0 0
        %872 = vmatpush1.bf16.xpose.msra.mxu0 0
        %873 = vmatprep.subr.bf16.mxu0 0
        %874 = vmatpush1.bf16.xpose.msra.mxu0 0
        %875 = vmatprep.subr.bf16.mxu0 0
        %876 = vmatpush1.bf16.xpose.msra.mxu0 0
        %877 = vmatprep.subr.bf16.mxu0 0
        %878 = vmatpush1.bf16.xpose.msra.mxu0 0
        %879 = vmatprep.subr.bf16.mxu0 0
        %880 = vmatpush1.bf16.xpose.msra.mxu0 0
        %881 = vmatprep.subr.bf16.mxu0 0
        %882 = vmatpush1.bf16.xpose.msra.mxu0 0
        %883 = vmatprep.subr.bf16.mxu0 0
        %884 = vmatpush1.bf16.xpose.msra.mxu0 0
        %885 = vmatprep.subr.bf16.mxu0 0
        %886 = vmatpush1.bf16.xpose.msra.mxu0 0
        %887 = vmatprep.subr.bf16.mxu0 0
        %888 = vmatpush1.bf16.xpose.msra.mxu0 0
        %889 = vmatprep.subr.bf16.mxu0 0
        %890 = vmatpush1.bf16.xpose.msra.mxu0 0
        %891 = vmatprep.subr.bf16.mxu0 0
        %892 = vmatpush1.bf16.xpose.msra.mxu0 0
        %893 = vmatprep.subr.bf16.mxu0 0
        %894 = vmatpush1.bf16.xpose.msra.mxu0 0
        %895 = vmatprep.mubr.bf16.mxu0 0
        %896 = vmatmul.mubr.bf16.gmra.mrb[0].mxu0 %v858
        %v897 = vpop.f32.mrb[0].mxu0
        %v898 = vadd.f32 %v659, %v897
        %v899 = vpop.f32.mrb[0].mxu0
        %v900 = vpop.f32.mrb[0].mxu0
        %v901 = vpop.f32.mrb[0].mxu0
        %902 = vdwg.mxu0
        %vm903 = vcmask 64512
        %v904 = vsel %vm903, %v898, -inf
        %905 = vmax.xlane.f32.xlu0 %v904
        %v906 = vpop.xlane.xlu0 %905
        %v907 = vsub.f32 %v898, %v906
        %v908 = vmul.f32 %v907, 1.442695
        %v909 = vpow.pop %v908
        %v910 = vsel %vm903, %v909, 0.0
        %911 = vadd.xlane.f32.xlu0 %v910
        %v912 = vpop.xlane.xlu0 %911
        %v913 = vrcp.pop %v912
        %v914 = vmul.f32 %v909, %v913
        %v915 = vadd.f32 %v914, 0.0
        %v916 = vpack.c.bf16 %v914, %v914
        %v918 = vsel %vm903, %v916, 0
        %vm920 = vcmask 1043456
        %v922 = vsel %vm920, %v855, 0
        %924 = vmatprep.subr.bf16.mxu0 0
        %925 = vmatpush1.bf16.msra.mxu0 %v922
        %926 = vmatprep.subr.bf16.mxu0 0
        %927 = vmatpush1.bf16.msra.mxu0 0
        %928 = vmatprep.subr.bf16.mxu0 0
        %929 = vmatpush1.bf16.msra.mxu0 0
        %930 = vmatprep.subr.bf16.mxu0 0
        %931 = vmatpush1.bf16.msra.mxu0 0
        %932 = vmatprep.subr.bf16.mxu0 0
        %933 = vmatpush1.bf16.msra.mxu0 0
        %934 = vmatprep.subr.bf16.mxu0 0
        %935 = vmatpush1.bf16.msra.mxu0 0
        %936 = vmatprep.subr.bf16.mxu0 0
        %937 = vmatpush1.bf16.msra.mxu0 0
        %938 = vmatprep.subr.bf16.mxu0 0
        %939 = vmatpush1.bf16.msra.mxu0 0
        %940 = vmatprep.subr.bf16.mxu0 0
        %941 = vmatpush1.bf16.msra.mxu0 0
        %942 = vmatprep.subr.bf16.mxu0 0
        %943 = vmatpush1.bf16.msra.mxu0 0
        %944 = vmatprep.subr.bf16.mxu0 0
        %945 = vmatpush1.bf16.msra.mxu0 0
        %946 = vmatprep.subr.bf16.mxu0 0
        %947 = vmatpush1.bf16.msra.mxu0 0
        %948 = vmatprep.subr.bf16.mxu0 0
        %949 = vmatpush1.bf16.msra.mxu0 0
        %950 = vmatprep.subr.bf16.mxu0 0
        %951 = vmatpush1.bf16.msra.mxu0 0
        %952 = vmatprep.subr.bf16.mxu0 0
        %953 = vmatpush1.bf16.msra.mxu0 0
        %954 = vmatprep.subr.bf16.mxu0 0
        %955 = vmatpush1.bf16.msra.mxu0 0
        %956 = vmatprep.mubr.bf16.mxu0 0
        %957 = vmatmul.mubr.bf16.gmra.mrb[0].mxu0 %v918
        %v958 = vpop.f32.mrb[0].mxu0
        %v959 = vadd.f32 0.0, %v958
        %v960 = vpop.f32.mrb[0].mxu0
        %v961 = vpop.f32.mrb[0].mxu0
        %v962 = vpop.f32.mrb[0].mxu0
        %963 = vdwg.mxu0
        %v964 = vpack.c.bf16 %v959, %v959
        %v965 = vld [vmem:[#allocation8] sm:$0xf]
        %v966 = vld [vmem:[#allocation8 + $0x4] sm:$0xf]
        %968 = vrot.lane.b32.xlu0 %v853, 112
        %v969 = vpop.permute.xlu0 %968
        %971 = vrot.lane.b32.xlu0 %v854, 112
        %v972 = vpop.permute.xlu0 %971
        %v974 = vsel %vm856, %v969, 0
        %v977 = vsel %vm856, %v972, 0
        %979 = vmatprep.subr.bf16.mxu0 0
        %980 = vmatpush1.bf16.xpose.msra.mxu0 %v977
        %981 = vmatprep.subr.bf16.mxu0 0
        %982 = vmatpush1.bf16.xpose.msra.mxu0 0
        %983 = vmatprep.subr.bf16.mxu0 0
        %984 = vmatpush1.bf16.xpose.msra.mxu0 0
        %985 = vmatprep.subr.bf16.mxu0 0
        %986 = vmatpush1.bf16.xpose.msra.mxu0 0
        %987 = vmatprep.subr.bf16.mxu0 0
        %988 = vmatpush1.bf16.xpose.msra.mxu0 0
        %989 = vmatprep.subr.bf16.mxu0 0
        %990 = vmatpush1.bf16.xpose.msra.mxu0 0
        %991 = vmatprep.subr.bf16.mxu0 0
        %992 = vmatpush1.bf16.xpose.msra.mxu0 0
        %993 = vmatprep.subr.bf16.mxu0 0
        %994 = vmatpush1.bf16.xpose.msra.mxu0 0
        %995 = vmatprep.subr.bf16.mxu0 0
        %996 = vmatpush1.bf16.xpose.msra.mxu0 0
        %997 = vmatprep.subr.bf16.mxu0 0
        %998 = vmatpush1.bf16.xpose.msra.mxu0 0
        %999 = vmatprep.subr.bf16.mxu0 0
        %1000 = vmatpush1.bf16.xpose.msra.mxu0 0
        %1001 = vmatprep.subr.bf16.mxu0 0
        %1002 = vmatpush1.bf16.xpose.msra.mxu0 0
        %1003 = vmatprep.subr.bf16.mxu0 0
        %1004 = vmatpush1.bf16.xpose.msra.mxu0 0
        %1005 = vmatprep.subr.bf16.mxu0 0
        %1006 = vmatpush1.bf16.xpose.msra.mxu0 0
        %1007 = vmatprep.subr.bf16.mxu0 0
        %1008 = vmatpush1.bf16.xpose.msra.mxu0 0
        %1009 = vmatprep.subr.bf16.mxu0 0
        %1010 = vmatpush1.bf16.xpose.msra.mxu0 0
        %1011 = vmatprep.mubr.bf16.mxu0 0
        %1012 = vmatmul.mubr.bf16.gmra.mrb[0].mxu0 %v974
        %v1013 = vpop.f32.mrb[0].mxu0
        %v1014 = vadd.f32 %v659, %v1013
        %v1015 = vpop.f32.mrb[0].mxu0
        %v1016 = vpop.f32.mrb[0].mxu0
        %v1017 = vpop.f32.mrb[0].mxu0
        %1018 = vdwg.mxu0
        %v1019 = vsel %vm903, %v1014, -inf
        %1020 = vmax.xlane.f32.xlu0 %v1019
        %v1021 = vpop.xlane.xlu0 %1020
        %v1022 = vsub.f32 %v1014, %v1021
        %v1023 = vmul.f32 %v1022, 1.442695
        %v1024 = vpow.pop %v1023
        %v1025 = vsel %vm903, %v1024, 0.0
        %1026 = vadd.xlane.f32.xlu0 %v1025
        %v1027 = vpop.xlane.xlu0 %1026
        %v1028 = vrcp.pop %v1027
        %v1029 = vmul.f32 %v1024, %v1028
        %v1030 = vadd.f32 %v915, %v1029
        %v1031 = vpack.c.bf16 %v1029, %v1029
        %1033 = vrot.lane.b32.xlu0 %v855, 112
        %v1034 = vpop.permute.xlu0 %1033
        %v1036 = vsel %vm903, %v1031, 0
        %v1039 = vsel %vm920, %v1034, 0
        %1041 = vmatprep.subr.bf16.mxu0 0
        %1042 = vmatpush1.bf16.msra.mxu0 %v1039
        %1043 = vmatprep.subr.bf16.mxu0 0
        %1044 = vmatpush1.bf16.msra.mxu0 0
        %1045 = vmatprep.subr.bf16.mxu0 0
        %1046 = vmatpush1.bf16.msra.mxu0 0
        %1047 = vmatprep.subr.bf16.mxu0 0
        %1048 = vmatpush1.bf16.msra.mxu0 0
        %1049 = vmatprep.subr.bf16.mxu0 0
        %1050 = vmatpush1.bf16.msra.mxu0 0
        %1051 = vmatprep.subr.bf16.mxu0 0
        %1052 = vmatpush1.bf16.msra.mxu0 0
        %1053 = vmatprep.subr.bf16.mxu0 0
        %1054 = vmatpush1.bf16.msra.mxu0 0
        %1055 = vmatprep.subr.bf16.mxu0 0
        %1056 = vmatpush1.bf16.msra.mxu0 0
        %1057 = vmatprep.subr.bf16.mxu0 0
        %1058 = vmatpush1.bf16.msra.mxu0 0
        %1059 = vmatprep.subr.bf16.mxu0 0
        %1060 = vmatpush1.bf16.msra.mxu0 0
        %1061 = vmatprep.subr.bf16.mxu0 0
        %1062 = vmatpush1.bf16.msra.mxu0 0
        %1063 = vmatprep.subr.bf16.mxu0 0
        %1064 = vmatpush1.bf16.msra.mxu0 0
        %1065 = vmatprep.subr.bf16.mxu0 0
        %1066 = vmatpush1.bf16.msra.mxu0 0
        %1067 = vmatprep.subr.bf16.mxu0 0
        %1068 = vmatpush1.bf16.msra.mxu0 0
        %1069 = vmatprep.subr.bf16.mxu0 0
        %1070 = vmatpush1.bf16.msra.mxu0 0
        %1071 = vmatprep.subr.bf16.mxu0 0
        %1072 = vmatpush1.bf16.msra.mxu0 0
        %1073 = vmatprep.mubr.bf16.mxu0 0
        %1074 = vmatmul.mubr.bf16.gmra.mrb[0].mxu0 %v1036
        %v1075 = vpop.f32.mrb[0].mxu0
        %v1076 = vadd.f32 0.0, %v1075
        %v1077 = vpop.f32.mrb[0].mxu0
        %v1078 = vpop.f32.mrb[0].mxu0
        %v1079 = vpop.f32.mrb[0].mxu0
        %1080 = vdwg.mxu0
        %v1081 = vpack.c.bf16 %v1076, %v1076
        %s1082 = scalar_lea.vmem [#allocation8], 8
        %v1083 = vld [vmem:[%s1082] sm:$0xf]
        %v1084 = vld [vmem:[%s1082 + $0x4] sm:$0xf]
        %v1087 = vunpack.c.l.b16 %v1083
        %v1088 = vunpack.c.l.b16 %v1084
        %v1089 = vpack.c.b16 %v1088, %v1087
        %v1092 = vsel %vm856, %v1081, 0
        %1094 = vmatprep.subr.bf16.mxu0 0
        %1095 = vmatpush1.bf16.msra.mxu0 %v1089
        %1096 = vmatprep.subr.bf16.mxu0 0
        %1097 = vmatpush1.bf16.msra.mxu0 0
        %1098 = vmatprep.subr.bf16.mxu0 0
        %1099 = vmatpush1.bf16.msra.mxu0 0
        %1100 = vmatprep.subr.bf16.mxu0 0
        %1101 = vmatpush1.bf16.msra.mxu0 0
        %1102 = vmatprep.subr.bf16.mxu0 0
        %1103 = vmatpush1.bf16.msra.mxu0 0
        %1104 = vmatprep.subr.bf16.mxu0 0
        %1105 = vmatpush1.bf16.msra.mxu0 0
        %1106 = vmatprep.subr.bf16.mxu0 0
        %1107 = vmatpush1.bf16.msra.mxu0 0
        %1108 = vmatprep.subr.bf16.mxu0 0
        %1109 = vmatpush1.bf16.msra.mxu0 0
        %1110 = vmatprep.subr.bf16.mxu0 0
        %1111 = vmatpush1.bf16.msra.mxu0 0
        %1112 = vmatprep.subr.bf16.mxu0 0
        %1113 = vmatpush1.bf16.msra.mxu0 0
        %1114 = vmatprep.subr.bf16.mxu0 0
        %1115 = vmatpush1.bf16.msra.mxu0 0
        %1116 = vmatprep.subr.bf16.mxu0 0
        %1117 = vmatpush1.bf16.msra.mxu0 0
        %1118 = vmatprep.subr.bf16.mxu0 0
        %1119 = vmatpush1.bf16.msra.mxu0 0
        %1120 = vmatprep.subr.bf16.mxu0 0
        %1121 = vmatpush1.bf16.msra.mxu0 0
        %1122 = vmatprep.subr.bf16.mxu0 0
        %1123 = vmatpush1.bf16.msra.mxu0 0
        %1124 = vmatprep.subr.bf16.mxu0 0
        %1125 = vmatpush1.bf16.msra.mxu0 0
        %1126 = vmatprep.mubr.bf16.mxu0 0
        %1127 = vmatmul.mubr.bf16.gmra.mrb[0].mxu0 %v1092
        %v1128 = vpop.f32.mrb[0].mxu0
        %v1129 = vadd.f32 0.0, %v1128
        %v1130 = vpop.f32.mrb[0].mxu0
        %v1131 = vpop.f32.mrb[0].mxu0
        %v1132 = vpop.f32.mrb[0].mxu0
        %1133 = vdwg.mxu0
        %v1136 = vunpack.c.l.b16 %v965
        %v1137 = vunpack.c.l.b16 %v966
        %v1138 = vpack.c.b16 %v1137, %v1136
        %v1141 = vsel %vm856, %v964, 0
        %1143 = vmatprep.subr.bf16.mxu0 0
        %1144 = vmatpush1.bf16.msra.mxu0 %v1138
        %1145 = vmatprep.subr.bf16.mxu0 0
        %1146 = vmatpush1.bf16.msra.mxu0 0
        %1147 = vmatprep.subr.bf16.mxu0 0
        %1148 = vmatpush1.bf16.msra.mxu0 0
        %1149 = vmatprep.subr.bf16.mxu0 0
        %1150 = vmatpush1.bf16.msra.mxu0 0
        %1151 = vmatprep.subr.bf16.mxu0 0
        %1152 = vmatpush1.bf16.msra.mxu0 0
        %1153 = vmatprep.subr.bf16.mxu0 0
        %1154 = vmatpush1.bf16.msra.mxu0 0
        %1155 = vmatprep.subr.bf16.mxu0 0
        %1156 = vmatpush1.bf16.msra.mxu0 0
        %1157 = vmatprep.subr.bf16.mxu0 0
        %1158 = vmatpush1.bf16.msra.mxu0 0
        %1159 = vmatprep.subr.bf16.mxu0 0
        %1160 = vmatpush1.bf16.msra.mxu0 0
        %1161 = vmatprep.subr.bf16.mxu0 0
        %1162 = vmatpush1.bf16.msra.mxu0 0
        %1163 = vmatprep.subr.bf16.mxu0 0
        %1164 = vmatpush1.bf16.msra.mxu0 0
        %1165 = vmatprep.subr.bf16.mxu0 0
        %1166 = vmatpush1.bf16.msra.mxu0 0
        %1167 = vmatprep.subr.bf16.mxu0 0
        %1168 = vmatpush1.bf16.msra.mxu0 0
        %1169 = vmatprep.subr.bf16.mxu0 0
        %1170 = vmatpush1.bf16.msra.mxu0 0
        %1171 = vmatprep.subr.bf16.mxu0 0
        %1172 = vmatpush1.bf16.msra.mxu0 0
        %1173 = vmatprep.subr.bf16.mxu0 0
        %1174 = vmatpush1.bf16.msra.mxu0 0
        %1175 = vmatprep.mubr.bf16.mxu0 0
        %1176 = vmatmul.mubr.bf16.gmra.mrb[0].mxu0 %v1141
        %v1177 = vpop.f32.mrb[0].mxu0
        %v1178 = vadd.f32 %v1129, %v1177
        %v1179 = vpop.f32.mrb[0].mxu0
        %v1180 = vpop.f32.mrb[0].mxu0
        %v1181 = vpop.f32.mrb[0].mxu0
        %1182 = vdwg.mxu0
        %v1183 = vld [vmem:[#allocation10] sm:$0x1]
        %v1185 = vlaneseq
        %v1186 = vshrl.u32 %v1185, 7
        %v1187 = vsub.s32 0, %v1186
        %v1188 = vrot.slane %v1183, %v1187
        %v1190 = vadd.f32 %v1178, %v1188
        %v1191 = vld [vmem:[%s14] sm:$0x1]
        %v1192 = vld [vmem:[%s15] sm:$0x1]
        %v1193 = vld [vmem:[%s655] sm:$0xff]
        %v1194 = vadd.f32 %v1190, %v1193
        %v1195 = vsel %vm683, %v1194, 0.0
        %1196 = vadd.xlane.f32.xlu0 %v1195
        %v1197 = vpop.xlane.xlu0 %1196
        %v1198 = vrcp.pop 32.0
        %v1199 = vmul.f32 %v1197, %v1198
        %v1200 = vsub.f32 %v1194, %v1199
        %v1201 = vmul.f32 %v1200, %v1200
        %v1202 = vsel %vm683, %v1201, 0.0
        %1203 = vadd.xlane.f32.xlu0 %v1202
        %v1204 = vpop.xlane.xlu0 %1203
        %v1205 = vmul.f32 %v1204, %v1198
        %v1206 = vadd.f32 %v1205, 1e-05
        %v1207 = vrsqrt.pop %v1206
        %v1208 = vmul.f32 %v1200, %v1207
        %v1210 = vlaneseq
        %v1211 = vshrl.u32 %v1210, 7
        %v1212 = vsub.s32 0, %v1211
        %v1213 = vrot.slane %v1191, %v1212
        %v1215 = vmul.f32 %v1208, %v1213
        %v1217 = vlaneseq
        %v1218 = vshrl.u32 %v1217, 7
        %v1219 = vsub.s32 0, %v1218
        %v1220 = vrot.slane %v1192, %v1219
        %v1222 = vadd.f32 %v1215, %v1220
        %v1223 = vpack.c.bf16 %v1222, %v1222
        %v1224 = vld [vmem:[%s10] sm:$0xf]
        %v1225 = vld [vmem:[%s10 + $0x4] sm:$0xf]
        %v1226 = vld [vmem:[%s10 + $0x8] sm:$0xf]
        %v1227 = vld [vmem:[%s10 + $0xc] sm:$0xf]
        %v1228 = vld [vmem:[%s11] sm:$0x1]
        %v1230 = vlaneseq
        %v1231 = vshrl.u32 %v1230, 7
        %v1232 = vsub.s32 0, %v1231
        %v1233 = vrot.slane %v1228, %v1232
        %v1239 = vunpack.c.l.b16 %v1224
        %v1240 = vunpack.c.l.b16 %v1225
        %v1241 = vunpack.c.l.b16 %v1226
        %v1242 = vunpack.c.l.b16 %v1227
        %v1243 = vpack.c.b16 %v1240, %v1239
        %v1244 = vpack.c.b16 %v1242, %v1241
        %v1248 = vsel %vm683, %v1223, 0
        %1250 = vmatprep.subr.bf16.mxu0 0
        %1251 = vmatpush1.bf16.msra.mxu0 %v1243
        %1252 = vmatprep.subr.bf16.mxu0 0
        %1253 = vmatpush1.bf16.msra.mxu0 %v1244
        %1254 = vmatprep.subr.bf16.mxu0 0
        %1255 = vmatpush1.bf16.msra.mxu0 0
        %1256 = vmatprep.subr.bf16.mxu0 0
        %1257 = vmatpush1.bf16.msra.mxu0 0
        %1258 = vmatprep.subr.bf16.mxu0 0
        %1259 = vmatpush1.bf16.msra.mxu0 0
        %1260 = vmatprep.subr.bf16.mxu0 0
        %1261 = vmatpush1.bf16.msra.mxu0 0
        %1262 = vmatprep.subr.bf16.mxu0 0
        %1263 = vmatpush1.bf16.msra.mxu0 0
        %1264 = vmatprep.subr.bf16.mxu0 0
        %1265 = vmatpush1.bf16.msra.mxu0 0
        %1266 = vmatprep.subr.bf16.mxu0 0
        %1267 = vmatpush1.bf16.msra.mxu0 0
        %1268 = vmatprep.subr.bf16.mxu0 0
        %1269 = vmatpush1.bf16.msra.mxu0 0
        %1270 = vmatprep.subr.bf16.mxu0 0
        %1271 = vmatpush1.bf16.msra.mxu0 0
        %1272 = vmatprep.subr.bf16.mxu0 0
        %1273 = vmatpush1.bf16.msra.mxu0 0
        %1274 = vmatprep.subr.bf16.mxu0 0
        %1275 = vmatpush1.bf16.msra.mxu0 0
        %1276 = vmatprep.subr.bf16.mxu0 0
        %1277 = vmatpush1.bf16.msra.mxu0 0
        %1278 = vmatprep.subr.bf16.mxu0 0
        %1279 = vmatpush1.bf16.msra.mxu0 0
        %1280 = vmatprep.subr.bf16.mxu0 0
        %1281 = vmatpush1.bf16.msra.mxu0 0
        %1282 = vmatprep.mubr.bf16.mxu0 0
        %1283 = vmatmul.mubr.bf16.gmra.mrb[0].mxu0 %v1248
        %v1284 = vpop.f32.mrb[0].mxu0
        %v1285 = vadd.f32 %v1233, %v1284
        %v1286 = vpop.f32.mrb[0].mxu0
        %v1287 = vpop.f32.mrb[0].mxu0
        %v1288 = vpop.f32.mrb[0].mxu0
        %1289 = vdwg.mxu0
        %v1290 = vmax.f32 %v1285, 0.0
        %v1291 = vpack.c.bf16 %v1290, %v1290
        %v1292 = vld [vmem:[%s12] sm:$0xf]
        %v1293 = vld [vmem:[%s12 + $0x4] sm:$0xf]
        %v1294 = vld [vmem:[%s12 + $0x8] sm:$0xf]
        %v1295 = vld [vmem:[%s12 + $0xc] sm:$0xf]
        %v1296 = vld [vmem:[%s12 + $0x10] sm:$0xf]
        %v1297 = vld [vmem:[%s12 + $0x14] sm:$0xf]
        %v1298 = vld [vmem:[%s12 + $0x18] sm:$0xf]
        %v1299 = vld [vmem:[%s12 + $0x1c] sm:$0xf]
        %v1300 = vld [vmem:[%s13] sm:$0x1]
        %v1302 = vlaneseq
        %v1303 = vshrl.u32 %v1302, 7
        %v1304 = vsub.s32 0, %v1303
        %v1305 = vrot.slane %v1300, %v1304
        %v1315 = vunpack.c.l.b16 %v1292
        %v1316 = vunpack.c.l.b16 %v1293
        %v1317 = vunpack.c.l.b16 %v1294
        %v1318 = vunpack.c.l.b16 %v1295
        %v1319 = vunpack.c.l.b16 %v1296
        %v1320 = vunpack.c.l.b16 %v1297
        %v1321 = vunpack.c.l.b16 %v1298
        %v1322 = vunpack.c.l.b16 %v1299
        %v1323 = vpack.c.b16 %v1316, %v1315
        %v1324 = vpack.c.b16 %v1318, %v1317
        %v1325 = vpack.c.b16 %v1320, %v1319
        %v1326 = vpack.c.b16 %v1322, %v1321
        %vm1331 = vcmask 523264
        %v1333 = vsel %vm1331, %v1291, 0
        %1335 = vmatprep.subr.bf16.mxu0 0
        %1336 = vmatpush1.bf16.msra.mxu0 %v1323
        %1337 = vmatprep.subr.bf16.mxu0 0
        %1338 = vmatpush1.bf16.msra.mxu0 %v1324
        %1339 = vmatprep.subr.bf16.mxu0 0
        %1340 = vmatpush1.bf16.msra.mxu0 %v1325
        %1341 = vmatprep.subr.bf16.mxu0 0
        %1342 = vmatpush1.bf16.msra.mxu0 %v1326
        %1343 = vmatprep.subr.bf16.mxu0 0
        %1344 = vmatpush1.bf16.msra.mxu0 0
        %1345 = vmatprep.subr.bf16.mxu0 0
        %1346 = vmatpush1.bf16.msra.mxu0 0
        %1347 = vmatprep.subr.bf16.mxu0 0
        %1348 = vmatpush1.bf16.msra.mxu0 0
        %1349 = vmatprep.subr.bf16.mxu0 0
        %1350 = vmatpush1.bf16.msra.mxu0 0
        %1351 = vmatprep.subr.bf16.mxu0 0
        %1352 = vmatpush1.bf16.msra.mxu0 0
        %1353 = vmatprep.subr.bf16.mxu0 0
        %1354 = vmatpush1.bf16.msra.mxu0 0
        %1355 = vmatprep.subr.bf16.mxu0 0
        %1356 = vmatpush1.bf16.msra.mxu0 0
        %1357 = vmatprep.subr.bf16.mxu0 0
        %1358 = vmatpush1.bf16.msra.mxu0 0
        %1359 = vmatprep.subr.bf16.mxu0 0
        %1360 = vmatpush1.bf16.msra.mxu0 0
        %1361 = vmatprep.subr.bf16.mxu0 0
        %1362 = vmatpush1.bf16.msra.mxu0 0
        %1363 = vmatprep.subr.bf16.mxu0 0
        %1364 = vmatpush1.bf16.msra.mxu0 0
        %1365 = vmatprep.subr.bf16.mxu0 0
        %1366 = vmatpush1.bf16.msra.mxu0 0
        %1367 = vmatprep.mubr.bf16.mxu0 0
        %1368 = vmatmul.mubr.bf16.gmra.mrb[0].mxu0 %v1333
        %v1369 = vpop.f32.mrb[0].mxu0
        %v1370 = vadd.f32 %v1305, %v1369
        %v1371 = vpop.f32.mrb[0].mxu0
        %v1372 = vpop.f32.mrb[0].mxu0
        %v1373 = vpop.f32.mrb[0].mxu0
        %1374 = vdwg.mxu0
        %v1375 = vadd.f32 %v1370, %v1193
        %v1376 = vsel %vm683, %v1375, 0.0
        %1377 = vadd.xlane.f32.xlu0 %v1376
        %v1378 = vpop.xlane.xlu0 %1377
        %v1379 = vmul.f32 %v1378, %v1198
        %v1380 = vsub.f32 %v1375, %v1379
        %v1381 = vmul.f32 %v1380, %v1380
        %v1382 = vsel %vm683, %v1381, 0.0
        %1383 = vadd.xlane.f32.xlu0 %v1382
        %v1384 = vpop.xlane.xlu0 %1383
        %v1385 = vmul.f32 %v1384, %v1198
        %v1386 = vadd.f32 %v1385, 1e-05
        %v1387 = vrsqrt.pop %v1386
        %v1388 = vmul.f32 %v1380, %v1387
        %v1389 = vmul.f32 %v1388, %v1213
        %v1390 = vadd.f32 %v1389, %v1220
        %1391 = vst.msk [vmem:[%s641] sm:$0xff] %vm683, %v1390
        %v1392 = vmul.f32 %v1030, 0.5
        %1393 = vst.msk [vmem:[%s648] sm:$0xff] %vm903, %v1392
        %s1394 = sand.u32 %s408, 1
        %s1395 = scalar_lea.sflag [#allocation4], %s1394
        %s1396 = sand.u32 %s408, 1
        %s1397 = smul.addr %s1396, 8
        %s1398 = scalar_lea.vmem [#allocation11], %s1397
        %s1399 = sand.u32 %s436, 1
        %s1400 = scalar_lea.sflag [#allocation13], %s1399
        %s1401 = sand.u32 %s436, 1
        %s1402 = smul.addr %s1401, 8
        %s1403 = scalar_lea.vmem [#allocation12], %s1402
        // Predicated region
        $region105: #{tpu_custom_call.1} parent=83 // pred_check
          %p1404 = pneg %p418
        $region106: #{tpu_custom_call.1} parent=83 // pred_check_branch
          %1406 = sbr.rel (%p1404) target = $region108
        $region107: #{tpu_custom_call.1} parent=83 // pred_region
          %s1408 = ssub.s32 128, 128
          %1409 = vsyncadd %s1395, %s1408
          %s1410 = sadd.s32 %s43, %s42
          %s1411 = smul.addr %s1410, 128
          %s1412 = scalar_lea.hbm %s16, %s1411
          %s1414 = sshll.u32 %s1398, 4
          %s1415 = int_to_ptr.vmem [resolvable:$true] %s1414
          %1417 = dma.vmem_to_hbm [thread:$0]  %s1415, 128, %s1412, %s1395
        $region108: #{tpu_custom_call.1} parent=83 // pred_fallthru
          _
        // Predicated region
        $region109: #{tpu_custom_call.1} parent=83 // pred_check
          %p1418 = pneg %p446
        $region110: #{tpu_custom_call.1} parent=83 // pred_check_branch
          %1420 = sbr.rel (%p1418) target = $region112
        $region111: #{tpu_custom_call.1} parent=83 // pred_region
          %s1422 = ssub.s32 128, 128
          %1423 = vsyncadd %s1400, %s1422
          %s1424 = sadd.s32 %s43, %s42
          %s1425 = smul.addr %s1424, 128
          %s1426 = scalar_lea.hbm %s17, %s1425
          %s1428 = sshll.u32 %s1403, 4
          %s1429 = int_to_ptr.vmem [resolvable:$true] %s1428
          %1431 = dma.vmem_to_hbm [thread:$0]  %s1429, 128, %s1426, %s1400
        $region112: #{tpu_custom_call.1} parent=83 // pred_fallthru
          _
      $region84: #{tpu_custom_call.1} parent=5 // pred_fallthru
        _
      %p1432 = scmp.le.s32.totalorder 2, %s33
      // Predicated region
      $region113: #{tpu_custom_call.1} parent=5 // pred_check
        %p1433 = pneg %p1432
      $region114: #{tpu_custom_call.1} parent=5 // pred_check_branch
        %1435 = sbr.rel (%p1433) target = $region116
      $region115: #{tpu_custom_call.1} parent=5 // pred_region
        %s1436 = ssub.s32 %s33, 2
        // Predicated region
        $region117: #{tpu_custom_call.1} parent=115 // pred_check
          %p1437 = pneg %p424
        $region118: #{tpu_custom_call.1} parent=115 // pred_check_branch
          %1439 = sbr.rel (%p1437) target = $region120
        $region119: #{tpu_custom_call.1} parent=115 // pred_region
          %s1440 = sand.u32 %s409, 1
          %s1441 = scalar_lea.sflag [#allocation4], %s1440
          %s1442 = sand.u32 %s409, 1
          %s1443 = smul.addr %s1442, 8
          %s1444 = scalar_lea.vmem [#allocation11], %s1443
          %1445 = dma.done %s1441, 128
        $region120: #{tpu_custom_call.1} parent=115 // pred_fallthru
          _
        // Predicated region
        $region121: #{tpu_custom_call.1} parent=115 // pred_check
          %p1446 = pneg %p452
        $region122: #{tpu_custom_call.1} parent=115 // pred_check_branch
          %1448 = sbr.rel (%p1446) target = $region124
        $region123: #{tpu_custom_call.1} parent=115 // pred_region
          %s1449 = sand.u32 %s437, 1
          %s1450 = scalar_lea.sflag [#allocation13], %s1449
          %s1451 = sand.u32 %s437, 1
          %s1452 = smul.addr %s1451, 8
          %s1453 = scalar_lea.vmem [#allocation12], %s1452
          %1454 = dma.done %s1450, 128
        $region124: #{tpu_custom_call.1} parent=115 // pred_fallthru
          _
      $region116: #{tpu_custom_call.1} parent=5 // pred_fallthru
        _
    $region6: #{tpu_custom_call.1} parent=1 // loop_footer
      %s37 = sadd.s32 1, %s33
    $region7: #{tpu_custom_call.1} parent=1 // loop_footer_branch
      %32 = sbr.rel target = $region3
    $region8: #{tpu_custom_call.1} parent=1 // loop_exit
      _
    %1455 = vsyncpa [#allocation3], 1
    %s1456 = scalar_lea.sflag [#allocation3], 1
    %1457 = vsyncpa %s1456, 1
    %1458 = vsyncpa [#allocation6], 1
    %1459 = vsyncpa [#allocation9], 1
    %1460 = vsyncpa [#allocation4], 1
    %s1461 = scalar_lea.sflag [#allocation4], 1
    %1462 = vsyncpa %s1461, 1
    %1463 = vsyncpa [#allocation13], 1
    %s1464 = scalar_lea.sflag [#allocation13], 1
    %1465 = vsyncpa %s1464, 1

// kernel: tpu_custom_call.1
$region0: #{tpu_custom_call.1}
  #allocation0 [shape = 'u32[]', space=smem, size = 0x4, offset = 0x4, fixed_abs, tag = 'smem constant byte address 0x4 - core index']
  #allocation1 [shape = 'u32[144,128]{1,0:T(1,128)}', space=vmem, size = 0x12000, scoped, tag = 'internal scratch']
  %s0 = inlined_call_operand.vmem [shape: f32[2,8,32], index: 0, kind: input, shape index: {}]
  %s1 = inlined_call_operand.hbm [shape: f32[8,8], index: 1, kind: input, shape index: {}]
  %s2 = inlined_call_operand.vmem [shape: bf16[1,32,32], index: 2, kind: input, shape index: {}]
  %s3 = inlined_call_operand.vmem [shape: f32[1,1,32], index: 3, kind: input, shape index: {}]
  %s4 = inlined_call_operand.vmem [shape: bf16[1,32,32], index: 4, kind: input, shape index: {}]
  %s5 = inlined_call_operand.vmem [shape: f32[1,1,32], index: 5, kind: input, shape index: {}]
  %s6 = inlined_call_operand.hbm [shape: bf16[1,32,32], index: 6, kind: input, shape index: {}]
  %s7 = inlined_call_operand.hbm [shape: f32[1,1,32], index: 7, kind: input, shape index: {}]
  %s8 = inlined_call_operand.hbm [shape: bf16[2,16,32], index: 8, kind: input, shape index: {}]
  %s9 = inlined_call_operand.hbm [shape: f32[1,32], index: 9, kind: input, shape index: {}]
  %s10 = inlined_call_operand.vmem [shape: bf16[32,64], index: 10, kind: input, shape index: {}]
  %s11 = inlined_call_operand.vmem [shape: f32[1,64], index: 11, kind: input, shape index: {}]
  %s12 = inlined_call_operand.vmem [shape: bf16[64,32], index: 12, kind: input, shape index: {}]
  %s13 = inlined_call_operand.vmem [shape: f32[1,32], index: 13, kind: input, shape index: {}]
  %s14 = inlined_call_operand.vmem [shape: f32[1,32], index: 14, kind: input, shape index: {}]
  %s15 = inlined_call_operand.vmem [shape: f32[1,32], index: 15, kind: input, shape index: {}]
  %s16 = inlined_call_operand.hbm [shape: f32[2,8,32], index: 16, kind: output, shape index: {0}]
  %s17 = inlined_call_operand.hbm [shape: f32[2,8,8], index: 17, kind: output, shape index: {1}]
  %18 = xla_tuple %s16, %s17
  %s19 = sld [smem:[#allocation0]]
  $region125: #{tpu_custom_call.1} parent=0
    _
  %s21 = ssub.s32 1, %s19
  %s22 = scalar_select 0, %s21, %s19
  $region1: #{tpu_custom_call.1} parent=0
    #allocation2 [shape = 'u8[4096]{0}', space=vmem, size = 0x1000, scoped, tag = 'input window, operand 1, single buffered']
    #allocation3 [shape = 's32[2]{0}', space=sflag, size = 0x8, scoped, tag = 'scoped memory for tpu_custom_call.1']
    #allocation4 [shape = 's32[2]{0}', space=sflag, size = 0x8, scoped, tag = 'scoped memory for tpu_custom_call.1']
    #allocation5 [shape = 'u8[8192]{0}', space=vmem, size = 0x2000, scoped, tag = 'input window, operand 6, single buffered']
    #allocation6 [shape = 's32[1]{0}', space=sflag, size = 0x4, scoped, tag = 'scoped memory for tpu_custom_call.1']
    #allocation7 [shape = 'u8[512]{0}', space=vmem, size = 0x400, scoped, tag = 'input window, operand 7, single buffered']
    #allocation8 [shape = 'u8[8192]{0}', space=vmem, size = 0x2000, scoped, tag = 'input window, operand 8, single buffered']
    #allocation9 [shape = 's32[1]{0}', space=sflag, size = 0x4, scoped, tag = 'scoped memory for tpu_custom_call.1']
    #allocation10 [shape = 'u8[512]{0}', space=vmem, size = 0x400, scoped, tag = 'input window, operand 9, single buffered']
    #allocation11 [shape = 'u8[8192]{0}', space=vmem, size = 0x2000, scoped, tag = 'output window, operand 0']
    #allocation12 [shape = 'u8[8192]{0}', space=vmem, size = 0x2000, scoped, tag = 'output window, operand 1']
    #allocation13 [shape = 's32[2]{0}', space=sflag, size = 0x8, scoped, tag = 'scoped memory for tpu_custom_call.1']
    %23 = vsyncpa [#allocation3], 0
    %24 = vsyncpa [#allocation6], 0
    %25 = vsyncpa [#allocation9], 0
    %26 = vsyncpa [#allocation4], 0
    %s27 = scalar_lea.sflag [#allocation4], 1
    %28 = vsyncpa %s27, 0
    %29 = vsyncpa [#allocation13], 0
    %s30 = scalar_lea.sflag [#allocation13], 1
    %31 = vsyncpa %s30, 0
    loop: start=0, step=1, limit=4
    $region2: #{tpu_custom_call.1} parent=1 // loop_pre_header
      _
    $region3: #{tpu_custom_call.1} parent=1 // loop_header
      %s33 = sphi 0, %s37
      %p34 = scmp.ge.s32.totalorder %s33, 4
      %s40 = sphi 0, %s52
      %s41 = sphi 0, %s48
      %s42 = sphi 0, %s40
      %s43 = sphi 0, %s41
      %s44 = sphi 0, %s42
      %s45 = sphi 0, %s43
      %s57 = sphi 0, %s59
      %s60 = sphi 0, %s57
      %s61 = sphi 0, %s60
      %s77 = sphi 0, %s61
      %s83 = sphi 0, %s85
      %s86 = sphi 0, %s83
      %s87 = sphi 0, %s86
      %s103 = sphi 0, %s87
      %s107 = sphi 0, %s107
      %s109 = sphi 0, %s107
      %s110 = sphi 0, %s109
      %s124 = sphi 0, %s110
      %s128 = sphi 0, %s128
      %s130 = sphi 0, %s128
      %s131 = sphi 0, %s130
      %s145 = sphi 0, %s131
      %s149 = sphi 0, %s149
      %s151 = sphi 0, %s149
      %s152 = sphi 0, %s151
      %s166 = sphi 0, %s152
      %s170 = sphi 0, %s170
      %s172 = sphi 0, %s170
      %s173 = sphi 0, %s172
      %s187 = sphi 0, %s173
      %s191 = sphi 0, %s191
      %s193 = sphi 0, %s191
      %s194 = sphi 0, %s193
      %s208 = sphi 0, %s194
      %s212 = sphi 0, %s212
      %s214 = sphi 0, %s212
      %s215 = sphi 0, %s214
      %s229 = sphi 0, %s215
      %s233 = sphi 0, %s233
      %s235 = sphi 0, %s233
      %s236 = sphi 0, %s235
      %s250 = sphi 0, %s236
      %s254 = sphi 0, %s254
      %s256 = sphi 0, %s254
      %s257 = sphi 0, %s256
      %s271 = sphi 0, %s257
      %s275 = sphi 0, %s275
      %s277 = sphi 0, %s275
      %s278 = sphi 0, %s277
      %s292 = sphi 0, %s278
      %s296 = sphi 0, %s296
      %s298 = sphi 0, %s296
      %s299 = sphi 0, %s298
      %s313 = sphi 0, %s299
      %s317 = sphi 0, %s317
      %s319 = sphi 0, %s317
      %s320 = sphi 0, %s319
      %s334 = sphi 0, %s320
      %s338 = sphi 0, %s338
      %s340 = sphi 0, %s338
      %s341 = sphi 0, %s340
      %s355 = sphi 0, %s341
      %s359 = sphi 0, %s359
      %s361 = sphi 0, %s359
      %s362 = sphi 0, %s361
      %s376 = sphi 0, %s362
      %s380 = sphi 0, %s380
      %s382 = sphi 0, %s380
      %s383 = sphi 0, %s382
      %s397 = sphi 0, %s383
      %s405 = sphi 0, %s407
      %s408 = sphi 0, %s405
      %s409 = sphi 0, %s408
      %s425 = sphi 0, %s409
      %s433 = sphi 0, %s435
      %s436 = sphi 0, %s433
      %s437 = sphi 0, %s436
      %s453 = sphi 0, %s437
    $region4: #{tpu_custom_call.1} parent=1 // loop_header_branch
      %36 = sbr.rel (%p34) target = $region8
    $region5: #{tpu_custom_call.1} parent=1 // loop_body
      %s38 = ssub.s32 %s33, 1
      %s39 = ssub.s32 %s33, 2
      %s46 = sadd.s32 1, %s41
      %p47 = scmp.ge.s32.totalorder %s46, 1
      %s48 = scalar_select %p47, 0, %s46
      %s49 = sadd.s32 1, %s40
      %s50 = scalar_select %p47, %s49, %s40
      %p51 = scmp.ge.s32.totalorder %s50, 2
      %s52 = scalar_select %p51, 0, %s50
      %s53 = ssub.s32 %s40, %s52
      %s54 = ssub.s32 %s41, %s48
      %s55 = sor.u32 %s53, %s54
      %p56 = scmp.eq.s32.totalorder %s55, 0
      %s58 = sadd.s32 %s57, 1
      %s59 = scalar_select %p56, %s57, %s58
      %p62 = pneg %p56
      %p63 = scmp.eq.s32.totalorder %s33, 1
      %p64 = por %p62, %p63
      %p65 = scmp.ne.s32.totalorder %s57, %s60
      %p66 = scmp.eq.s32.totalorder %s33, 0
      %p67 = por %p65, %p66
      %p68 = scmp.ne.s32.totalorder %s57, %s60
      %p69 = scmp.eq.s32.totalorder %s38, 1
      %p70 = por %p68, %p69
      %p71 = scmp.ne.s32.totalorder %s60, %s61
      %p72 = scmp.eq.s32.totalorder %s38, 0
      %p73 = por %p71, %p72
      %p74 = scmp.ne.s32.totalorder %s60, %s61
      %p75 = scmp.eq.s32.totalorder %s39, 1
      %p76 = por %p74, %p75
      %p78 = scmp.ne.s32.totalorder %s61, %s77
      %p79 = scmp.eq.s32.totalorder %s39, 0
      %p80 = por %p78, %p79
      %s81 = ssub.s32 %s41, %s48
      %p82 = scmp.eq.s32.totalorder %s81, 0
      %s84 = sadd.s32 %s83, 1
      %s85 = scalar_select %p82, %s83, %s84
      %p88 = pneg %p82
      %p89 = scmp.eq.s32.totalorder %s33, 1
      %p90 = por %p88, %p89
      %p91 = scmp.ne.s32.totalorder %s83, %s86
      %p92 = scmp.eq.s32.totalorder %s33, 0
      %p93 = por %p91, %p92
      %p94 = scmp.ne.s32.totalorder %s83, %s86
      %p95 = scmp.eq.s32.totalorder %s38, 1
      %p96 = por %p94, %p95
      %p97 = scmp.ne.s32.totalorder %s86, %s87
      %p98 = scmp.eq.s32.totalorder %s38, 0
      %p99 = por %p97, %p98
      %p100 = scmp.ne.s32.totalorder %s86, %s87
      %p101 = scmp.eq.s32.totalorder %s39, 1
      %p102 = por %p100, %p101
      %p104 = scmp.ne.s32.totalorder %s87, %s103
      %p105 = scmp.eq.s32.totalorder %s39, 0
      %p106 = por %p104, %p105
      %s108 = sadd.s32 %s107, 1
      %p111 = scmp.eq.s32.totalorder %s33, 1
      %p112 = scmp.ne.s32.totalorder %s107, %s109
      %p113 = scmp.eq.s32.totalorder %s33, 0
      %p114 = por %p112, %p113
      %p115 = scmp.ne.s32.totalorder %s107, %s109
      %p116 = scmp.eq.s32.totalorder %s38, 1
      %p117 = por %p115, %p116
      %p118 = scmp.ne.s32.totalorder %s109, %s110
      %p119 = scmp.eq.s32.totalorder %s38, 0
      %p120 = por %p118, %p119
      %p121 = scmp.ne.s32.totalorder %s109, %s110
      %p122 = scmp.eq.s32.totalorder %s39, 1
      %p123 = por %p121, %p122
      %p125 = scmp.ne.s32.totalorder %s110, %s124
      %p126 = scmp.eq.s32.totalorder %s39, 0
      %p127 = por %p125, %p126
      %s129 = sadd.s32 %s128, 1
      %p132 = scmp.eq.s32.totalorder %s33, 1
      %p133 = scmp.ne.s32.totalorder %s128, %s130
      %p134 = scmp.eq.s32.totalorder %s33, 0
      %p135 = por %p133, %p134
      %p136 = scmp.ne.s32.totalorder %s128, %s130
      %p137 = scmp.eq.s32.totalorder %s38, 1
      %p138 = por %p136, %p137
      %p139 = scmp.ne.s32.totalorder %s130, %s131
      %p140 = scmp.eq.s32.totalorder %s38, 0
      %p141 = por %p139, %p140
      %p142 = scmp.ne.s32.totalorder %s130, %s131
      %p143 = scmp.eq.s32.totalorder %s39, 1
      %p144 = por %p142, %p143
      %p146 = scmp.ne.s32.totalorder %s131, %s145
      %p147 = scmp.eq.s32.totalorder %s39, 0
      %p148 = por %p146, %p147
      %s150 = sadd.s32 %s149, 1
      %p153 = scmp.eq.s32.totalorder %s33, 1
      %p154 = scmp.ne.s32.totalorder %s149, %s151
      %p155 = scmp.eq.s32.totalorder %s33, 0
      %p156 = por %p154, %p155
      %p157 = scmp.ne.s32.totalorder %s149, %s151
      %p158 = scmp.eq.s32.totalorder %s38, 1
      %p159 = por %p157, %p158
      %p160 = scmp.ne.s32.totalorder %s151, %s152
      %p161 = scmp.eq.s32.totalorder %s38, 0
      %p162 = por %p160, %p161
      %p163 = scmp.ne.s32.totalorder %s151, %s152
      %p164 = scmp.eq.s32.totalorder %s39, 1
      %p165 = por %p163, %p164
      %p167 = scmp.ne.s32.totalorder %s152, %s166
      %p168 = scmp.eq.s32.totalorder %s39, 0
      %p169 = por %p167, %p168
      %s171 = sadd.s32 %s170, 1
      %p174 = scmp.eq.s32.totalorder %s33, 1
      %p175 = scmp.ne.s32.totalorder %s170, %s172
      %p176 = scmp.eq.s32.totalorder %s33, 0
      %p177 = por %p175, %p176
      %p178 = scmp.ne.s32.totalorder %s170, %s172
      %p179 = scmp.eq.s32.totalorder %s38, 1
      %p180 = por %p178, %p179
      %p181 = scmp.ne.s32.totalorder %s172, %s173
      %p182 = scmp.eq.s32.totalorder %s38, 0
      %p183 = por %p181, %p182
      %p184 = scmp.ne.s32.totalorder %s172, %s173
      %p185 = scmp.eq.s32.totalorder %s39, 1
      %p186 = por %p184, %p185
      %p188 = scmp.ne.s32.totalorder %s173, %s187
      %p189 = scmp.eq.s32.totalorder %s39, 0
      %p190 = por %p188, %p189
      %s192 = sadd.s32 %s191, 1
      %p195 = scmp.eq.s32.totalorder %s33, 1
      %p196 = scmp.ne.s32.totalorder %s191, %s193
      %p197 = scmp.eq.s32.totalorder %s33, 0
      %p198 = por %p196, %p197
      %p199 = scmp.ne.s32.totalorder %s191, %s193
      %p200 = scmp.eq.s32.totalorder %s38, 1
      %p201 = por %p199, %p200
      %p202 = scmp.ne.s32.totalorder %s193, %s194
      %p203 = scmp.eq.s32.totalorder %s38, 0
      %p204 = por %p202, %p203
      %p205 = scmp.ne.s32.totalorder %s193, %s194
      %p206 = scmp.eq.s32.totalorder %s39, 1
      %p207 = por %p205, %p206
      %p209 = scmp.ne.s32.totalorder %s194, %s208
      %p210 = scmp.eq.s32.totalorder %s39, 0
      %p211 = por %p209, %p210
      %s213 = sadd.s32 %s212, 1
      %p216 = scmp.eq.s32.totalorder %s33, 1
      %p217 = scmp.ne.s32.totalorder %s212, %s214
      %p218 = scmp.eq.s32.totalorder %s33, 0
      %p219 = por %p217, %p218
      %p220 = scmp.ne.s32.totalorder %s212, %s214
      %p221 = scmp.eq.s32.totalorder %s38, 1
      %p222 = por %p220, %p221
      %p223 = scmp.ne.s32.totalorder %s214, %s215
      %p224 = scmp.eq.s32.totalorder %s38, 0
      %p225 = por %p223, %p224
      %p226 = scmp.ne.s32.totalorder %s214, %s215
      %p227 = scmp.eq.s32.totalorder %s39, 1
      %p228 = por %p226, %p227
      %p230 = scmp.ne.s32.totalorder %s215, %s229
      %p231 = scmp.eq.s32.totalorder %s39, 0
      %p232 = por %p230, %p231
      %s234 = sadd.s32 %s233, 1
      %p237 = scmp.eq.s32.totalorder %s33, 1
      %p238 = scmp.ne.s32.totalorder %s233, %s235
      %p239 = scmp.eq.s32.totalorder %s33, 0
      %p240 = por %p238, %p239
      %p241 = scmp.ne.s32.totalorder %s233, %s235
      %p242 = scmp.eq.s32.totalorder %s38, 1
      %p243 = por %p241, %p242
      %p244 = scmp.ne.s32.totalorder %s235, %s236
      %p245 = scmp.eq.s32.totalorder %s38, 0
      %p246 = por %p244, %p245
      %p247 = scmp.ne.s32.totalorder %s235, %s236
      %p248 = scmp.eq.s32.totalorder %s39, 1
      %p249 = por %p247, %p248
      %p251 = scmp.ne.s32.totalorder %s236, %s250
      %p252 = scmp.eq.s32.totalorder %s39, 0
      %p253 = por %p251, %p252
      %s255 = sadd.s32 %s254, 1
      %p258 = scmp.eq.s32.totalorder %s33, 1
      %p259 = scmp.ne.s32.totalorder %s254, %s256
      %p260 = scmp.eq.s32.totalorder %s33, 0
      %p261 = por %p259, %p260
      %p262 = scmp.ne.s32.totalorder %s254, %s256
      %p263 = scmp.eq.s32.totalorder %s38, 1
      %p264 = por %p262, %p263
      %p265 = scmp.ne.s32.totalorder %s256, %s257
      %p266 = scmp.eq.s32.totalorder %s38, 0
      %p267 = por %p265, %p266
      %p268 = scmp.ne.s32.totalorder %s256, %s257
      %p269 = scmp.eq.s32.totalorder %s39, 1
      %p270 = por %p268, %p269
      %p272 = scmp.ne.s32.totalorder %s257, %s271
      %p273 = scmp.eq.s32.totalorder %s39, 0
      %p274 = por %p272, %p273
      %s276 = sadd.s32 %s275, 1
      %p279 = scmp.eq.s32.totalorder %s33, 1
      %p280 = scmp.ne.s32.totalorder %s275, %s277
      %p281 = scmp.eq.s32.totalorder %s33, 0
      %p282 = por %p280, %p281
      %p283 = scmp.ne.s32.totalorder %s275, %s277
      %p284 = scmp.eq.s32.totalorder %s38, 1
      %p285 = por %p283, %p284
      %p286 = scmp.ne.s32.totalorder %s277, %s278
      %p287 = scmp.eq.s32.totalorder %s38, 0
      %p288 = por %p286, %p287
      %p289 = scmp.ne.s32.totalorder %s277, %s278
      %p290 = scmp.eq.s32.totalorder %s39, 1
      %p291 = por %p289, %p290
      %p293 = scmp.ne.s32.totalorder %s278, %s292
      %p294 = scmp.eq.s32.totalorder %s39, 0
      %p295 = por %p293, %p294
      %s297 = sadd.s32 %s296, 1
      %p300 = scmp.eq.s32.totalorder %s33, 1
      %p301 = scmp.ne.s32.totalorder %s296, %s298
      %p302 = scmp.eq.s32.totalorder %s33, 0
      %p303 = por %p301, %p302
      %p304 = scmp.ne.s32.totalorder %s296, %s298
      %p305 = scmp.eq.s32.totalorder %s38, 1
      %p306 = por %p304, %p305
      %p307 = scmp.ne.s32.totalorder %s298, %s299
      %p308 = scmp.eq.s32.totalorder %s38, 0
      %p309 = por %p307, %p308
      %p310 = scmp.ne.s32.totalorder %s298, %s299
      %p311 = scmp.eq.s32.totalorder %s39, 1
      %p312 = por %p310, %p311
      %p314 = scmp.ne.s32.totalorder %s299, %s313
      %p315 = scmp.eq.s32.totalorder %s39, 0
      %p316 = por %p314, %p315
      %s318 = sadd.s32 %s317, 1
      %p321 = scmp.eq.s32.totalorder %s33, 1
      %p322 = scmp.ne.s32.totalorder %s317, %s319
      %p323 = scmp.eq.s32.totalorder %s33, 0
      %p324 = por %p322, %p323
      %p325 = scmp.ne.s32.totalorder %s317, %s319
      %p326 = scmp.eq.s32.totalorder %s38, 1
      %p327 = por %p325, %p326
      %p328 = scmp.ne.s32.totalorder %s319, %s320
      %p329 = scmp.eq.s32.totalorder %s38, 0
      %p330 = por %p328, %p329
      %p331 = scmp.ne.s32.totalorder %s319, %s320
      %p332 = scmp.eq.s32.totalorder %s39, 1
      %p333 = por %p331, %p332
      %p335 = scmp.ne.s32.totalorder %s320, %s334
      %p336 = scmp.eq.s32.totalorder %s39, 0
      %p337 = por %p335, %p336
      %s339 = sadd.s32 %s338, 1
      %p342 = scmp.eq.s32.totalorder %s33, 1
      %p343 = scmp.ne.s32.totalorder %s338, %s340
      %p344 = scmp.eq.s32.totalorder %s33, 0
      %p345 = por %p343, %p344
      %p346 = scmp.ne.s32.totalorder %s338, %s340
      %p347 = scmp.eq.s32.totalorder %s38, 1
      %p348 = por %p346, %p347
      %p349 = scmp.ne.s32.totalorder %s340, %s341
      %p350 = scmp.eq.s32.totalorder %s38, 0
      %p351 = por %p349, %p350
      %p352 = scmp.ne.s32.totalorder %s340, %s341
      %p353 = scmp.eq.s32.totalorder %s39, 1
      %p354 = por %p352, %p353
      %p356 = scmp.ne.s32.totalorder %s341, %s355
      %p357 = scmp.eq.s32.totalorder %s39, 0
      %p358 = por %p356, %p357
      %s360 = sadd.s32 %s359, 1
      %p363 = scmp.eq.s32.totalorder %s33, 1
      %p364 = scmp.ne.s32.totalorder %s359, %s361
      %p365 = scmp.eq.s32.totalorder %s33, 0
      %p366 = por %p364, %p365
      %p367 = scmp.ne.s32.totalorder %s359, %s361
      %p368 = scmp.eq.s32.totalorder %s38, 1
      %p369 = por %p367, %p368
      %p370 = scmp.ne.s32.totalorder %s361, %s362
      %p371 = scmp.eq.s32.totalorder %s38, 0
      %p372 = por %p370, %p371
      %p373 = scmp.ne.s32.totalorder %s361, %s362
      %p374 = scmp.eq.s32.totalorder %s39, 1
      %p375 = por %p373, %p374
      %p377 = scmp.ne.s32.totalorder %s362, %s376
      %p378 = scmp.eq.s32.totalorder %s39, 0
      %p379 = por %p377, %p378
      %s381 = sadd.s32 %s380, 1
      %p384 = scmp.eq.s32.totalorder %s33, 1
      %p385 = scmp.ne.s32.totalorder %s380, %s382
      %p386 = scmp.eq.s32.totalorder %s33, 0
      %p387 = por %p385, %p386
      %p388 = scmp.ne.s32.totalorder %s380, %s382
      %p389 = scmp.eq.s32.totalorder %s38, 1
      %p390 = por %p388, %p389
      %p391 = scmp.ne.s32.totalorder %s382, %s383
      %p392 = scmp.eq.s32.totalorder %s38, 0
      %p393 = por %p391, %p392
      %p394 = scmp.ne.s32.totalorder %s382, %s383
      %p395 = scmp.eq.s32.totalorder %s39, 1
      %p396 = por %p394, %p395
      %p398 = scmp.ne.s32.totalorder %s383, %s397
      %p399 = scmp.eq.s32.totalorder %s39, 0
      %p400 = por %p398, %p399
      %s401 = ssub.s32 %s40, %s52
      %s402 = ssub.s32 %s41, %s48
      %s403 = sor.u32 %s401, %s402
      %p404 = scmp.eq.s32.totalorder %s403, 0
      %s406 = sadd.s32 %s405, 1
      %s407 = scalar_select %p404, %s405, %s406
      %p410 = pneg %p404
      %p411 = scmp.eq.s32.totalorder %s33, 1
      %p412 = por %p410, %p411
      %p413 = scmp.ne.s32.totalorder %s405, %s408
      %p414 = scmp.eq.s32.totalorder %s33, 0
      %p415 = por %p413, %p414
      %p416 = scmp.ne.s32.totalorder %s405, %s408
      %p417 = scmp.eq.s32.totalorder %s38, 1
      %p418 = por %p416, %p417
      %p419 = scmp.ne.s32.totalorder %s408, %s409
      %p420 = scmp.eq.s32.totalorder %s38, 0
      %p421 = por %p419, %p420
      %p422 = scmp.ne.s32.totalorder %s408, %s409
      %p423 = scmp.eq.s32.totalorder %s39, 1
      %p424 = por %p422, %p423
      %p426 = scmp.ne.s32.totalorder %s409, %s425
      %p427 = scmp.eq.s32.totalorder %s39, 0
      %p428 = por %p426, %p427
      %s429 = ssub.s32 %s40, %s52
      %s430 = ssub.s32 %s41, %s48
      %s431 = sor.u32 %s429, %s430
      %p432 = scmp.eq.s32.totalorder %s431, 0
      %s434 = sadd.s32 %s433, 1
      %s435 = scalar_select %p432, %s433, %s434
      %p438 = pneg %p432
      %p439 = scmp.eq.s32.totalorder %s33, 1
      %p440 = por %p438, %p439
      %p441 = scmp.ne.s32.totalorder %s433, %s436
      %p442 = scmp.eq.s32.totalorder %s33, 0
      %p443 = por %p441, %p442
      %p444 = scmp.ne.s32.totalorder %s433, %s436
      %p445 = scmp.eq.s32.totalorder %s38, 1
      %p446 = por %p444, %p445
      %p447 = scmp.ne.s32.totalorder %s436, %s437
      %p448 = scmp.eq.s32.totalorder %s38, 0
      %p449 = por %p447, %p448
      %p450 = scmp.ne.s32.totalorder %s436, %s437
      %p451 = scmp.eq.s32.totalorder %s39, 1
      %p452 = por %p450, %p451
      %p454 = scmp.ne.s32.totalorder %s437, %s453
      %p455 = scmp.eq.s32.totalorder %s39, 0
      %p456 = por %p454, %p455
      %p457 = scmp.le.s32.totalorder 1, %s33
      %p458 = scmp.lt.s32.totalorder %s33, 3
      %p459 = pnand %p457, %p458
      %p460 = pneg %p459
      // Predicated region
      $region9: #{tpu_custom_call.1} parent=5 // pred_check
        _
      $region10: #{tpu_custom_call.1} parent=5 // pred_check_branch
        %462 = sbr.rel (%p459) target = $region12
      $region11: #{tpu_custom_call.1} parent=5 // pred_region
        %s463 = ssub.s32 %s33, 1
        // Predicated region
        $region13: #{tpu_custom_call.1} parent=11 // pred_check
          %p464 = pneg %p99
        $region14: #{tpu_custom_call.1} parent=11 // pred_check_branch
          %466 = sbr.rel (%p464) target = $region16
        $region15: #{tpu_custom_call.1} parent=11 // pred_region
          %s468 = ssub.s32 128, 128
          %469 = vsyncadd [#allocation3], %s468
          %s470 = smul.addr %s43, 128
          %s471 = scalar_lea.hbm %s1, %s470
          %s473 = sshll.u32 [#allocation2], 4
          %s474 = int_to_ptr.vmem [resolvable:$true] %s473
          %476 = dma.hbm_to_vmem [thread:$0]  %s471, 128, %s474, [#allocation3]
        $region16: #{tpu_custom_call.1} parent=11 // pred_fallthru
          _
        // Predicated region
        $region17: #{tpu_custom_call.1} parent=11 // pred_check
          %p477 = pneg %p120
        $region18: #{tpu_custom_call.1} parent=11 // pred_check_branch
          %479 = sbr.rel (%p477) target = $region20
        $region19: #{tpu_custom_call.1} parent=11 // pred_region
          _
        $region20: #{tpu_custom_call.1} parent=11 // pred_fallthru
          _
        // Predicated region
        $region21: #{tpu_custom_call.1} parent=11 // pred_check
          %p480 = pneg %p141
        $region22: #{tpu_custom_call.1} parent=11 // pred_check_branch
          %482 = sbr.rel (%p480) target = $region24
        $region23: #{tpu_custom_call.1} parent=11 // pred_region
          _
        $region24: #{tpu_custom_call.1} parent=11 // pred_fallthru
          _
        // Predicated region
        $region25: #{tpu_custom_call.1} parent=11 // pred_check
          %p483 = pneg %p162
        $region26: #{tpu_custom_call.1} parent=11 // pred_check_branch
          %485 = sbr.rel (%p483) target = $region28
        $region27: #{tpu_custom_call.1} parent=11 // pred_region
          _
        $region28: #{tpu_custom_call.1} parent=11 // pred_fallthru
          _
        // Predicated region
        $region29: #{tpu_custom_call.1} parent=11 // pred_check
          %p486 = pneg %p183
        $region30: #{tpu_custom_call.1} parent=11 // pred_check_branch
          %488 = sbr.rel (%p486) target = $region32
        $region31: #{tpu_custom_call.1} parent=11 // pred_region
          _
        $region32: #{tpu_custom_call.1} parent=11 // pred_fallthru
          _
        // Predicated region
        $region33: #{tpu_custom_call.1} parent=11 // pred_check
          %p489 = pneg %p204
        $region34: #{tpu_custom_call.1} parent=11 // pred_check_branch
          %491 = sbr.rel (%p489) target = $region36
        $region35: #{tpu_custom_call.1} parent=11 // pred_region
          %s493 = ssub.s32 256, 256
          %494 = vsyncadd [#allocation6], %s493
          %s495 = sshll.u32 [#allocation5], 4
          %s496 = int_to_ptr.vmem [resolvable:$true] %s495
          %501 = dma.hbm_to_vmem [thread:$0]  %s6, 256, %s496, [#allocation6], 64, 64, 4
        $region36: #{tpu_custom_call.1} parent=11 // pred_fallthru
          _
        // Predicated region
        $region37: #{tpu_custom_call.1} parent=11 // pred_check
          %p502 = pneg %p225
        $region38: #{tpu_custom_call.1} parent=11 // pred_check_branch
          %504 = sbr.rel (%p502) target = $region40
        $region39: #{tpu_custom_call.1} parent=11 // pred_region
          %s506 = ssub.s32 16, 16
          %507 = vsyncadd [#allocation6], %s506
          %s509 = sshll.u32 [#allocation7], 4
          %s510 = int_to_ptr.vmem [resolvable:$true] %s509
          %512 = dma.hbm_to_vmem [thread:$0]  %s7, 16, %s510, [#allocation6]
        $region40: #{tpu_custom_call.1} parent=11 // pred_fallthru
          _
        // Predicated region
        $region41: #{tpu_custom_call.1} parent=11 // pred_check
          %p513 = pneg %p246
        $region42: #{tpu_custom_call.1} parent=11 // pred_check_branch
          %515 = sbr.rel (%p513) target = $region44
        $region43: #{tpu_custom_call.1} parent=11 // pred_region
          %s517 = ssub.s32 256, 256
          %518 = vsyncadd [#allocation9], %s517
          %s519 = sshll.u32 [#allocation8], 4
          %s520 = int_to_ptr.vmem [resolvable:$true] %s519
          %525 = dma.hbm_to_vmem [thread:$0]  %s8, 256, %s520, [#allocation9], 64, 64, 4
        $region44: #{tpu_custom_call.1} parent=11 // pred_fallthru
          _
        // Predicated region
        $region45: #{tpu_custom_call.1} parent=11 // pred_check
          %p526 = pneg %p267
        $region46: #{tpu_custom_call.1} parent=11 // pred_check_branch
          %528 = sbr.rel (%p526) target = $region48
        $region47: #{tpu_custom_call.1} parent=11 // pred_region
          %s530 = ssub.s32 16, 16
          %531 = vsyncadd [#allocation9], %s530
          %s533 = sshll.u32 [#allocation10], 4
          %s534 = int_to_ptr.vmem [resolvable:$true] %s533
          %536 = dma.hbm_to_vmem [thread:$0]  %s9, 16, %s534, [#allocation9]
        $region48: #{tpu_custom_call.1} parent=11 // pred_fallthru
          _
        // Predicated region
        $region49: #{tpu_custom_call.1} parent=11 // pred_check
          %p537 = pneg %p288
        $region50: #{tpu_custom_call.1} parent=11 // pred_check_branch
          %539 = sbr.rel (%p537) target = $region52
        $region51: #{tpu_custom_call.1} parent=11 // pred_region
          _
        $region52: #{tpu_custom_call.1} parent=11 // pred_fallthru
          _
        // Predicated region
        $region53: #{tpu_custom_call.1} parent=11 // pred_check
          %p540 = pneg %p309
        $region54: #{tpu_custom_call.1} parent=11 // pred_check_branch
          %542 = sbr.rel (%p540) target = $region56
        $region55: #{tpu_custom_call.1} parent=11 // pred_region
          _
        $region56: #{tpu_custom_call.1} parent=11 // pred_fallthru
          _
        // Predicated region
        $region57: #{tpu_custom_call.1} parent=11 // pred_check
          %p543 = pneg %p330
        $region58: #{tpu_custom_call.1} parent=11 // pred_check_branch
          %545 = sbr.rel (%p543) target = $region60
        $region59: #{tpu_custom_call.1} parent=11 // pred_region
          _
        $region60: #{tpu_custom_call.1} parent=11 // pred_fallthru
          _
        // Predicated region
        $region61: #{tpu_custom_call.1} parent=11 // pred_check
          %p546 = pneg %p351
        $region62: #{tpu_custom_call.1} parent=11 // pred_check_branch
          %548 = sbr.rel (%p546) target = $region64
        $region63: #{tpu_custom_call.1} parent=11 // pred_region
          _
        $region64: #{tpu_custom_call.1} parent=11 // pred_fallthru
          _
        // Predicated region
        $region65: #{tpu_custom_call.1} parent=11 // pred_check
          %p549 = pneg %p372
        $region66: #{tpu_custom_call.1} parent=11 // pred_check_branch
          %551 = sbr.rel (%p549) target = $region68
        $region67: #{tpu_custom_call.1} parent=11 // pred_region
          _
        $region68: #{tpu_custom_call.1} parent=11 // pred_fallthru
          _
        // Predicated region
        $region69: #{tpu_custom_call.1} parent=11 // pred_check
          %p552 = pneg %p393
        $region70: #{tpu_custom_call.1} parent=11 // pred_check_branch
          %554 = sbr.rel (%p552) target = $region72
        $region71: #{tpu_custom_call.1} parent=11 // pred_region
          _
        $region72: #{tpu_custom_call.1} parent=11 // pred_fallthru
          _
      $region12: #{tpu_custom_call.1} parent=5 // pred_fallthru
        _
      %p555 = scmp.lt.s32.totalorder %s33, 2
      // Predicated region
      $region73: #{tpu_custom_call.1} parent=5 // pred_check
        %p556 = pneg %p555
      $region74: #{tpu_custom_call.1} parent=5 // pred_check_branch
        %558 = sbr.rel (%p556) target = $region76
      $region75: #{tpu_custom_call.1} parent=5 // pred_region
        // Predicated region
        $region77: #{tpu_custom_call.1} parent=75 // pred_check
          %p559 = pneg %p67
        $region78: #{tpu_custom_call.1} parent=75 // pred_check_branch
          %561 = sbr.rel (%p559) target = $region80
        $region79: #{tpu_custom_call.1} parent=75 // pred_region
          %p562 = scmp.lt.s32.totalorder %s40, 1
          %s563 = scalar_select %p562, %s40, 1
          %p564 = scmp.lt.s32.totalorder %s41, 0
          %s565 = scalar_select %p564, %s41, 0
          %s566 = sadd.s32 %s565, %s563
          %s567 = smul.addr %s566, 8
          %s568 = scalar_lea.vmem %s0, %s567
        $region80: #{tpu_custom_call.1} parent=75 // pred_fallthru
          _
      $region76: #{tpu_custom_call.1} parent=5 // pred_fallthru
        _
      %p569 = scmp.le.s32.totalorder 1, %s33
      %p570 = scmp.lt.s32.totalorder %s33, 3
      %p571 = pnand %p569, %p570
      %p572 = pneg %p571
      // Predicated region
      $region81: #{tpu_custom_call.1} parent=5 // pred_check
        _
      $region82: #{tpu_custom_call.1} parent=5 // pred_check_branch
        %574 = sbr.rel (%p571) target = $region84
      $region83: #{tpu_custom_call.1} parent=5 // pred_region
        %s575 = ssub.s32 %s33, 1
        // Predicated region
        $region85: #{tpu_custom_call.1} parent=83 // pred_check
          %p576 = pneg %p99
        $region86: #{tpu_custom_call.1} parent=83 // pred_check_branch
          %578 = sbr.rel (%p576) target = $region88
        $region87: #{tpu_custom_call.1} parent=83 // pred_region
          %579 = dma.done [#allocation3], 128
        $region88: #{tpu_custom_call.1} parent=83 // pred_fallthru
          _
        // Predicated region
        $region89: #{tpu_custom_call.1} parent=83 // pred_check
          %p580 = pneg %p204
        $region90: #{tpu_custom_call.1} parent=83 // pred_check_branch
          %582 = sbr.rel (%p580) target = $region92
        $region91: #{tpu_custom_call.1} parent=83 // pred_region
          %583 = dma.done [#allocation6], 256
        $region92: #{tpu_custom_call.1} parent=83 // pred_fallthru
          _
        // Predicated region
        $region93: #{tpu_custom_call.1} parent=83 // pred_check
          %p584 = pneg %p225
        $region94: #{tpu_custom_call.1} parent=83 // pred_check_branch
          %586 = sbr.rel (%p584) target = $region96
        $region95: #{tpu_custom_call.1} parent=83 // pred_region
          %587 = dma.done [#allocation6], 16
        $region96: #{tpu_custom_call.1} parent=83 // pred_fallthru
          _
        // Predicated region
        $region97: #{tpu_custom_call.1} parent=83 // pred_check
          %p588 = pneg %p246
        $region98: #{tpu_custom_call.1} parent=83 // pred_check_branch
          %590 = sbr.rel (%p588) target = $region100
        $region99: #{tpu_custom_call.1} parent=83 // pred_region
          %591 = dma.done [#allocation9], 256
        $region100: #{tpu_custom_call.1} parent=83 // pred_fallthru
          _
        // Predicated region
        $region101: #{tpu_custom_call.1} parent=83 // pred_check
          %p592 = pneg %p267
        $region102: #{tpu_custom_call.1} parent=83 // pred_check_branch
          %594 = sbr.rel (%p592) target = $region104
        $region103: #{tpu_custom_call.1} parent=83 // pred_region
          %595 = dma.done [#allocation9], 16
        $region104: #{tpu_custom_call.1} parent=83 // pred_fallthru
          _
        %p596 = scmp.lt.s32.totalorder %s42, 1
        %s597 = scalar_select %p596, %s42, 1
        %p598 = scmp.lt.s32.totalorder %s43, 0
        %s599 = scalar_select %p598, %s43, 0
        %s600 = sadd.s32 %s599, %s597
        %s601 = smul.addr %s600, 8
        %s602 = scalar_lea.vmem %s0, %s601
        %p603 = pneg %p73
        %p604 = pneg %p70
        %p605 = pneg %p99
        %p606 = pneg %p96
        %p607 = pneg %p120
        %p608 = pneg %p117
        %p609 = pneg %p141
        %p610 = pneg %p138
        %p611 = pneg %p162
        %p612 = pneg %p159
        %p613 = pneg %p183
        %p614 = pneg %p180
        %p615 = pneg %p204
        %p616 = pneg %p201
        %p617 = pneg %p225
        %p618 = pneg %p222
        %p619 = pneg %p246
        %p620 = pneg %p243
        %p621 = pneg %p267
        %p622 = pneg %p264
        %p623 = pneg %p288
        %p624 = pneg %p285
        %p625 = pneg %p309
        %p626 = pneg %p306
        %p627 = pneg %p330
        %p628 = pneg %p327
        %p629 = pneg %p351
        %p630 = pneg %p348
        %p631 = pneg %p372
        %p632 = pneg %p369
        %p633 = pneg %p393
        %p634 = pneg %p390
        %p635 = pneg %p421
        %p636 = pneg %p418
        %s637 = sand.u32 %s408, 1
        %s638 = scalar_lea.sflag [#allocation4], %s637
        %s639 = sand.u32 %s408, 1
        %s640 = smul.addr %s639, 8
        %s641 = scalar_lea.vmem [#allocation11], %s640
        %p642 = pneg %p449
        %p643 = pneg %p446
        %s644 = sand.u32 %s436, 1
        %s645 = scalar_lea.sflag [#allocation13], %s644
        %s646 = sand.u32 %s436, 1
        %s647 = smul.addr %s646, 8
        %s648 = scalar_lea.vmem [#allocation12], %s647
        %p649 = scmp.lt.s32.totalorder %s42, 1
        %s650 = scalar_select %p649, %s42, 1
        %p651 = scmp.lt.s32.totalorder %s43, 0
        %s652 = scalar_select %p651, %s43, 0
        %s653 = sadd.s32 %s652, %s650
        %s654 = smul.addr %s653, 8
        %s655 = scalar_lea.vmem %s0, %s654
        %v657 = vld [vmem:[%s655] sm:$0xff]
        %v658 = vpack.c.bf16 %v657, %v657
        %v659 = vld [vmem:[#allocation2] sm:$0xff]
        %v660 = vld [vmem:[%s2] sm:$0xf]
        %v661 = vld [vmem:[%s2 + $0x4] sm:$0xf]
        %v662 = vld [vmem:[%s2 + $0x8] sm:$0xf]
        %v663 = vld [vmem:[%s2 + $0xc] sm:$0xf]
        %v664 = vld [vmem:[%s3] sm:$0x1]
        %v666 = vlaneseq
        %v667 = vshrl.u32 %v666, 7
        %v668 = vsub.s32 0, %v667
        %v669 = vrot.slane %v664, %v668
        %v675 = vunpack.c.l.b16 %v660
        %v676 = vunpack.c.l.b16 %v661
        %v677 = vunpack.c.l.b16 %v662
        %v678 = vunpack.c.l.b16 %v663
        %v679 = vpack.c.b16 %v676, %v675
        %v680 = vpack.c.b16 %v678, %v677
        %vm683 = vcmask 261120
        %v685 = vsel %vm683, %v658, 0
        %687 = vmatprep.subr.bf16.mxu0 0
        %688 = vmatpush1.bf16.msra.mxu0 %v679
        %689 = vmatprep.subr.bf16.mxu0 0
        %690 = vmatpush1.bf16.msra.mxu0 %v680
        %691 = vmatprep.subr.bf16.mxu0 0
        %692 = vmatpush1.bf16.msra.mxu0 0
        %693 = vmatprep.subr.bf16.mxu0 0
        %694 = vmatpush1.bf16.msra.mxu0 0
        %695 = vmatprep.subr.bf16.mxu0 0
        %696 = vmatpush1.bf16.msra.mxu0 0
        %697 = vmatprep.subr.bf16.mxu0 0
        %698 = vmatpush1.bf16.msra.mxu0 0
        %699 = vmatprep.subr.bf16.mxu0 0
        %700 = vmatpush1.bf16.msra.mxu0 0
        %701 = vmatprep.subr.bf16.mxu0 0
        %702 = vmatpush1.bf16.msra.mxu0 0
        %703 = vmatprep.subr.bf16.mxu0 0
        %704 = vmatpush1.bf16.msra.mxu0 0
        %705 = vmatprep.subr.bf16.mxu0 0
        %706 = vmatpush1.bf16.msra.mxu0 0
        %707 = vmatprep.subr.bf16.mxu0 0
        %708 = vmatpush1.bf16.msra.mxu0 0
        %709 = vmatprep.subr.bf16.mxu0 0
        %710 = vmatpush1.bf16.msra.mxu0 0
        %711 = vmatprep.subr.bf16.mxu0 0
        %712 = vmatpush1.bf16.msra.mxu0 0
        %713 = vmatprep.subr.bf16.mxu0 0
        %714 = vmatpush1.bf16.msra.mxu0 0
        %715 = vmatprep.subr.bf16.mxu0 0
        %716 = vmatpush1.bf16.msra.mxu0 0
        %717 = vmatprep.subr.bf16.mxu0 0
        %718 = vmatpush1.bf16.msra.mxu0 0
        %719 = vmatprep.mubr.bf16.mxu0 0
        %720 = vmatmul.mubr.bf16.gmra.mrb[0].mxu0 %v685
        %v721 = vpop.f32.mrb[0].mxu0
        %v722 = vadd.f32 %v669, %v721
        %v723 = vpop.f32.mrb[0].mxu0
        %v724 = vpop.f32.mrb[0].mxu0
        %v725 = vpop.f32.mrb[0].mxu0
        %726 = vdwg.mxu0
        %v727 = vld [vmem:[%s4] sm:$0xf]
        %v728 = vld [vmem:[%s4 + $0x4] sm:$0xf]
        %v729 = vld [vmem:[%s4 + $0x8] sm:$0xf]
        %v730 = vld [vmem:[%s4 + $0xc] sm:$0xf]
        %v731 = vld [vmem:[%s5] sm:$0x1]
        %v733 = vlaneseq
        %v734 = vshrl.u32 %v733, 7
        %v735 = vsub.s32 0, %v734
        %v736 = vrot.slane %v731, %v735
        %v742 = vunpack.c.l.b16 %v727
        %v743 = vunpack.c.l.b16 %v728
        %v744 = vunpack.c.l.b16 %v729
        %v745 = vunpack.c.l.b16 %v730
        %v746 = vpack.c.b16 %v743, %v742
        %v747 = vpack.c.b16 %v745, %v744
        %750 = vmatprep.subr.bf16.mxu0 0
        %751 = vmatpush1.bf16.msra.mxu0 %v746
        %752 = vmatprep.subr.bf16.mxu0 0
        %753 = vmatpush1.bf16.msra.mxu0 %v747
        %754 = vmatprep.subr.bf16.mxu0 0
        %755 = vmatpush1.bf16.msra.mxu0 0
        %756 = vmatprep.subr.bf16.mxu0 0
        %757 = vmatpush1.bf16.msra.mxu0 0
        %758 = vmatprep.subr.bf16.mxu0 0
        %759 = vmatpush1.bf16.msra.mxu0 0
        %760 = vmatprep.subr.bf16.mxu0 0
        %761 = vmatpush1.bf16.msra.mxu0 0
        %762 = vmatprep.subr.bf16.mxu0 0
        %763 = vmatpush1.bf16.msra.mxu0 0
        %764 = vmatprep.subr.bf16.mxu0 0
        %765 = vmatpush1.bf16.msra.mxu0 0
        %766 = vmatprep.subr.bf16.mxu0 0
        %767 = vmatpush1.bf16.msra.mxu0 0
        %768 = vmatprep.subr.bf16.mxu0 0
        %769 = vmatpush1.bf16.msra.mxu0 0
        %770 = vmatprep.subr.bf16.mxu0 0
        %771 = vmatpush1.bf16.msra.mxu0 0
        %772 = vmatprep.subr.bf16.mxu0 0
        %773 = vmatpush1.bf16.msra.mxu0 0
        %774 = vmatprep.subr.bf16.mxu0 0
        %775 = vmatpush1.bf16.msra.mxu0 0
        %776 = vmatprep.subr.bf16.mxu0 0
        %777 = vmatpush1.bf16.msra.mxu0 0
        %778 = vmatprep.subr.bf16.mxu0 0
        %779 = vmatpush1.bf16.msra.mxu0 0
        %780 = vmatprep.subr.bf16.mxu0 0
        %781 = vmatpush1.bf16.msra.mxu0 0
        %782 = vmatprep.mubr.bf16.mxu0 0
        %783 = vmatmul.mubr.bf16.gmra.mrb[0].mxu0 %v685
        %v784 = vpop.f32.mrb[0].mxu0
        %v785 = vadd.f32 %v736, %v784
        %v786 = vpop.f32.mrb[0].mxu0
        %v787 = vpop.f32.mrb[0].mxu0
        %v788 = vpop.f32.mrb[0].mxu0
        %789 = vdwg.mxu0
        %v790 = vld [vmem:[#allocation5] sm:$0xf]
        %v791 = vld [vmem:[#allocation5 + $0x4] sm:$0xf]
        %v792 = vld [vmem:[#allocation5 + $0x8] sm:$0xf]
        %v793 = vld [vmem:[#allocation5 + $0xc] sm:$0xf]
        %v794 = vld [vmem:[#allocation7] sm:$0x1]
        %v796 = vlaneseq
        %v797 = vshrl.u32 %v796, 7
        %v798 = vsub.s32 0, %v797
        %v799 = vrot.slane %v794, %v798
        %v805 = vunpack.c.l.b16 %v790
        %v806 = vunpack.c.l.b16 %v791
        %v807 = vunpack.c.l.b16 %v792
        %v808 = vunpack.c.l.b16 %v793
        %v809 = vpack.c.b16 %v806, %v805
        %v810 = vpack.c.b16 %v808, %v807
        %813 = vmatprep.subr.bf16.mxu0 0
        %814 = vmatpush1.bf16.msra.mxu0 %v809
        %815 = vmatprep.subr.bf16.mxu0 0
        %816 = vmatpush1.bf16.msra.mxu0 %v810
        %817 = vmatprep.subr.bf16.mxu0 0
        %818 = vmatpush1.bf16.msra.mxu0 0
        %819 = vmatprep.subr.bf16.mxu0 0
        %820 = vmatpush1.bf16.msra.mxu0 0
        %821 = vmatprep.subr.bf16.mxu0 0
        %822 = vmatpush1.bf16.msra.mxu0 0
        %823 = vmatprep.subr.bf16.mxu0 0
        %824 = vmatpush1.bf16.msra.mxu0 0
        %825 = vmatprep.subr.bf16.mxu0 0
        %826 = vmatpush1.bf16.msra.mxu0 0
        %827 = vmatprep.subr.bf16.mxu0 0
        %828 = vmatpush1.bf16.msra.mxu0 0
        %829 = vmatprep.subr.bf16.mxu0 0
        %830 = vmatpush1.bf16.msra.mxu0 0
        %831 = vmatprep.subr.bf16.mxu0 0
        %832 = vmatpush1.bf16.msra.mxu0 0
        %833 = vmatprep.subr.bf16.mxu0 0
        %834 = vmatpush1.bf16.msra.mxu0 0
        %835 = vmatprep.subr.bf16.mxu0 0
        %836 = vmatpush1.bf16.msra.mxu0 0
        %837 = vmatprep.subr.bf16.mxu0 0
        %838 = vmatpush1.bf16.msra.mxu0 0
        %839 = vmatprep.subr.bf16.mxu0 0
        %840 = vmatpush1.bf16.msra.mxu0 0
        %841 = vmatprep.subr.bf16.mxu0 0
        %842 = vmatpush1.bf16.msra.mxu0 0
        %843 = vmatprep.subr.bf16.mxu0 0
        %844 = vmatpush1.bf16.msra.mxu0 0
        %845 = vmatprep.mubr.bf16.mxu0 0
        %846 = vmatmul.mubr.bf16.gmra.mrb[0].mxu0 %v685
        %v847 = vpop.f32.mrb[0].mxu0
        %v848 = vadd.f32 %v799, %v847
        %v849 = vpop.f32.mrb[0].mxu0
        %v850 = vpop.f32.mrb[0].mxu0
        %v851 = vpop.f32.mrb[0].mxu0
        %852 = vdwg.mxu0
        %v853 = vpack.c.bf16 %v722, %v722
        %v854 = vpack.c.bf16 %v785, %v785
        %v855 = vpack.c.bf16 %v848, %v848
        %vm856 = vcmask 130048
        %v858 = vsel %vm856, %v853, 0
        %v861 = vsel %vm856, %v854, 0
        %863 = vmatprep.subr.bf16.mxu0 0
        %864 = vmatpush1.bf16.xpose.msra.mxu0 %v861
        %865 = vmatprep.subr.bf16.mxu0 0
        %866 = vmatpush1.bf16.xpose.msra.mxu0 0
        %867 = vmatprep.subr.bf16.mxu0 0
        %868 = vmatpush1.bf16.xpose.msra.mxu0 0
        %869 = vmatprep.subr.bf16.mxu0 0
        %870 = vmatpush1.bf16.xpose.msra.mxu0 0
        %871 = vmatprep.subr.bf16.mxu0 0
        %872 = vmatpush1.bf16.xpose.msra.mxu0 0
        %873 = vmatprep.subr.bf16.mxu0 0
        %874 = vmatpush1.bf16.xpose.msra.mxu0 0
        %875 = vmatprep.subr.bf16.mxu0 0
        %876 = vmatpush1.bf16.xpose.msra.mxu0 0
        %877 = vmatprep.subr.bf16.mxu0 0
        %878 = vmatpush1.bf16.xpose.msra.mxu0 0
        %879 = vmatprep.subr.bf16.mxu0 0
        %880 = vmatpush1.bf16.xpose.msra.mxu0 0
        %881 = vmatprep.subr.bf16.mxu0 0
        %882 = vmatpush1.bf16.xpose.msra.mxu0 0
        %883 = vmatprep.subr.bf16.mxu0 0
        %884 = vmatpush1.bf16.xpose.msra.mxu0 0
        %885 = vmatprep.subr.bf16.mxu0 0
        %886 = vmatpush1.bf16.xpose.msra.mxu0 0
        %887 = vmatprep.subr.bf16.mxu0 0
        %888 = vmatpush1.bf16.xpose.msra.mxu0 0
        %889 = vmatprep.subr.bf16.mxu0 0
        %890 = vmatpush1.bf16.xpose.msra.mxu0 0
        %891 = vmatprep.subr.bf16.mxu0 0
        %892 = vmatpush1.bf16.xpose.msra.mxu0 0
        %893 = vmatprep.subr.bf16.mxu0 0
        %894 = vmatpush1.bf16.xpose.msra.mxu0 0
        %895 = vmatprep.mubr.bf16.mxu0 0
        %896 = vmatmul.mubr.bf16.gmra.mrb[0].mxu0 %v858
        %v897 = vpop.f32.mrb[0].mxu0
        %v898 = vadd.f32 %v659, %v897
        %v899 = vpop.f32.mrb[0].mxu0
        %v900 = vpop.f32.mrb[0].mxu0
        %v901 = vpop.f32.mrb[0].mxu0
        %902 = vdwg.mxu0
        %vm903 = vcmask 64512
        %v904 = vsel %vm903, %v898, -inf
        %905 = vmax.xlane.f32.xlu0 %v904
        %v906 = vpop.xlane.xlu0 %905
        %v907 = vsub.f32 %v898, %v906
        %v908 = vmul.f32 %v907, 1.442695
        %v909 = vpow.pop %v908
        %v910 = vsel %vm903, %v909, 0.0
        %911 = vadd.xlane.f32.xlu0 %v910
        %v912 = vpop.xlane.xlu0 %911
        %v913 = vrcp.pop %v912
        %v914 = vmul.f32 %v909, %v913
        %v915 = vadd.f32 %v914, 0.0
        %v916 = vpack.c.bf16 %v914, %v914
        %v918 = vsel %vm903, %v916, 0
        %vm920 = vcmask 1043456
        %v922 = vsel %vm920, %v855, 0
        %924 = vmatprep.subr.bf16.mxu0 0
        %925 = vmatpush1.bf16.msra.mxu0 %v922
        %926 = vmatprep.subr.bf16.mxu0 0
        %927 = vmatpush1.bf16.msra.mxu0 0
        %928 = vmatprep.subr.bf16.mxu0 0
        %929 = vmatpush1.bf16.msra.mxu0 0
        %930 = vmatprep.subr.bf16.mxu0 0
        %931 = vmatpush1.bf16.msra.mxu0 0
        %932 = vmatprep.subr.bf16.mxu0 0
        %933 = vmatpush1.bf16.msra.mxu0 0
        %934 = vmatprep.subr.bf16.mxu0 0
        %935 = vmatpush1.bf16.msra.mxu0 0
        %936 = vmatprep.subr.bf16.mxu0 0
        %937 = vmatpush1.bf16.msra.mxu0 0
        %938 = vmatprep.subr.bf16.mxu0 0
        %939 = vmatpush1.bf16.msra.mxu0 0
        %940 = vmatprep.subr.bf16.mxu0 0
        %941 = vmatpush1.bf16.msra.mxu0 0
        %942 = vmatprep.subr.bf16.mxu0 0
        %943 = vmatpush1.bf16.msra.mxu0 0
        %944 = vmatprep.subr.bf16.mxu0 0
        %945 = vmatpush1.bf16.msra.mxu0 0
        %946 = vmatprep.subr.bf16.mxu0 0
        %947 = vmatpush1.bf16.msra.mxu0 0
        %948 = vmatprep.subr.bf16.mxu0 0
        %949 = vmatpush1.bf16.msra.mxu0 0
        %950 = vmatprep.subr.bf16.mxu0 0
        %951 = vmatpush1.bf16.msra.mxu0 0
        %952 = vmatprep.subr.bf16.mxu0 0
        %953 = vmatpush1.bf16.msra.mxu0 0
        %954 = vmatprep.subr.bf16.mxu0 0
        %955 = vmatpush1.bf16.msra.mxu0 0
        %956 = vmatprep.mubr.bf16.mxu0 0
        %957 = vmatmul.mubr.bf16.gmra.mrb[0].mxu0 %v918
        %v958 = vpop.f32.mrb[0].mxu0
        %v959 = vadd.f32 0.0, %v958
        %v960 = vpop.f32.mrb[0].mxu0
        %v961 = vpop.f32.mrb[0].mxu0
        %v962 = vpop.f32.mrb[0].mxu0
        %963 = vdwg.mxu0
        %v964 = vpack.c.bf16 %v959, %v959
        %v965 = vld [vmem:[#allocation8] sm:$0xf]
        %v966 = vld [vmem:[#allocation8 + $0x4] sm:$0xf]
        %968 = vrot.lane.b32.xlu0 %v853, 112
        %v969 = vpop.permute.xlu0 %968
        %971 = vrot.lane.b32.xlu0 %v854, 112
        %v972 = vpop.permute.xlu0 %971
        %v974 = vsel %vm856, %v969, 0
        %v977 = vsel %vm856, %v972, 0
        %979 = vmatprep.subr.bf16.mxu0 0
        %980 = vmatpush1.bf16.xpose.msra.mxu0 %v977
        %981 = vmatprep.subr.bf16.mxu0 0
        %982 = vmatpush1.bf16.xpose.msra.mxu0 0
        %983 = vmatprep.subr.bf16.mxu0 0
        %984 = vmatpush1.bf16.xpose.msra.mxu0 0
        %985 = vmatprep.subr.bf16.mxu0 0
        %986 = vmatpush1.bf16.xpose.msra.mxu0 0
        %987 = vmatprep.subr.bf16.mxu0 0
        %988 = vmatpush1.bf16.xpose.msra.mxu0 0
        %989 = vmatprep.subr.bf16.mxu0 0
        %990 = vmatpush1.bf16.xpose.msra.mxu0 0
        %991 = vmatprep.subr.bf16.mxu0 0
        %992 = vmatpush1.bf16.xpose.msra.mxu0 0
        %993 = vmatprep.subr.bf16.mxu0 0
        %994 = vmatpush1.bf16.xpose.msra.mxu0 0
        %995 = vmatprep.subr.bf16.mxu0 0
        %996 = vmatpush1.bf16.xpose.msra.mxu0 0
        %997 = vmatprep.subr.bf16.mxu0 0
        %998 = vmatpush1.bf16.xpose.msra.mxu0 0
        %999 = vmatprep.subr.bf16.mxu0 0
        %1000 = vmatpush1.bf16.xpose.msra.mxu0 0
        %1001 = vmatprep.subr.bf16.mxu0 0
        %1002 = vmatpush1.bf16.xpose.msra.mxu0 0
        %1003 = vmatprep.subr.bf16.mxu0 0
        %1004 = vmatpush1.bf16.xpose.msra.mxu0 0
        %1005 = vmatprep.subr.bf16.mxu0 0
        %1006 = vmatpush1.bf16.xpose.msra.mxu0 0
        %1007 = vmatprep.subr.bf16.mxu0 0
        %1008 = vmatpush1.bf16.xpose.msra.mxu0 0
        %1009 = vmatprep.subr.bf16.mxu0 0
        %1010 = vmatpush1.bf16.xpose.msra.mxu0 0
        %1011 = vmatprep.mubr.bf16.mxu0 0
        %1012 = vmatmul.mubr.bf16.gmra.mrb[0].mxu0 %v974
        %v1013 = vpop.f32.mrb[0].mxu0
        %v1014 = vadd.f32 %v659, %v1013
        %v1015 = vpop.f32.mrb[0].mxu0
        %v1016 = vpop.f32.mrb[0].mxu0
        %v1017 = vpop.f32.mrb[0].mxu0
        %1018 = vdwg.mxu0
        %v1019 = vsel %vm903, %v1014, -inf
        %1020 = vmax.xlane.f32.xlu0 %v1019
        %v1021 = vpop.xlane.xlu0 %1020
        %v1022 = vsub.f32 %v1014, %v1021
        %v1023 = vmul.f32 %v1022, 1.442695
        %v1024 = vpow.pop %v1023
        %v1025 = vsel %vm903, %v1024, 0.0
        %1026 = vadd.xlane.f32.xlu0 %v1025
        %v1027 = vpop.xlane.xlu0 %1026
        %v1028 = vrcp.pop %v1027
        %v1029 = vmul.f32 %v1024, %v1028
        %v1030 = vadd.f32 %v915, %v1029
        %v1031 = vpack.c.bf16 %v1029, %v1029
        %1033 = vrot.lane.b32.xlu0 %v855, 112
        %v1034 = vpop.permute.xlu0 %1033
        %v1036 = vsel %vm903, %v1031, 0
        %v1039 = vsel %vm920, %v1034, 0
        %1041 = vmatprep.subr.bf16.mxu0 0
        %1042 = vmatpush1.bf16.msra.mxu0 %v1039
        %1043 = vmatprep.subr.bf16.mxu0 0
        %1044 = vmatpush1.bf16.msra.mxu0 0
        %1045 = vmatprep.subr.bf16.mxu0 0
        %1046 = vmatpush1.bf16.msra.mxu0 0
        %1047 = vmatprep.subr.bf16.mxu0 0
        %1048 = vmatpush1.bf16.msra.mxu0 0
        %1049 = vmatprep.subr.bf16.mxu0 0
        %1050 = vmatpush1.bf16.msra.mxu0 0
        %1051 = vmatprep.subr.bf16.mxu0 0
        %1052 = vmatpush1.bf16.msra.mxu0 0
        %1053 = vmatprep.subr.bf16.mxu0 0
        %1054 = vmatpush1.bf16.msra.mxu0 0
        %1055 = vmatprep.subr.bf16.mxu0 0
        %1056 = vmatpush1.bf16.msra.mxu0 0
        %1057 = vmatprep.subr.bf16.mxu0 0
        %1058 = vmatpush1.bf16.msra.mxu0 0
        %1059 = vmatprep.subr.bf16.mxu0 0
        %1060 = vmatpush1.bf16.msra.mxu0 0
        %1061 = vmatprep.subr.bf16.mxu0 0
        %1062 = vmatpush1.bf16.msra.mxu0 0
        %1063 = vmatprep.subr.bf16.mxu0 0
        %1064 = vmatpush1.bf16.msra.mxu0 0
        %1065 = vmatprep.subr.bf16.mxu0 0
        %1066 = vmatpush1.bf16.msra.mxu0 0
        %1067 = vmatprep.subr.bf16.mxu0 0
        %1068 = vmatpush1.bf16.msra.mxu0 0
        %1069 = vmatprep.subr.bf16.mxu0 0
        %1070 = vmatpush1.bf16.msra.mxu0 0
        %1071 = vmatprep.subr.bf16.mxu0 0
        %1072 = vmatpush1.bf16.msra.mxu0 0
        %1073 = vmatprep.mubr.bf16.mxu0 0
        %1074 = vmatmul.mubr.bf16.gmra.mrb[0].mxu0 %v1036
        %v1075 = vpop.f32.mrb[0].mxu0
        %v1076 = vadd.f32 0.0, %v1075
        %v1077 = vpop.f32.mrb[0].mxu0
        %v1078 = vpop.f32.mrb[0].mxu0
        %v1079 = vpop.f32.mrb[0].mxu0
        %1080 = vdwg.mxu0
        %v1081 = vpack.c.bf16 %v1076, %v1076
        %s1082 = scalar_lea.vmem [#allocation8], 8
        %v1083 = vld [vmem:[%s1082] sm:$0xf]
        %v1084 = vld [vmem:[%s1082 + $0x4] sm:$0xf]
        %v1087 = vunpack.c.l.b16 %v1083
        %v1088 = vunpack.c.l.b16 %v1084
        %v1089 = vpack.c.b16 %v1088, %v1087
        %v1092 = vsel %vm856, %v1081, 0
        %1094 = vmatprep.subr.bf16.mxu0 0
        %1095 = vmatpush1.bf16.msra.mxu0 %v1089
        %1096 = vmatprep.subr.bf16.mxu0 0
        %1097 = vmatpush1.bf16.msra.mxu0 0
        %1098 = vmatprep.subr.bf16.mxu0 0
        %1099 = vmatpush1.bf16.msra.mxu0 0
        %1100 = vmatprep.subr.bf16.mxu0 0
        %1101 = vmatpush1.bf16.msra.mxu0 0
        %1102 = vmatprep.subr.bf16.mxu0 0
        %1103 = vmatpush1.bf16.msra.mxu0 0
        %1104 = vmatprep.subr.bf16.mxu0 0
        %1105 = vmatpush1.bf16.msra.mxu0 0
        %1106 = vmatprep.subr.bf16.mxu0 0
        %1107 = vmatpush1.bf16.msra.mxu0 0
        %1108 = vmatprep.subr.bf16.mxu0 0
        %1109 = vmatpush1.bf16.msra.mxu0 0
        %1110 = vmatprep.subr.bf16.mxu0 0
        %1111 = vmatpush1.bf16.msra.mxu0 0
        %1112 = vmatprep.subr.bf16.mxu0 0
        %1113 = vmatpush1.bf16.msra.mxu0 0
        %1114 = vmatprep.subr.bf16.mxu0 0
        %1115 = vmatpush1.bf16.msra.mxu0 0
        %1116 = vmatprep.subr.bf16.mxu0 0
        %1117 = vmatpush1.bf16.msra.mxu0 0
        %1118 = vmatprep.subr.bf16.mxu0 0
        %1119 = vmatpush1.bf16.msra.mxu0 0
        %1120 = vmatprep.subr.bf16.mxu0 0
        %1121 = vmatpush1.bf16.msra.mxu0 0
        %1122 = vmatprep.subr.bf16.mxu0 0
        %1123 = vmatpush1.bf16.msra.mxu0 0
        %1124 = vmatprep.subr.bf16.mxu0 0
        %1125 = vmatpush1.bf16.msra.mxu0 0
        %1126 = vmatprep.mubr.bf16.mxu0 0
        %1127 = vmatmul.mubr.bf16.gmra.mrb[0].mxu0 %v1092
        %v1128 = vpop.f32.mrb[0].mxu0
        %v1129 = vadd.f32 0.0, %v1128
        %v1130 = vpop.f32.mrb[0].mxu0
        %v1131 = vpop.f32.mrb[0].mxu0
        %v1132 = vpop.f32.mrb[0].mxu0
        %1133 = vdwg.mxu0
        %v1136 = vunpack.c.l.b16 %v965
        %v1137 = vunpack.c.l.b16 %v966
        %v1138 = vpack.c.b16 %v1137, %v1136
        %v1141 = vsel %vm856, %v964, 0
        %1143 = vmatprep.subr.bf16.mxu0 0
        %1144 = vmatpush1.bf16.msra.mxu0 %v1138
        %1145 = vmatprep.subr.bf16.mxu0 0
        %1146 = vmatpush1.bf16.msra.mxu0 0
        %1147 = vmatprep.subr.bf16.mxu0 0
        %1148 = vmatpush1.bf16.msra.mxu0 0
        %1149 = vmatprep.subr.bf16.mxu0 0
        %1150 = vmatpush1.bf16.msra.mxu0 0
        %1151 = vmatprep.subr.bf16.mxu0 0
        %1152 = vmatpush1.bf16.msra.mxu0 0
        %1153 = vmatprep.subr.bf16.mxu0 0
        %1154 = vmatpush1.bf16.msra.mxu0 0
        %1155 = vmatprep.subr.bf16.mxu0 0
        %1156 = vmatpush1.bf16.msra.mxu0 0
        %1157 = vmatprep.subr.bf16.mxu0 0
        %1158 = vmatpush1.bf16.msra.mxu0 0
        %1159 = vmatprep.subr.bf16.mxu0 0
        %1160 = vmatpush1.bf16.msra.mxu0 0
        %1161 = vmatprep.subr.bf16.mxu0 0
        %1162 = vmatpush1.bf16.msra.mxu0 0
        %1163 = vmatprep.subr.bf16.mxu0 0
        %1164 = vmatpush1.bf16.msra.mxu0 0
        %1165 = vmatprep.subr.bf16.mxu0 0
        %1166 = vmatpush1.bf16.msra.mxu0 0
        %1167 = vmatprep.subr.bf16.mxu0 0
        %1168 = vmatpush1.bf16.msra.mxu0 0
        %1169 = vmatprep.subr.bf16.mxu0 0
        %1170 = vmatpush1.bf16.msra.mxu0 0
        %1171 = vmatprep.subr.bf16.mxu0 0
        %1172 = vmatpush1.bf16.msra.mxu0 0
        %1173 = vmatprep.subr.bf16.mxu0 0
        %1174 = vmatpush1.bf16.msra.mxu0 0
        %1175 = vmatprep.mubr.bf16.mxu0 0
        %1176 = vmatmul.mubr.bf16.gmra.mrb[0].mxu0 %v1141
        %v1177 = vpop.f32.mrb[0].mxu0
        %v1178 = vadd.f32 %v1129, %v1177
        %v1179 = vpop.f32.mrb[0].mxu0
        %v1180 = vpop.f32.mrb[0].mxu0
        %v1181 = vpop.f32.mrb[0].mxu0
        %1182 = vdwg.mxu0
        %v1183 = vld [vmem:[#allocation10] sm:$0x1]
        %v1185 = vlaneseq
        %v1186 = vshrl.u32 %v1185, 7
        %v1187 = vsub.s32 0, %v1186
        %v1188 = vrot.slane %v1183, %v1187
        %v1190 = vadd.f32 %v1178, %v1188
        %v1191 = vld [vmem:[%s14] sm:$0x1]
        %v1192 = vld [vmem:[%s15] sm:$0x1]
        %v1193 = vld [vmem:[%s655] sm:$0xff]
        %v1194 = vadd.f32 %v1190, %v1193
        %v1195 = vsel %vm683, %v1194, 0.0
        %1196 = vadd.xlane.f32.xlu0 %v1195
        %v1197 = vpop.xlane.xlu0 %1196
        %v1198 = vrcp.pop 32.0
        %v1199 = vmul.f32 %v1197, %v1198
        %v1200 = vsub.f32 %v1194, %v1199
        %v1201 = vmul.f32 %v1200, %v1200
        %v1202 = vsel %vm683, %v1201, 0.0
        %1203 = vadd.xlane.f32.xlu0 %v1202
        %v1204 = vpop.xlane.xlu0 %1203
        %v1205 = vmul.f32 %v1204, %v1198
        %v1206 = vadd.f32 %v1205, 1e-05
        %v1207 = vrsqrt.pop %v1206
        %v1208 = vmul.f32 %v1200, %v1207
        %v1210 = vlaneseq
        %v1211 = vshrl.u32 %v1210, 7
        %v1212 = vsub.s32 0, %v1211
        %v1213 = vrot.slane %v1191, %v1212
        %v1215 = vmul.f32 %v1208, %v1213
        %v1217 = vlaneseq
        %v1218 = vshrl.u32 %v1217, 7
        %v1219 = vsub.s32 0, %v1218
        %v1220 = vrot.slane %v1192, %v1219
        %v1222 = vadd.f32 %v1215, %v1220
        %v1223 = vpack.c.bf16 %v1222, %v1222
        %v1224 = vld [vmem:[%s10] sm:$0xf]
        %v1225 = vld [vmem:[%s10 + $0x4] sm:$0xf]
        %v1226 = vld [vmem:[%s10 + $0x8] sm:$0xf]
        %v1227 = vld [vmem:[%s10 + $0xc] sm:$0xf]
        %v1228 = vld [vmem:[%s11] sm:$0x1]
        %v1230 = vlaneseq
        %v1231 = vshrl.u32 %v1230, 7
        %v1232 = vsub.s32 0, %v1231
        %v1233 = vrot.slane %v1228, %v1232
        %v1239 = vunpack.c.l.b16 %v1224
        %v1240 = vunpack.c.l.b16 %v1225
        %v1241 = vunpack.c.l.b16 %v1226
        %v1242 = vunpack.c.l.b16 %v1227
        %v1243 = vpack.c.b16 %v1240, %v1239
        %v1244 = vpack.c.b16 %v1242, %v1241
        %v1248 = vsel %vm683, %v1223, 0
        %1250 = vmatprep.subr.bf16.mxu0 0
        %1251 = vmatpush1.bf16.msra.mxu0 %v1243
        %1252 = vmatprep.subr.bf16.mxu0 0
        %1253 = vmatpush1.bf16.msra.mxu0 %v1244
        %1254 = vmatprep.subr.bf16.mxu0 0
        %1255 = vmatpush1.bf16.msra.mxu0 0
        %1256 = vmatprep.subr.bf16.mxu0 0
        %1257 = vmatpush1.bf16.msra.mxu0 0
        %1258 = vmatprep.subr.bf16.mxu0 0
        %1259 = vmatpush1.bf16.msra.mxu0 0
        %1260 = vmatprep.subr.bf16.mxu0 0
        %1261 = vmatpush1.bf16.msra.mxu0 0
        %1262 = vmatprep.subr.bf16.mxu0 0
        %1263 = vmatpush1.bf16.msra.mxu0 0
        %1264 = vmatprep.subr.bf16.mxu0 0
        %1265 = vmatpush1.bf16.msra.mxu0 0
        %1266 = vmatprep.subr.bf16.mxu0 0
        %1267 = vmatpush1.bf16.msra.mxu0 0
        %1268 = vmatprep.subr.bf16.mxu0 0
        %1269 = vmatpush1.bf16.msra.mxu0 0
        %1270 = vmatprep.subr.bf16.mxu0 0
        %1271 = vmatpush1.bf16.msra.mxu0 0
        %1272 = vmatprep.subr.bf16.mxu0 0
        %1273 = vmatpush1.bf16.msra.mxu0 0
        %1274 = vmatprep.subr.bf16.mxu0 0
        %1275 = vmatpush1.bf16.msra.mxu0 0
        %1276 = vmatprep.subr.bf16.mxu0 0
        %1277 = vmatpush1.bf16.msra.mxu0 0
        %1278 = vmatprep.subr.bf16.mxu0 0
        %1279 = vmatpush1.bf16.msra.mxu0 0
        %1280 = vmatprep.subr.bf16.mxu0 0
        %1281 = vmatpush1.bf16.msra.mxu0 0
        %1282 = vmatprep.mubr.bf16.mxu0 0
        %1283 = vmatmul.mubr.bf16.gmra.mrb[0].mxu0 %v1248
        %v1284 = vpop.f32.mrb[0].mxu0
        %v1285 = vadd.f32 %v1233, %v1284
        %v1286 = vpop.f32.mrb[0].mxu0
        %v1287 = vpop.f32.mrb[0].mxu0
        %v1288 = vpop.f32.mrb[0].mxu0
        %1289 = vdwg.mxu0
        %v1290 = vmax.f32 %v1285, 0.0
        %v1291 = vpack.c.bf16 %v1290, %v1290
        %v1292 = vld [vmem:[%s12] sm:$0xf]
        %v1293 = vld [vmem:[%s12 + $0x4] sm:$0xf]
        %v1294 = vld [vmem:[%s12 + $0x8] sm:$0xf]
        %v1295 = vld [vmem:[%s12 + $0xc] sm:$0xf]
        %v1296 = vld [vmem:[%s12 + $0x10] sm:$0xf]
        %v1297 = vld [vmem:[%s12 + $0x14] sm:$0xf]
        %v1298 = vld [vmem:[%s12 + $0x18] sm:$0xf]
        %v1299 = vld [vmem:[%s12 + $0x1c] sm:$0xf]
        %v1300 = vld [vmem:[%s13] sm:$0x1]
        %v1302 = vlaneseq
        %v1303 = vshrl.u32 %v1302, 7
        %v1304 = vsub.s32 0, %v1303
        %v1305 = vrot.slane %v1300, %v1304
        %v1315 = vunpack.c.l.b16 %v1292
        %v1316 = vunpack.c.l.b16 %v1293
        %v1317 = vunpack.c.l.b16 %v1294
        %v1318 = vunpack.c.l.b16 %v1295
        %v1319 = vunpack.c.l.b16 %v1296
        %v1320 = vunpack.c.l.b16 %v1297
        %v1321 = vunpack.c.l.b16 %v1298
        %v1322 = vunpack.c.l.b16 %v1299
        %v1323 = vpack.c.b16 %v1316, %v1315
        %v1324 = vpack.c.b16 %v1318, %v1317
        %v1325 = vpack.c.b16 %v1320, %v1319
        %v1326 = vpack.c.b16 %v1322, %v1321
        %vm1331 = vcmask 523264
        %v1333 = vsel %vm1331, %v1291, 0
        %1335 = vmatprep.subr.bf16.mxu0 0
        %1336 = vmatpush1.bf16.msra.mxu0 %v1323
        %1337 = vmatprep.subr.bf16.mxu0 0
        %1338 = vmatpush1.bf16.msra.mxu0 %v1324
        %1339 = vmatprep.subr.bf16.mxu0 0
        %1340 = vmatpush1.bf16.msra.mxu0 %v1325
        %1341 = vmatprep.subr.bf16.mxu0 0
        %1342 = vmatpush1.bf16.msra.mxu0 %v1326
        %1343 = vmatprep.subr.bf16.mxu0 0
        %1344 = vmatpush1.bf16.msra.mxu0 0
        %1345 = vmatprep.subr.bf16.mxu0 0
        %1346 = vmatpush1.bf16.msra.mxu0 0
        %1347 = vmatprep.subr.bf16.mxu0 0
        %1348 = vmatpush1.bf16.msra.mxu0 0
        %1349 = vmatprep.subr.bf16.mxu0 0
        %1350 = vmatpush1.bf16.msra.mxu0 0
        %1351 = vmatprep.subr.bf16.mxu0 0
        %1352 = vmatpush1.bf16.msra.mxu0 0
        %1353 = vmatprep.subr.bf16.mxu0 0
        %1354 = vmatpush1.bf16.msra.mxu0 0
        %1355 = vmatprep.subr.bf16.mxu0 0
        %1356 = vmatpush1.bf16.msra.mxu0 0
        %1357 = vmatprep.subr.bf16.mxu0 0
        %1358 = vmatpush1.bf16.msra.mxu0 0
        %1359 = vmatprep.subr.bf16.mxu0 0
        %1360 = vmatpush1.bf16.msra.mxu0 0
        %1361 = vmatprep.subr.bf16.mxu0 0
        %1362 = vmatpush1.bf16.msra.mxu0 0
        %1363 = vmatprep.subr.bf16.mxu0 0
        %1364 = vmatpush1.bf16.msra.mxu0 0
        %1365 = vmatprep.subr.bf16.mxu0 0
        %1366 = vmatpush1.bf16.msra.mxu0 0
        %1367 = vmatprep.mubr.bf16.mxu0 0
        %1368 = vmatmul.mubr.bf16.gmra.mrb[0].mxu0 %v1333
        %v1369 = vpop.f32.mrb[0].mxu0
        %v1370 = vadd.f32 %v1305, %v1369
        %v1371 = vpop.f32.mrb[0].mxu0
        %v1372 = vpop.f32.mrb[0].mxu0
        %v1373 = vpop.f32.mrb[0].mxu0
        %1374 = vdwg.mxu0
        %v1375 = vadd.f32 %v1370, %v1193
        %v1376 = vsel %vm683, %v1375, 0.0
        %1377 = vadd.xlane.f32.xlu0 %v1376
        %v1378 = vpop.xlane.xlu0 %1377
        %v1379 = vmul.f32 %v1378, %v1198
        %v1380 = vsub.f32 %v1375, %v1379
        %v1381 = vmul.f32 %v1380, %v1380
        %v1382 = vsel %vm683, %v1381, 0.0
        %1383 = vadd.xlane.f32.xlu0 %v1382
        %v1384 = vpop.xlane.xlu0 %1383
        %v1385 = vmul.f32 %v1384, %v1198
        %v1386 = vadd.f32 %v1385, 1e-05
        %v1387 = vrsqrt.pop %v1386
        %v1388 = vmul.f32 %v1380, %v1387
        %v1389 = vmul.f32 %v1388, %v1213
        %v1390 = vadd.f32 %v1389, %v1220
        %1391 = vst.msk [vmem:[%s641] sm:$0xff] %vm683, %v1390
        %v1392 = vmul.f32 %v1030, 0.5
        %1393 = vst.msk [vmem:[%s648] sm:$0xff] %vm903, %v1392
        %s1394 = sand.u32 %s408, 1
        %s1395 = scalar_lea.sflag [#allocation4], %s1394
        %s1396 = sand.u32 %s408, 1
        %s1397 = smul.addr %s1396, 8
        %s1398 = scalar_lea.vmem [#allocation11], %s1397
        %s1399 = sand.u32 %s436, 1
        %s1400 = scalar_lea.sflag [#allocation13], %s1399
        %s1401 = sand.u32 %s436, 1
        %s1402 = smul.addr %s1401, 8
        %s1403 = scalar_lea.vmem [#allocation12], %s1402
        // Predicated region
        $region105: #{tpu_custom_call.1} parent=83 // pred_check
          %p1404 = pneg %p418
        $region106: #{tpu_custom_call.1} parent=83 // pred_check_branch
          %1406 = sbr.rel (%p1404) target = $region108
        $region107: #{tpu_custom_call.1} parent=83 // pred_region
          %s1408 = ssub.s32 128, 128
          %1409 = vsyncadd %s1395, %s1408
          %s1410 = sadd.s32 %s43, %s42
          %s1411 = smul.addr %s1410, 128
          %s1412 = scalar_lea.hbm %s16, %s1411
          %s1414 = sshll.u32 %s1398, 4
          %s1415 = int_to_ptr.vmem [resolvable:$true] %s1414
          %1417 = dma.vmem_to_hbm [thread:$0]  %s1415, 128, %s1412, %s1395
        $region108: #{tpu_custom_call.1} parent=83 // pred_fallthru
          _
        // Predicated region
        $region109: #{tpu_custom_call.1} parent=83 // pred_check
          %p1418 = pneg %p446
        $region110: #{tpu_custom_call.1} parent=83 // pred_check_branch
          %1420 = sbr.rel (%p1418) target = $region112
        $region111: #{tpu_custom_call.1} parent=83 // pred_region
          %s1422 = ssub.s32 128, 128
          %1423 = vsyncadd %s1400, %s1422
          %s1424 = sadd.s32 %s43, %s42
          %s1425 = smul.addr %s1424, 128
          %s1426 = scalar_lea.hbm %s17, %s1425
          %s1428 = sshll.u32 %s1403, 4
          %s1429 = int_to_ptr.vmem [resolvable:$true] %s1428
          %1431 = dma.vmem_to_hbm [thread:$0]  %s1429, 128, %s1426, %s1400
        $region112: #{tpu_custom_call.1} parent=83 // pred_fallthru
          _
      $region84: #{tpu_custom_call.1} parent=5 // pred_fallthru
        _
      %p1432 = scmp.le.s32.totalorder 2, %s33
      // Predicated region
      $region113: #{tpu_custom_call.1} parent=5 // pred_check
        %p1433 = pneg %p1432
      $region114: #{tpu_custom_call.1} parent=5 // pred_check_branch
        %1435 = sbr.rel (%p1433) target = $region116
      $region115: #{tpu_custom_call.1} parent=5 // pred_region
        %s1436 = ssub.s32 %s33, 2
        // Predicated region
        $region117: #{tpu_custom_call.1} parent=115 // pred_check
          %p1437 = pneg %p424
        $region118: #{tpu_custom_call.1} parent=115 // pred_check_branch
          %1439 = sbr.rel (%p1437) target = $region120
        $region119: #{tpu_custom_call.1} parent=115 // pred_region
          %s1440 = sand.u32 %s409, 1
          %s1441 = scalar_lea.sflag [#allocation4], %s1440
          %s1442 = sand.u32 %s409, 1
          %s1443 = smul.addr %s1442, 8
          %s1444 = scalar_lea.vmem [#allocation11], %s1443
          %1445 = dma.done %s1441, 128
        $region120: #{tpu_custom_call.1} parent=115 // pred_fallthru
          _
        // Predicated region
        $region121: #{tpu_custom_call.1} parent=115 // pred_check
          %p1446 = pneg %p452
        $region122: #{tpu_custom_call.1} parent=115 // pred_check_branch
          %1448 = sbr.rel (%p1446) target = $region124
        $region123: #{tpu_custom_call.1} parent=115 // pred_region
          %s1449 = sand.u32 %s437, 1
          %s1450 = scalar_lea.sflag [#allocation13], %s1449
          %s1451 = sand.u32 %s437, 1
          %s1452 = smul.addr %s1451, 8
          %s1453 = scalar_lea.vmem [#allocation12], %s1452
          %1454 = dma.done %s1450, 128
        $region124: #{tpu_custom_call.1} parent=115 // pred_fallthru
          _
      $region116: #{tpu_custom_call.1} parent=5 // pred_fallthru
        _
    $region6: #{tpu_custom_call.1} parent=1 // loop_footer
      %s37 = sadd.s32 1, %s33
    $region7: #{tpu_custom_call.1} parent=1 // loop_footer_branch
      %32 = sbr.rel target = $region3
    $region8: #{tpu_custom_call.1} parent=1 // loop_exit
      _
    %1455 = vsyncpa [#allocation3], 1
    %s1456 = scalar_lea.sflag [#allocation3], 1
    %1457 = vsyncpa %s1456, 1
    %1458 = vsyncpa [#allocation6], 1
    %1459 = vsyncpa [#allocation9], 1
    %1460 = vsyncpa [#allocation4], 1
    %s1461 = scalar_lea.sflag [#allocation4], 1
    %1462 = vsyncpa %s1461, 1
    %1463 = vsyncpa [#allocation13], 1
    %s1464 = scalar_lea.sflag [#allocation13], 1
    %1465 = vsyncpa %s1464, 1

</llo_original>
